<compile_context>
chip_gen: v6e
topology: v6e:2x2x1
jax: 0.10.0
libtpu: 0.0.40
codegen_flags: <defaults>
</compile_context>

<pallas_src>
import math
import numpy as np
import jax
import jax.numpy as jnp
from jax import lax
from jax.experimental import pallas as pl
from jax.experimental.pallas import tpu as pltpu

N = 16            # nodes per graph
D = 32            # in_dim == out_dim
H = 4             # num heads
DH = D // H       # per-head dim
FFN = 2 * D       # FFN hidden
GB = 8            # graphs packed per grid step (sweepable; 8 keeps full lanes)
R = GB * N        # node rows per grid step (= 128)
CLAMP = 5.0       # attn_clamp
LN_EPS = 1e-5

# No-max softmax is only valid because the clamp bounds |score| (exp stays finite).
assert CLAMP is not None and CLAMP < 80.0


def san_layer_kernel(x_ref, mask_ref,
                     wqkv_ref, bqkv_ref, wo_ref, bo_ref,
                     ln1g_ref, ln1b_ref, w1_ref, b1_ref, w2_ref, b2_ref,
                     ln2g_ref, ln2b_ref,
                     out_ref):
    x = x_ref[...]                                   # (R, D) f32
    maskf = mask_ref[0].astype(jnp.float32)          # (R, R) int8 -> f32, once/step

    # ---- fused Q/K/V projection: bf16 operands, f32 accumulation -----------
    # 1/sqrt(d_head) is pre-folded into the Q weights/bias host-side.
    qkv = (jnp.dot(x.astype(jnp.bfloat16), wqkv_ref[...],
                   preferred_element_type=jnp.float32)
           + bqkv_ref[...]).astype(jnp.bfloat16)     # (R, 3D) bf16

    # ---- multi-head attention + fused O-projection accumulation ------------
    # acc = x + bo + sum_h (wV_h @ Wo_h)   == residual + O_h(wV)
    acc = x + bo_ref[...]                            # (R, D) f32
    for h in range(H):                               # static unroll, H = 4
        lo = h * DH
        qh = qkv[:, lo:lo + DH]                      # (R, DH) bf16 (pre-scaled)
        kh = qkv[:, D + lo:D + lo + DH]              # (R, DH) bf16
        vh = qkv[:, 2 * D + lo:2 * D + lo + DH]      # (R, DH) bf16
        # score[dst, src] = q[dst] . k[src]
        s = lax.dot_general(qh, kh, (((1,), (1,)), ((), ())),
                            preferred_element_type=jnp.float32)   # (R, R) f32
        # attn_clamp bounds exp -> no max-subtraction needed; mask multiply
        # replaces the where/select pair (segment softmax over real edges).
        p = jnp.exp(jnp.clip(s, -CLAMP, CLAMP)) * maskf
        denom = jnp.sum(p, axis=-1, keepdims=True)
        o_h = jnp.dot(p.astype(jnp.bfloat16), vh,
                      preferred_element_type=jnp.float32)          # (R, DH)
        # deferred normalization on the small (R, DH) output; EUP reciprocal
        o_h = o_h * pl.reciprocal(jnp.maximum(denom, 1e-30), approx=True)
        # fold the O-projection: accumulate this head's contribution
        acc = acc + jnp.dot(o_h.astype(jnp.bfloat16), wo_ref[h],
                            preferred_element_type=jnp.float32)    # (R, D)

    # ---- LayerNorm1 (dropout = 0, eval) -------------------------------------
    mu = jnp.mean(acc, axis=-1, keepdims=True)
    var = jnp.mean((acc - mu) * (acc - mu), axis=-1, keepdims=True)
    h1 = (acc - mu) * lax.rsqrt(var + LN_EPS) * ln1g_ref[...] + ln1b_ref[...]

    # ---- FFN, residual, LayerNorm2 ------------------------------------------
    f = jnp.dot(h1.astype(jnp.bfloat16), w1_ref[...],
                preferred_element_type=jnp.float32) + b1_ref[...]
    f = jnp.maximum(f, 0.0)                          # ReLU
    f = jnp.dot(f.astype(jnp.bfloat16), w2_ref[...],
                preferred_element_type=jnp.float32) + b2_ref[...]
    h2 = h1 + f
    mu2 = jnp.mean(h2, axis=-1, keepdims=True)
    var2 = jnp.mean((h2 - mu2) * (h2 - mu2), axis=-1, keepdims=True)
    out_ref[...] = (h2 - mu2) * lax.rsqrt(var2 + LN_EPS) * ln2g_ref[...] + ln2b_ref[...]


def _resident_spec(shape):
    # Constant block index across the grid -> weight stays VMEM-resident
    # (Pallas skips re-DMA when the block index does not change).
    nd = len(shape)
    return pl.BlockSpec(shape, lambda g, _nd=nd: (0,) * _nd)


def san_layer(x, mask_blocks, params):
    """x: (B*N, D) f32 node features; mask_blocks: (B//GB, R, R) int8 block-diag adjacency."""
    total_rows = x.shape[0]
    assert total_rows % R == 0
    num_blocks = total_rows // R
    assert mask_blocks.shape == (num_blocks, R, R)

    in_specs = [
        pl.BlockSpec((R, D), lambda g: (g, 0)),         # streamed node rows
        pl.BlockSpec((1, R, R), lambda g: (g, 0, 0)),   # streamed int8 mask block
    ] + [_resident_spec(p.shape) for p in params]       # resident weights

    return pl.pallas_call(
        san_layer_kernel,
        out_shape=jax.ShapeDtypeStruct((total_rows, D), jnp.float32),
        grid=(num_blocks,),
        in_specs=in_specs,
        out_specs=pl.BlockSpec((R, D), lambda g: (g, 0)),
        compiler_params=pltpu.CompilerParams(
            dimension_semantics=("parallel",)),          # megacore split on v7x
    )(x, mask_blocks, *params)


# ---------------- pure-JAX reference (edge-list semantics, mirrors PyG) -----
def reference(x, adj, params_ref):
    (wq, bq, wk, bk, wv, bv, wo, bo, ln1g, ln1b,
     w1, b1, w2, b2, ln2g, ln2b) = params_ref
    B = adj.shape[0]
    num_nodes = B * N

    g_idx, dst_l, src_l = np.nonzero(np.array(adj) > 0)   # adj[g, dst, src]
    dst_idx = jnp.asarray(g_idx * N + dst_l)
    src_idx = jnp.asarray(g_idx * N + src_l)

    Qh = (x @ wq + bq[0]).reshape(num_nodes, H, DH)
    Kh = (x @ wk + bk[0]).reshape(num_nodes, H, DH)
    Vh = (x @ wv + bv[0]).reshape(num_nodes, H, DH)

    score = (Kh[src_idx] * Qh[dst_idx]).sum(-1) / math.sqrt(DH)    # (E, H)
    score = jnp.clip(score, -CLAMP, CLAMP)
    seg_max = jax.ops.segment_max(score, dst_idx, num_segments=num_nodes)
    p = jnp.exp(score - seg_max[dst_idx])
    seg_sum = jax.ops.segment_sum(p, dst_idx, num_segments=num_nodes)
    alpha = p / seg_sum[dst_idx]
    msg = Vh[src_idx] * alpha[:, :, None]                          # (E, H, DH)
    wV = jax.ops.segment_sum(msg, dst_idx,
                             num_segments=num_nodes).reshape(num_nodes, D)

    def ln(h, g, b):
        mu = h.mean(-1, keepdims=True)
        var = ((h - mu) ** 2).mean(-1, keepdims=True)
        return (h - mu) * lax.rsqrt(var + LN_EPS) * g + b

    h = x + (wV @ wo + bo[0])
    h = ln(h, ln1g[0], ln1b[0])
    h_in2 = h
    f = jnp.maximum(h @ w1 + b1[0], 0.0)
    f = f @ w2 + b2[0]
    return ln(h_in2 + f, ln2g[0], ln2b[0])


def build_block_masks(adj_np):
    """(B, N, N) per-graph adjacency -> (B//GB, R, R) int8 block-diagonal masks."""
    B = adj_np.shape[0]
    nb = B // GB
    out = np.zeros((nb, R, R), np.int8)
    for bi in range(nb):
        for g in range(GB):
            out[bi, g * N:(g + 1) * N, g * N:(g + 1) * N] = adj_np[bi * GB + g]
    return jnp.asarray(out)


def _bf16_round(w):
    # Make weights bf16-representable so the kernel's host-side bf16 cast is exact.
    return w.astype(jnp.bfloat16).astype(jnp.float32)


if __name__ == "__main__":
    key = jax.random.PRNGKey(0)
    keys = jax.random.split(key, 10)

    B = 32                                     # graphs in the batch -> 4 grid steps (even)
    x = jax.random.normal(keys[0], (B * N, D), dtype=jnp.float32)
    x = _bf16_round(x)
    adj = jax.random.uniform(keys[1], (B, N, N)) < 0.35
    adj = adj | jnp.eye(N, dtype=bool)[None]   # self-loops: every dst has an edge
    adj_f = adj.astype(jnp.float32)            # adj[g, dst, src]
    mask_blocks = build_block_masks(np.array(adj, dtype=np.int8))

    def lin(k, fan_in, fan_out):
        kw, kb = jax.random.split(k)
        w = jax.random.normal(kw, (fan_in, fan_out), dtype=jnp.float32) * 0.1
        b = jax.random.normal(kb, (1, fan_out), dtype=jnp.float32) * 0.1
        return _bf16_round(w), b

    wq, bq = lin(keys[2], D, D)
    wk, bk = lin(keys[3], D, D)
    wv, bv = lin(keys[4], D, D)
    wo, bo = lin(keys[5], D, D)
    w1, b1 = lin(keys[6], D, FFN)
    w2, b2 = lin(keys[7], FFN, D)
    ln1g = jnp.ones((1, D), jnp.float32)
    ln1b = jnp.zeros((1, D), jnp.float32)
    ln2g = jnp.ones((1, D), jnp.float32)
    ln2b = jnp.zeros((1, D), jnp.float32)

    # Host-side fusion & bf16 prep: [Q*(1/sqrt(d_head)) | K | V] in one projection.
    inv_sqrt_d = 1.0 / math.sqrt(DH)
    wqkv = jnp.concatenate([wq * inv_sqrt_d, wk, wv], axis=1).astype(jnp.bfloat16)  # (D, 3D)
    bqkv = jnp.concatenate([bq * inv_sqrt_d, bk, bv], axis=1)                       # (1, 3D) f32
    wo_heads = wo.reshape(H, DH, D).astype(jnp.bfloat16)                            # (H, DH, D)
    w1_bf = w1.astype(jnp.bfloat16)
    w2_bf = w2.astype(jnp.bfloat16)

    kernel_params = (wqkv, bqkv, wo_heads, bo, ln1g, ln1b,
                     w1_bf, b1, w2_bf, b2, ln2g, ln2b)
    ref_params = (wq, bq, wk, bk, wv, bv, wo, bo, ln1g, ln1b,
                  w1, b1, w2, b2, ln2g, ln2b)

    out = san_layer(x, mask_blocks, kernel_params)
    out = jax.block_until_ready(out)

    ref = reference(x, adj_f, ref_params)
    # Kernel feeds bf16 operands to the MXU (f32 accumulation) + approx reciprocal,
    # so compare at bf16-level mixed-precision tolerance against the f32 reference.
    np.testing.assert_allclose(np.array(out), np.array(ref), rtol=3e-2, atol=3e-2)

    print("KERNEL_OK")
</pallas_src>

<mosaic_0001>
module attributes {stable_mosaic.version = 11 : i64} {
  func.func @san_layer_kernel(%arg0: i32, %arg1: memref<128x32xf32, #tpu.memory_space<vmem>>, %arg2: memref<1x128x128xi8, #tpu.memory_space<vmem>>, %arg3: memref<32x96xbf16, #tpu.memory_space<vmem>>, %arg4: memref<1x96xf32, #tpu.memory_space<vmem>>, %arg5: memref<4x8x32xbf16, #tpu.memory_space<vmem>>, %arg6: memref<1x32xf32, #tpu.memory_space<vmem>>, %arg7: memref<1x32xf32, #tpu.memory_space<vmem>>, %arg8: memref<1x32xf32, #tpu.memory_space<vmem>>, %arg9: memref<32x64xbf16, #tpu.memory_space<vmem>>, %arg10: memref<1x64xf32, #tpu.memory_space<vmem>>, %arg11: memref<64x32xbf16, #tpu.memory_space<vmem>>, %arg12: memref<1x32xf32, #tpu.memory_space<vmem>>, %arg13: memref<1x32xf32, #tpu.memory_space<vmem>>, %arg14: memref<1x32xf32, #tpu.memory_space<vmem>>, %arg15: memref<128x32xf32, #tpu.memory_space<vmem>>) attributes {dimension_semantics = [#tpu.dimension_semantics<parallel>], iteration_bounds = array<i64: 4>, scalar_prefetch = 0 : i64, scratch_operands = 0 : i64, tpu.core_type = #tpu.core_type<tc>, window_params = [{transform_indices = @transform_0, window_bounds = array<i64: 128, 32>}, {transform_indices = @transform_1, window_bounds = array<i64: 1, 128, 128>}, {pipeline_mode = #tpu.pipeline_mode<synchronous>, transform_indices = @transform_2, window_bounds = array<i64: 32, 96>}, {pipeline_mode = #tpu.pipeline_mode<synchronous>, transform_indices = @transform_3, window_bounds = array<i64: 1, 96>}, {pipeline_mode = #tpu.pipeline_mode<synchronous>, transform_indices = @transform_4, window_bounds = array<i64: 4, 8, 32>}, {pipeline_mode = #tpu.pipeline_mode<synchronous>, transform_indices = @transform_5, window_bounds = array<i64: 1, 32>}, {pipeline_mode = #tpu.pipeline_mode<synchronous>, transform_indices = @transform_6, window_bounds = array<i64: 1, 32>}, {pipeline_mode = #tpu.pipeline_mode<synchronous>, transform_indices = @transform_7, window_bounds = array<i64: 1, 32>}, {pipeline_mode = #tpu.pipeline_mode<synchronous>, transform_indices = @transform_8, window_bounds = array<i64: 32, 64>}, {pipeline_mode = #tpu.pipeline_mode<synchronous>, transform_indices = @transform_9, window_bounds = array<i64: 1, 64>}, {pipeline_mode = #tpu.pipeline_mode<synchronous>, transform_indices = @transform_10, window_bounds = array<i64: 64, 32>}, {pipeline_mode = #tpu.pipeline_mode<synchronous>, transform_indices = @transform_11, window_bounds = array<i64: 1, 32>}, {pipeline_mode = #tpu.pipeline_mode<synchronous>, transform_indices = @transform_12, window_bounds = array<i64: 1, 32>}, {pipeline_mode = #tpu.pipeline_mode<synchronous>, transform_indices = @transform_13, window_bounds = array<i64: 1, 32>}, {transform_indices = @transform_14, window_bounds = array<i64: 128, 32>}]} {
    %c0 = arith.constant 0 : index
    %c0_0 = arith.constant 0 : index
    %0 = vector.load %arg1[%c0, %c0_0] : memref<128x32xf32, #tpu.memory_space<vmem>>, vector<128x32xf32>
    %c0_1 = arith.constant 0 : index
    %c0_2 = arith.constant 0 : index
    %c0_3 = arith.constant 0 : index
    %1 = vector.load %arg2[%c0_1, %c0_2, %c0_3] : memref<1x128x128xi8, #tpu.memory_space<vmem>>, vector<1x128x128xi8>
    %2 = vector.shape_cast %1 : vector<1x128x128xi8> to vector<128x128xi8>
    %3 = arith.sitofp %2 : vector<128x128xi8> to vector<128x128xf32>
    %4 = arith.truncf %0 : vector<128x32xf32> to vector<128x32xbf16>
    %c0_4 = arith.constant 0 : index
    %c0_5 = arith.constant 0 : index
    %5 = vector.load %arg3[%c0_4, %c0_5] : memref<32x96xbf16, #tpu.memory_space<vmem>>, vector<32x96xbf16>
    %cst = arith.constant dense<0.000000e+00> : vector<128x96xf32>
    %6 = tpu.matmul %4, %5, %cst {dimension_numbers = #tpu.dot_dimension_numbers<[1], [0], [0], [1], [0, 0, 1, 1], [], []>} : vector<128x32xbf16>, vector<32x96xbf16>, vector<128x96xf32> -> vector<128x96xf32>
    %c0_6 = arith.constant 0 : index
    %c0_7 = arith.constant 0 : index
    %7 = vector.load %arg4[%c0_6, %c0_7] : memref<1x96xf32, #tpu.memory_space<vmem>>, vector<1x96xf32>
    %8 = vector.broadcast %7 : vector<1x96xf32> to vector<128x96xf32>
    %9 = arith.addf %6, %8 : vector<128x96xf32>
    %10 = arith.truncf %9 : vector<128x96xf32> to vector<128x96xbf16>
    %c0_8 = arith.constant 0 : index
    %c0_9 = arith.constant 0 : index
    %11 = vector.load %arg6[%c0_8, %c0_9] : memref<1x32xf32, #tpu.memory_space<vmem>>, vector<1x32xf32>
    %12 = vector.broadcast %11 : vector<1x32xf32> to vector<128x32xf32>
    %13 = arith.addf %0, %12 : vector<128x32xf32>
    %14 = vector.extract_strided_slice %10 {offsets = [0, 0], sizes = [128, 8], strides = [1, 1]} : vector<128x96xbf16> to vector<128x8xbf16>
    %15 = vector.extract_strided_slice %10 {offsets = [0, 32], sizes = [128, 8], strides = [1, 1]} : vector<128x96xbf16> to vector<128x8xbf16>
    %16 = vector.extract_strided_slice %10 {offsets = [0, 64], sizes = [128, 8], strides = [1, 1]} : vector<128x96xbf16> to vector<128x8xbf16>
    %cst_10 = arith.constant dense<0.000000e+00> : vector<128x128xf32>
    %17 = tpu.matmul %14, %15, %cst_10 {dimension_numbers = #tpu.dot_dimension_numbers<[1], [1], [0], [0], [0, 0, 1, 0], [], []>} : vector<128x8xbf16>, vector<128x8xbf16>, vector<128x128xf32> -> vector<128x128xf32>
    %cst_11 = arith.constant -5.000000e+00 : f32
    %cst_12 = arith.constant 5.000000e+00 : f32
    %18 = vector.broadcast %cst_11 : f32 to vector<128x128xf32>
    %19 = arith.maximumf %18, %17 : vector<128x128xf32>
    %20 = vector.broadcast %cst_12 : f32 to vector<128x128xf32>
    %21 = arith.minimumf %20, %19 : vector<128x128xf32>
    %22 = math.exp %21 : vector<128x128xf32>
    %23 = arith.mulf %22, %3 : vector<128x128xf32>
    %cst_13 = arith.constant dense<0.000000e+00> : vector<128xf32>
    %24 = vector.multi_reduction <add>, %23, %cst_13 [1] : vector<128x128xf32> to vector<128xf32>
    %25 = vector.shape_cast %24 : vector<128xf32> to vector<128x1xf32>
    %26 = arith.truncf %23 : vector<128x128xf32> to vector<128x128xbf16>
    %cst_14 = arith.constant dense<0.000000e+00> : vector<128x8xf32>
    %27 = tpu.matmul %26, %16, %cst_14 {dimension_numbers = #tpu.dot_dimension_numbers<[1], [0], [0], [1], [0, 0, 1, 1], [], []>} : vector<128x128xbf16>, vector<128x8xbf16>, vector<128x8xf32> -> vector<128x8xf32>
    %cst_15 = arith.constant 1.000000e-30 : f32
    %28 = vector.broadcast %cst_15 : f32 to vector<128x1xf32>
    %29 = arith.maximumf %25, %28 : vector<128x1xf32>
    %30 = tpu.reciprocal %29 {approx = true} : vector<128x1xf32> -> vector<128x1xf32>
    %31 = vector.broadcast %30 : vector<128x1xf32> to vector<128x8xf32>
    %32 = arith.mulf %27, %31 : vector<128x8xf32>
    %33 = arith.truncf %32 : vector<128x8xf32> to vector<128x8xbf16>
    %c0_16 = arith.constant 0 : index
    %c0_17 = arith.constant 0 : index
    %c0_18 = arith.constant 0 : index
    %34 = vector.load %arg5[%c0_16, %c0_17, %c0_18] : memref<4x8x32xbf16, #tpu.memory_space<vmem>>, vector<1x8x32xbf16>
    %35 = vector.shape_cast %34 : vector<1x8x32xbf16> to vector<8x32xbf16>
    %cst_19 = arith.constant dense<0.000000e+00> : vector<128x32xf32>
    %36 = tpu.matmul %33, %35, %cst_19 {dimension_numbers = #tpu.dot_dimension_numbers<[1], [0], [0], [1], [0, 0, 1, 1], [], []>} : vector<128x8xbf16>, vector<8x32xbf16>, vector<128x32xf32> -> vector<128x32xf32>
    %37 = arith.addf %13, %36 : vector<128x32xf32>
    %38 = vector.extract_strided_slice %10 {offsets = [0, 8], sizes = [128, 8], strides = [1, 1]} : vector<128x96xbf16> to vector<128x8xbf16>
    %39 = vector.extract_strided_slice %10 {offsets = [0, 40], sizes = [128, 8], strides = [1, 1]} : vector<128x96xbf16> to vector<128x8xbf16>
    %40 = vector.extract_strided_slice %10 {offsets = [0, 72], sizes = [128, 8], strides = [1, 1]} : vector<128x96xbf16> to vector<128x8xbf16>
    %cst_20 = arith.constant dense<0.000000e+00> : vector<128x128xf32>
    %41 = tpu.matmul %38, %39, %cst_20 {dimension_numbers = #tpu.dot_dimension_numbers<[1], [1], [0], [0], [0, 0, 1, 0], [], []>} : vector<128x8xbf16>, vector<128x8xbf16>, vector<128x128xf32> -> vector<128x128xf32>
    %cst_21 = arith.constant -5.000000e+00 : f32
    %cst_22 = arith.constant 5.000000e+00 : f32
    %42 = vector.broadcast %cst_21 : f32 to vector<128x128xf32>
    %43 = arith.maximumf %42, %41 : vector<128x128xf32>
    %44 = vector.broadcast %cst_22 : f32 to vector<128x128xf32>
    %45 = arith.minimumf %44, %43 : vector<128x128xf32>
    %46 = math.exp %45 : vector<128x128xf32>
    %47 = arith.mulf %46, %3 : vector<128x128xf32>
    %cst_23 = arith.constant dense<0.000000e+00> : vector<128xf32>
    %48 = vector.multi_reduction <add>, %47, %cst_23 [1] : vector<128x128xf32> to vector<128xf32>
    %49 = vector.shape_cast %48 : vector<128xf32> to vector<128x1xf32>
    %50 = arith.truncf %47 : vector<128x128xf32> to vector<128x128xbf16>
    %cst_24 = arith.constant dense<0.000000e+00> : vector<128x8xf32>
    %51 = tpu.matmul %50, %40, %cst_24 {dimension_numbers = #tpu.dot_dimension_numbers<[1], [0], [0], [1], [0, 0, 1, 1], [], []>} : vector<128x128xbf16>, vector<128x8xbf16>, vector<128x8xf32> -> vector<128x8xf32>
    %cst_25 = arith.constant 1.000000e-30 : f32
    %52 = vector.broadcast %cst_25 : f32 to vector<128x1xf32>
    %53 = arith.maximumf %49, %52 : vector<128x1xf32>
    %54 = tpu.reciprocal %53 {approx = true} : vector<128x1xf32> -> vector<128x1xf32>
    %55 = vector.broadcast %54 : vector<128x1xf32> to vector<128x8xf32>
    %56 = arith.mulf %51, %55 : vector<128x8xf32>
    %57 = arith.truncf %56 : vector<128x8xf32> to vector<128x8xbf16>
    %c1 = arith.constant 1 : index
    %c0_26 = arith.constant 0 : index
    %c0_27 = arith.constant 0 : index
    %58 = vector.load %arg5[%c1, %c0_26, %c0_27] : memref<4x8x32xbf16, #tpu.memory_space<vmem>>, vector<1x8x32xbf16>
    %59 = vector.shape_cast %58 : vector<1x8x32xbf16> to vector<8x32xbf16>
    %cst_28 = arith.constant dense<0.000000e+00> : vector<128x32xf32>
    %60 = tpu.matmul %57, %59, %cst_28 {dimension_numbers = #tpu.dot_dimension_numbers<[1], [0], [0], [1], [0, 0, 1, 1], [], []>} : vector<128x8xbf16>, vector<8x32xbf16>, vector<128x32xf32> -> vector<128x32xf32>
    %61 = arith.addf %37, %60 : vector<128x32xf32>
    %62 = vector.extract_strided_slice %10 {offsets = [0, 16], sizes = [128, 8], strides = [1, 1]} : vector<128x96xbf16> to vector<128x8xbf16>
    %63 = vector.extract_strided_slice %10 {offsets = [0, 48], sizes = [128, 8], strides = [1, 1]} : vector<128x96xbf16> to vector<128x8xbf16>
    %64 = vector.extract_strided_slice %10 {offsets = [0, 80], sizes = [128, 8], strides = [1, 1]} : vector<128x96xbf16> to vector<128x8xbf16>
    %cst_29 = arith.constant dense<0.000000e+00> : vector<128x128xf32>
    %65 = tpu.matmul %62, %63, %cst_29 {dimension_numbers = #tpu.dot_dimension_numbers<[1], [1], [0], [0], [0, 0, 1, 0], [], []>} : vector<128x8xbf16>, vector<128x8xbf16>, vector<128x128xf32> -> vector<128x128xf32>
    %cst_30 = arith.constant -5.000000e+00 : f32
    %cst_31 = arith.constant 5.000000e+00 : f32
    %66 = vector.broadcast %cst_30 : f32 to vector<128x128xf32>
    %67 = arith.maximumf %66, %65 : vector<128x128xf32>
    %68 = vector.broadcast %cst_31 : f32 to vector<128x128xf32>
    %69 = arith.minimumf %68, %67 : vector<128x128xf32>
    %70 = math.exp %69 : vector<128x128xf32>
    %71 = arith.mulf %70, %3 : vector<128x128xf32>
    %cst_32 = arith.constant dense<0.000000e+00> : vector<128xf32>
    %72 = vector.multi_reduction <add>, %71, %cst_32 [1] : vector<128x128xf32> to vector<128xf32>
    %73 = vector.shape_cast %72 : vector<128xf32> to vector<128x1xf32>
    %74 = arith.truncf %71 : vector<128x128xf32> to vector<128x128xbf16>
    %cst_33 = arith.constant dense<0.000000e+00> : vector<128x8xf32>
    %75 = tpu.matmul %74, %64, %cst_33 {dimension_numbers = #tpu.dot_dimension_numbers<[1], [0], [0], [1], [0, 0, 1, 1], [], []>} : vector<128x128xbf16>, vector<128x8xbf16>, vector<128x8xf32> -> vector<128x8xf32>
    %cst_34 = arith.constant 1.000000e-30 : f32
    %76 = vector.broadcast %cst_34 : f32 to vector<128x1xf32>
    %77 = arith.maximumf %73, %76 : vector<128x1xf32>
    %78 = tpu.reciprocal %77 {approx = true} : vector<128x1xf32> -> vector<128x1xf32>
    %79 = vector.broadcast %78 : vector<128x1xf32> to vector<128x8xf32>
    %80 = arith.mulf %75, %79 : vector<128x8xf32>
    %81 = arith.truncf %80 : vector<128x8xf32> to vector<128x8xbf16>
    %c2 = arith.constant 2 : index
    %c0_35 = arith.constant 0 : index
    %c0_36 = arith.constant 0 : index
    %82 = vector.load %arg5[%c2, %c0_35, %c0_36] : memref<4x8x32xbf16, #tpu.memory_space<vmem>>, vector<1x8x32xbf16>
    %83 = vector.shape_cast %82 : vector<1x8x32xbf16> to vector<8x32xbf16>
    %cst_37 = arith.constant dense<0.000000e+00> : vector<128x32xf32>
    %84 = tpu.matmul %81, %83, %cst_37 {dimension_numbers = #tpu.dot_dimension_numbers<[1], [0], [0], [1], [0, 0, 1, 1], [], []>} : vector<128x8xbf16>, vector<8x32xbf16>, vector<128x32xf32> -> vector<128x32xf32>
    %85 = arith.addf %61, %84 : vector<128x32xf32>
    %86 = vector.extract_strided_slice %10 {offsets = [0, 24], sizes = [128, 8], strides = [1, 1]} : vector<128x96xbf16> to vector<128x8xbf16>
    %87 = vector.extract_strided_slice %10 {offsets = [0, 56], sizes = [128, 8], strides = [1, 1]} : vector<128x96xbf16> to vector<128x8xbf16>
    %88 = vector.extract_strided_slice %10 {offsets = [0, 88], sizes = [128, 8], strides = [1, 1]} : vector<128x96xbf16> to vector<128x8xbf16>
    %cst_38 = arith.constant dense<0.000000e+00> : vector<128x128xf32>
    %89 = tpu.matmul %86, %87, %cst_38 {dimension_numbers = #tpu.dot_dimension_numbers<[1], [1], [0], [0], [0, 0, 1, 0], [], []>} : vector<128x8xbf16>, vector<128x8xbf16>, vector<128x128xf32> -> vector<128x128xf32>
    %cst_39 = arith.constant -5.000000e+00 : f32
    %cst_40 = arith.constant 5.000000e+00 : f32
    %90 = vector.broadcast %cst_39 : f32 to vector<128x128xf32>
    %91 = arith.maximumf %90, %89 : vector<128x128xf32>
    %92 = vector.broadcast %cst_40 : f32 to vector<128x128xf32>
    %93 = arith.minimumf %92, %91 : vector<128x128xf32>
    %94 = math.exp %93 : vector<128x128xf32>
    %95 = arith.mulf %94, %3 : vector<128x128xf32>
    %cst_41 = arith.constant dense<0.000000e+00> : vector<128xf32>
    %96 = vector.multi_reduction <add>, %95, %cst_41 [1] : vector<128x128xf32> to vector<128xf32>
    %97 = vector.shape_cast %96 : vector<128xf32> to vector<128x1xf32>
    %98 = arith.truncf %95 : vector<128x128xf32> to vector<128x128xbf16>
    %cst_42 = arith.constant dense<0.000000e+00> : vector<128x8xf32>
    %99 = tpu.matmul %98, %88, %cst_42 {dimension_numbers = #tpu.dot_dimension_numbers<[1], [0], [0], [1], [0, 0, 1, 1], [], []>} : vector<128x128xbf16>, vector<128x8xbf16>, vector<128x8xf32> -> vector<128x8xf32>
    %cst_43 = arith.constant 1.000000e-30 : f32
    %100 = vector.broadcast %cst_43 : f32 to vector<128x1xf32>
    %101 = arith.maximumf %97, %100 : vector<128x1xf32>
    %102 = tpu.reciprocal %101 {approx = true} : vector<128x1xf32> -> vector<128x1xf32>
    %103 = vector.broadcast %102 : vector<128x1xf32> to vector<128x8xf32>
    %104 = arith.mulf %99, %103 : vector<128x8xf32>
    %105 = arith.truncf %104 : vector<128x8xf32> to vector<128x8xbf16>
    %c3 = arith.constant 3 : index
    %c0_44 = arith.constant 0 : index
    %c0_45 = arith.constant 0 : index
    %106 = vector.load %arg5[%c3, %c0_44, %c0_45] : memref<4x8x32xbf16, #tpu.memory_space<vmem>>, vector<1x8x32xbf16>
    %107 = vector.shape_cast %106 : vector<1x8x32xbf16> to vector<8x32xbf16>
    %cst_46 = arith.constant dense<0.000000e+00> : vector<128x32xf32>
    %108 = tpu.matmul %105, %107, %cst_46 {dimension_numbers = #tpu.dot_dimension_numbers<[1], [0], [0], [1], [0, 0, 1, 1], [], []>} : vector<128x8xbf16>, vector<8x32xbf16>, vector<128x32xf32> -> vector<128x32xf32>
    %109 = arith.addf %85, %108 : vector<128x32xf32>
    %cst_47 = arith.constant dense<0.000000e+00> : vector<128xf32>
    %110 = vector.multi_reduction <add>, %109, %cst_47 [1] : vector<128x32xf32> to vector<128xf32>
    %111 = vector.shape_cast %110 : vector<128xf32> to vector<128x1xf32>
    %cst_48 = arith.constant 3.200000e+01 : f32
    %112 = vector.broadcast %cst_48 : f32 to vector<128x1xf32>
    %113 = arith.divf %111, %112 : vector<128x1xf32>
    %114 = vector.broadcast %113 : vector<128x1xf32> to vector<128x32xf32>
    %115 = arith.subf %109, %114 : vector<128x32xf32>
    %116 = vector.broadcast %113 : vector<128x1xf32> to vector<128x32xf32>
    %117 = arith.subf %109, %116 : vector<128x32xf32>
    %118 = arith.mulf %115, %117 : vector<128x32xf32>
    %cst_49 = arith.constant dense<0.000000e+00> : vector<128xf32>
    %119 = vector.multi_reduction <add>, %118, %cst_49 [1] : vector<128x32xf32> to vector<128xf32>
    %120 = vector.shape_cast %119 : vector<128xf32> to vector<128x1xf32>
    %cst_50 = arith.constant 3.200000e+01 : f32
    %121 = vector.broadcast %cst_50 : f32 to vector<128x1xf32>
    %122 = arith.divf %120, %121 : vector<128x1xf32>
    %123 = vector.broadcast %113 : vector<128x1xf32> to vector<128x32xf32>
    %124 = arith.subf %109, %123 : vector<128x32xf32>
    %cst_51 = arith.constant 9.99999974E-6 : f32
    %125 = vector.broadcast %cst_51 : f32 to vector<128x1xf32>
    %126 = arith.addf %122, %125 : vector<128x1xf32>
    %127 = math.rsqrt %126 : vector<128x1xf32>
    %128 = vector.broadcast %127 : vector<128x1xf32> to vector<128x32xf32>
    %129 = arith.mulf %124, %128 : vector<128x32xf32>
    %c0_52 = arith.constant 0 : index
    %c0_53 = arith.constant 0 : index
    %130 = vector.load %arg7[%c0_52, %c0_53] : memref<1x32xf32, #tpu.memory_space<vmem>>, vector<1x32xf32>
    %131 = vector.broadcast %130 : vector<1x32xf32> to vector<128x32xf32>
    %132 = arith.mulf %129, %131 : vector<128x32xf32>
    %c0_54 = arith.constant 0 : index
    %c0_55 = arith.constant 0 : index
    %133 = vector.load %arg8[%c0_54, %c0_55] : memref<1x32xf32, #tpu.memory_space<vmem>>, vector<1x32xf32>
    %134 = vector.broadcast %133 : vector<1x32xf32> to vector<128x32xf32>
    %135 = arith.addf %132, %134 : vector<128x32xf32>
    %136 = arith.truncf %135 : vector<128x32xf32> to vector<128x32xbf16>
    %c0_56 = arith.constant 0 : index
    %c0_57 = arith.constant 0 : index
    %137 = vector.load %arg9[%c0_56, %c0_57] : memref<32x64xbf16, #tpu.memory_space<vmem>>, vector<32x64xbf16>
    %cst_58 = arith.constant dense<0.000000e+00> : vector<128x64xf32>
    %138 = tpu.matmul %136, %137, %cst_58 {dimension_numbers = #tpu.dot_dimension_numbers<[1], [0], [0], [1], [0, 0, 1, 1], [], []>} : vector<128x32xbf16>, vector<32x64xbf16>, vector<128x64xf32> -> vector<128x64xf32>
    %c0_59 = arith.constant 0 : index
    %c0_60 = arith.constant 0 : index
    %139 = vector.load %arg10[%c0_59, %c0_60] : memref<1x64xf32, #tpu.memory_space<vmem>>, vector<1x64xf32>
    %140 = vector.broadcast %139 : vector<1x64xf32> to vector<128x64xf32>
    %141 = arith.addf %138, %140 : vector<128x64xf32>
    %cst_61 = arith.constant 0.000000e+00 : f32
    %142 = vector.broadcast %cst_61 : f32 to vector<128x64xf32>
    %143 = arith.maximumf %141, %142 : vector<128x64xf32>
    %144 = arith.truncf %143 : vector<128x64xf32> to vector<128x64xbf16>
    %c0_62 = arith.constant 0 : index
    %c0_63 = arith.constant 0 : index
    %145 = vector.load %arg11[%c0_62, %c0_63] : memref<64x32xbf16, #tpu.memory_space<vmem>>, vector<64x32xbf16>
    %cst_64 = arith.constant dense<0.000000e+00> : vector<128x32xf32>
    %146 = tpu.matmul %144, %145, %cst_64 {dimension_numbers = #tpu.dot_dimension_numbers<[1], [0], [0], [1], [0, 0, 1, 1], [], []>} : vector<128x64xbf16>, vector<64x32xbf16>, vector<128x32xf32> -> vector<128x32xf32>
    %c0_65 = arith.constant 0 : index
    %c0_66 = arith.constant 0 : index
    %147 = vector.load %arg12[%c0_65, %c0_66] : memref<1x32xf32, #tpu.memory_space<vmem>>, vector<1x32xf32>
    %148 = vector.broadcast %147 : vector<1x32xf32> to vector<128x32xf32>
    %149 = arith.addf %146, %148 : vector<128x32xf32>
    %150 = arith.addf %135, %149 : vector<128x32xf32>
    %cst_67 = arith.constant dense<0.000000e+00> : vector<128xf32>
    %151 = vector.multi_reduction <add>, %150, %cst_67 [1] : vector<128x32xf32> to vector<128xf32>
    %152 = vector.shape_cast %151 : vector<128xf32> to vector<128x1xf32>
    %cst_68 = arith.constant 3.200000e+01 : f32
    %153 = vector.broadcast %cst_68 : f32 to vector<128x1xf32>
    %154 = arith.divf %152, %153 : vector<128x1xf32>
    %155 = vector.broadcast %154 : vector<128x1xf32> to vector<128x32xf32>
    %156 = arith.subf %150, %155 : vector<128x32xf32>
    %157 = vector.broadcast %154 : vector<128x1xf32> to vector<128x32xf32>
    %158 = arith.subf %150, %157 : vector<128x32xf32>
    %159 = arith.mulf %156, %158 : vector<128x32xf32>
    %cst_69 = arith.constant dense<0.000000e+00> : vector<128xf32>
    %160 = vector.multi_reduction <add>, %159, %cst_69 [1] : vector<128x32xf32> to vector<128xf32>
    %161 = vector.shape_cast %160 : vector<128xf32> to vector<128x1xf32>
    %cst_70 = arith.constant 3.200000e+01 : f32
    %162 = vector.broadcast %cst_70 : f32 to vector<128x1xf32>
    %163 = arith.divf %161, %162 : vector<128x1xf32>
    %164 = vector.broadcast %154 : vector<128x1xf32> to vector<128x32xf32>
    %165 = arith.subf %150, %164 : vector<128x32xf32>
    %cst_71 = arith.constant 9.99999974E-6 : f32
    %166 = vector.broadcast %cst_71 : f32 to vector<128x1xf32>
    %167 = arith.addf %163, %166 : vector<128x1xf32>
    %168 = math.rsqrt %167 : vector<128x1xf32>
    %169 = vector.broadcast %168 : vector<128x1xf32> to vector<128x32xf32>
    %170 = arith.mulf %165, %169 : vector<128x32xf32>
    %c0_72 = arith.constant 0 : index
    %c0_73 = arith.constant 0 : index
    %171 = vector.load %arg13[%c0_72, %c0_73] : memref<1x32xf32, #tpu.memory_space<vmem>>, vector<1x32xf32>
    %172 = vector.broadcast %171 : vector<1x32xf32> to vector<128x32xf32>
    %173 = arith.mulf %170, %172 : vector<128x32xf32>
    %c0_74 = arith.constant 0 : index
    %c0_75 = arith.constant 0 : index
    %174 = vector.load %arg14[%c0_74, %c0_75] : memref<1x32xf32, #tpu.memory_space<vmem>>, vector<1x32xf32>
    %175 = vector.broadcast %174 : vector<1x32xf32> to vector<128x32xf32>
    %176 = arith.addf %173, %175 : vector<128x32xf32>
    %c0_76 = arith.constant 0 : index
    %c0_77 = arith.constant 0 : index
    %177 = vector.load %arg15[%c0_76, %c0_77] : memref<128x32xf32, #tpu.memory_space<vmem>>, vector<128x32xf32>
    tpu.vector_store %arg15[%c0_76, %c0_77], %176 {strides = array<i32>} : memref<128x32xf32, #tpu.memory_space<vmem>>, vector<128x32xf32>,
    return
  }
  func.func @transform_0(%arg0: i32) -> (i32, i32) {
    %c0_i32 = arith.constant 0 : i32
    %c0_i32_0 = arith.constant 0 : i32
    return %arg0, %c0_i32 : i32, i32
  }
  func.func @transform_1(%arg0: i32) -> (i32, i32, i32) {
    %c0_i32 = arith.constant 0 : i32
    %c0_i32_0 = arith.constant 0 : i32
    %c0_i32_1 = arith.constant 0 : i32
    return %arg0, %c0_i32, %c0_i32_0 : i32, i32, i32
  }
  func.func @transform_2(%arg0: i32) -> (i32, i32) {
    %c0_i32 = arith.constant 0 : i32
    %c0_i32_0 = arith.constant 0 : i32
    %c0_i32_1 = arith.constant 0 : i32
    return %c0_i32, %c0_i32_0 : i32, i32
  }
  func.func @transform_3(%arg0: i32) -> (i32, i32) {
    %c0_i32 = arith.constant 0 : i32
    %c0_i32_0 = arith.constant 0 : i32
    %c0_i32_1 = arith.constant 0 : i32
    return %c0_i32, %c0_i32_0 : i32, i32
  }
  func.func @transform_4(%arg0: i32) -> (i32, i32, i32) {
    %c0_i32 = arith.constant 0 : i32
    %c0_i32_0 = arith.constant 0 : i32
    %c0_i32_1 = arith.constant 0 : i32
    %c0_i32_2 = arith.constant 0 : i32
    return %c0_i32, %c0_i32_0, %c0_i32_1 : i32, i32, i32
  }
  func.func @transform_5(%arg0: i32) -> (i32, i32) {
    %c0_i32 = arith.constant 0 : i32
    %c0_i32_0 = arith.constant 0 : i32
    %c0_i32_1 = arith.constant 0 : i32
    return %c0_i32, %c0_i32_0 : i32, i32
  }
  func.func @transform_6(%arg0: i32) -> (i32, i32) {
    %c0_i32 = arith.constant 0 : i32
    %c0_i32_0 = arith.constant 0 : i32
    %c0_i32_1 = arith.constant 0 : i32
    return %c0_i32, %c0_i32_0 : i32, i32
  }
  func.func @transform_7(%arg0: i32) -> (i32, i32) {
    %c0_i32 = arith.constant 0 : i32
    %c0_i32_0 = arith.constant 0 : i32
    %c0_i32_1 = arith.constant 0 : i32
    return %c0_i32, %c0_i32_0 : i32, i32
  }
  func.func @transform_8(%arg0: i32) -> (i32, i32) {
    %c0_i32 = arith.constant 0 : i32
    %c0_i32_0 = arith.constant 0 : i32
    %c0_i32_1 = arith.constant 0 : i32
    return %c0_i32, %c0_i32_0 : i32, i32
  }
  func.func @transform_9(%arg0: i32) -> (i32, i32) {
    %c0_i32 = arith.constant 0 : i32
    %c0_i32_0 = arith.constant 0 : i32
    %c0_i32_1 = arith.constant 0 : i32
    return %c0_i32, %c0_i32_0 : i32, i32
  }
  func.func @transform_10(%arg0: i32) -> (i32, i32) {
    %c0_i32 = arith.constant 0 : i32
    %c0_i32_0 = arith.constant 0 : i32
    %c0_i32_1 = arith.constant 0 : i32
    return %c0_i32, %c0_i32_0 : i32, i32
  }
  func.func @transform_11(%arg0: i32) -> (i32, i32) {
    %c0_i32 = arith.constant 0 : i32
    %c0_i32_0 = arith.constant 0 : i32
    %c0_i32_1 = arith.constant 0 : i32
    return %c0_i32, %c0_i32_0 : i32, i32
  }
  func.func @transform_12(%arg0: i32) -> (i32, i32) {
    %c0_i32 = arith.constant 0 : i32
    %c0_i32_0 = arith.constant 0 : i32
    %c0_i32_1 = arith.constant 0 : i32
    return %c0_i32, %c0_i32_0 : i32, i32
  }
  func.func @transform_13(%arg0: i32) -> (i32, i32) {
    %c0_i32 = arith.constant 0 : i32
    %c0_i32_0 = arith.constant 0 : i32
    %c0_i32_1 = arith.constant 0 : i32
    return %c0_i32, %c0_i32_0 : i32, i32
  }
  func.func @transform_14(%arg0: i32) -> (i32, i32) {
    %c0_i32 = arith.constant 0 : i32
    %c0_i32_0 = arith.constant 0 : i32
    return %arg0, %c0_i32 : i32, i32
  }
}

</mosaic_0001>

<llo_original>
// kernel: tpu_custom_call.1
$region0: #{tpu_custom_call.1}
  #allocation0 [shape = 'u32[]', space=smem, size = 0x4, offset = 0x4, fixed_abs, tag = 'smem constant byte address 0x4 - core index']
  #allocation1 [shape = 'u32[144,128]{1,0:T(1,128)}', space=vmem, size = 0x12000, scoped, tag = 'internal scratch']
  %s0 = inlined_call_operand.vmem [shape: f32[512,32], index: 0, kind: input, shape index: {}]
  %s1 = inlined_call_operand.vmem [shape: s8[4,128,128], index: 1, kind: input, shape index: {}]
  %s2 = inlined_call_operand.vmem [shape: bf16[32,96], index: 2, kind: input, shape index: {}]
  %s3 = inlined_call_operand.vmem [shape: f32[1,96], index: 3, kind: input, shape index: {}]
  %s4 = inlined_call_operand.vmem [shape: bf16[4,8,32], index: 4, kind: input, shape index: {}]
  %s5 = inlined_call_operand.vmem [shape: f32[1,32], index: 5, kind: input, shape index: {}]
  %s6 = inlined_call_operand.vmem [shape: f32[1,32], index: 6, kind: input, shape index: {}]
  %s7 = inlined_call_operand.vmem [shape: f32[1,32], index: 7, kind: input, shape index: {}]
  %s8 = inlined_call_operand.vmem [shape: bf16[32,64], index: 8, kind: input, shape index: {}]
  %s9 = inlined_call_operand.vmem [shape: f32[1,64], index: 9, kind: input, shape index: {}]
  %s10 = inlined_call_operand.vmem [shape: bf16[64,32], index: 10, kind: input, shape index: {}]
  %s11 = inlined_call_operand.vmem [shape: f32[1,32], index: 11, kind: input, shape index: {}]
  %s12 = inlined_call_operand.vmem [shape: f32[1,32], index: 12, kind: input, shape index: {}]
  %s13 = inlined_call_operand.vmem [shape: f32[1,32], index: 13, kind: input, shape index: {}]
  %s14 = inlined_call_operand.vmem [shape: f32[512,32], index: 14, kind: output, shape index: {}]
  %s15 = sld [smem:[#allocation0]]
  $region89: #{tpu_custom_call.1} parent=0
    _
  %s17 = ssub.s32 1, %s15
  %s18 = scalar_select 0, %s17, %s15
  loop: start=0, step=1, limit=6
  $region2: #{tpu_custom_call.1} parent=0 // loop_pre_header
    _
  $region3: #{tpu_custom_call.1} parent=0 // loop_header
    %s20 = sphi 0, %s24
    %p21 = scmp.ge.s32.totalorder %s20, 6
    %s30 = sphi 0, %s32
    %s33 = sphi 0, %s30
    %s34 = sphi 0, %s33
    %s50 = sphi 0, %s34
    %s56 = sphi 0, %s58
    %s59 = sphi 0, %s56
    %s60 = sphi 0, %s59
    %s76 = sphi 0, %s60
    %s80 = sphi 0, %s80
    %s82 = sphi 0, %s80
    %s83 = sphi 0, %s82
    %s97 = sphi 0, %s83
    %s101 = sphi 0, %s101
    %s103 = sphi 0, %s101
    %s104 = sphi 0, %s103
    %s118 = sphi 0, %s104
    %s122 = sphi 0, %s122
    %s124 = sphi 0, %s122
    %s125 = sphi 0, %s124
    %s139 = sphi 0, %s125
    %s143 = sphi 0, %s143
    %s145 = sphi 0, %s143
    %s146 = sphi 0, %s145
    %s160 = sphi 0, %s146
    %s164 = sphi 0, %s164
    %s166 = sphi 0, %s164
    %s167 = sphi 0, %s166
    %s181 = sphi 0, %s167
    %s185 = sphi 0, %s185
    %s187 = sphi 0, %s185
    %s188 = sphi 0, %s187
    %s202 = sphi 0, %s188
    %s206 = sphi 0, %s206
    %s208 = sphi 0, %s206
    %s209 = sphi 0, %s208
    %s223 = sphi 0, %s209
    %s227 = sphi 0, %s227
    %s229 = sphi 0, %s227
    %s230 = sphi 0, %s229
    %s244 = sphi 0, %s230
    %s248 = sphi 0, %s248
    %s250 = sphi 0, %s248
    %s251 = sphi 0, %s250
    %s265 = sphi 0, %s251
    %s269 = sphi 0, %s269
    %s271 = sphi 0, %s269
    %s272 = sphi 0, %s271
    %s286 = sphi 0, %s272
    %s290 = sphi 0, %s290
    %s292 = sphi 0, %s290
    %s293 = sphi 0, %s292
    %s307 = sphi 0, %s293
    %s311 = sphi 0, %s311
    %s313 = sphi 0, %s311
    %s314 = sphi 0, %s313
    %s328 = sphi 0, %s314
    %s334 = sphi 0, %s336
    %s337 = sphi 0, %s334
    %s338 = sphi 0, %s337
    %s354 = sphi 0, %s338
  $region4: #{tpu_custom_call.1} parent=0 // loop_header_branch
    %23 = sbr.rel (%p21) target = $region8
  $region5: #{tpu_custom_call.1} parent=0 // loop_body
    %s25 = ssub.s32 %s20, 1
    %s26 = ssub.s32 %s20, 2
    %s27 = sadd.s32 %s20, 1
    %s28 = ssub.s32 %s20, %s27
    %p29 = scmp.eq.s32.totalorder %s28, 0
    %s31 = sadd.s32 %s30, 1
    %s32 = scalar_select %p29, %s30, %s31
    %p35 = pneg %p29
    %p36 = scmp.eq.s32.totalorder %s20, 3
    %p37 = por %p35, %p36
    %p38 = scmp.ne.s32.totalorder %s30, %s33
    %p39 = scmp.eq.s32.totalorder %s20, 0
    %p40 = por %p38, %p39
    %p41 = scmp.ne.s32.totalorder %s30, %s33
    %p42 = scmp.eq.s32.totalorder %s25, 3
    %p43 = por %p41, %p42
    %p44 = scmp.ne.s32.totalorder %s33, %s34
    %p45 = scmp.eq.s32.totalorder %s25, 0
    %p46 = por %p44, %p45
    %p47 = scmp.ne.s32.totalorder %s33, %s34
    %p48 = scmp.eq.s32.totalorder %s26, 3
    %p49 = por %p47, %p48
    %p51 = scmp.ne.s32.totalorder %s34, %s50
    %p52 = scmp.eq.s32.totalorder %s26, 0
    %p53 = por %p51, %p52
    %s54 = ssub.s32 %s20, %s27
    %p55 = scmp.eq.s32.totalorder %s54, 0
    %s57 = sadd.s32 %s56, 1
    %s58 = scalar_select %p55, %s56, %s57
    %p61 = pneg %p55
    %p62 = scmp.eq.s32.totalorder %s20, 3
    %p63 = por %p61, %p62
    %p64 = scmp.ne.s32.totalorder %s56, %s59
    %p65 = scmp.eq.s32.totalorder %s20, 0
    %p66 = por %p64, %p65
    %p67 = scmp.ne.s32.totalorder %s56, %s59
    %p68 = scmp.eq.s32.totalorder %s25, 3
    %p69 = por %p67, %p68
    %p70 = scmp.ne.s32.totalorder %s59, %s60
    %p71 = scmp.eq.s32.totalorder %s25, 0
    %p72 = por %p70, %p71
    %p73 = scmp.ne.s32.totalorder %s59, %s60
    %p74 = scmp.eq.s32.totalorder %s26, 3
    %p75 = por %p73, %p74
    %p77 = scmp.ne.s32.totalorder %s60, %s76
    %p78 = scmp.eq.s32.totalorder %s26, 0
    %p79 = por %p77, %p78
    %s81 = sadd.s32 %s80, 1
    %p84 = scmp.eq.s32.totalorder %s20, 3
    %p85 = scmp.ne.s32.totalorder %s80, %s82
    %p86 = scmp.eq.s32.totalorder %s20, 0
    %p87 = por %p85, %p86
    %p88 = scmp.ne.s32.totalorder %s80, %s82
    %p89 = scmp.eq.s32.totalorder %s25, 3
    %p90 = por %p88, %p89
    %p91 = scmp.ne.s32.totalorder %s82, %s83
    %p92 = scmp.eq.s32.totalorder %s25, 0
    %p93 = por %p91, %p92
    %p94 = scmp.ne.s32.totalorder %s82, %s83
    %p95 = scmp.eq.s32.totalorder %s26, 3
    %p96 = por %p94, %p95
    %p98 = scmp.ne.s32.totalorder %s83, %s97
    %p99 = scmp.eq.s32.totalorder %s26, 0
    %p100 = por %p98, %p99
    %s102 = sadd.s32 %s101, 1
    %p105 = scmp.eq.s32.totalorder %s20, 3
    %p106 = scmp.ne.s32.totalorder %s101, %s103
    %p107 = scmp.eq.s32.totalorder %s20, 0
    %p108 = por %p106, %p107
    %p109 = scmp.ne.s32.totalorder %s101, %s103
    %p110 = scmp.eq.s32.totalorder %s25, 3
    %p111 = por %p109, %p110
    %p112 = scmp.ne.s32.totalorder %s103, %s104
    %p113 = scmp.eq.s32.totalorder %s25, 0
    %p114 = por %p112, %p113
    %p115 = scmp.ne.s32.totalorder %s103, %s104
    %p116 = scmp.eq.s32.totalorder %s26, 3
    %p117 = por %p115, %p116
    %p119 = scmp.ne.s32.totalorder %s104, %s118
    %p120 = scmp.eq.s32.totalorder %s26, 0
    %p121 = por %p119, %p120
    %s123 = sadd.s32 %s122, 1
    %p126 = scmp.eq.s32.totalorder %s20, 3
    %p127 = scmp.ne.s32.totalorder %s122, %s124
    %p128 = scmp.eq.s32.totalorder %s20, 0
    %p129 = por %p127, %p128
    %p130 = scmp.ne.s32.totalorder %s122, %s124
    %p131 = scmp.eq.s32.totalorder %s25, 3
    %p132 = por %p130, %p131
    %p133 = scmp.ne.s32.totalorder %s124, %s125
    %p134 = scmp.eq.s32.totalorder %s25, 0
    %p135 = por %p133, %p134
    %p136 = scmp.ne.s32.totalorder %s124, %s125
    %p137 = scmp.eq.s32.totalorder %s26, 3
    %p138 = por %p136, %p137
    %p140 = scmp.ne.s32.totalorder %s125, %s139
    %p141 = scmp.eq.s32.totalorder %s26, 0
    %p142 = por %p140, %p141
    %s144 = sadd.s32 %s143, 1
    %p147 = scmp.eq.s32.totalorder %s20, 3
    %p148 = scmp.ne.s32.totalorder %s143, %s145
    %p149 = scmp.eq.s32.totalorder %s20, 0
    %p150 = por %p148, %p149
    %p151 = scmp.ne.s32.totalorder %s143, %s145
    %p152 = scmp.eq.s32.totalorder %s25, 3
    %p153 = por %p151, %p152
    %p154 = scmp.ne.s32.totalorder %s145, %s146
    %p155 = scmp.eq.s32.totalorder %s25, 0
    %p156 = por %p154, %p155
    %p157 = scmp.ne.s32.totalorder %s145, %s146
    %p158 = scmp.eq.s32.totalorder %s26, 3
    %p159 = por %p157, %p158
    %p161 = scmp.ne.s32.totalorder %s146, %s160
    %p162 = scmp.eq.s32.totalorder %s26, 0
    %p163 = por %p161, %p162
    %s165 = sadd.s32 %s164, 1
    %p168 = scmp.eq.s32.totalorder %s20, 3
    %p169 = scmp.ne.s32.totalorder %s164, %s166
    %p170 = scmp.eq.s32.totalorder %s20, 0
    %p171 = por %p169, %p170
    %p172 = scmp.ne.s32.totalorder %s164, %s166
    %p173 = scmp.eq.s32.totalorder %s25, 3
    %p174 = por %p172, %p173
    %p175 = scmp.ne.s32.totalorder %s166, %s167
    %p176 = scmp.eq.s32.totalorder %s25, 0
    %p177 = por %p175, %p176
    %p178 = scmp.ne.s32.totalorder %s166, %s167
    %p179 = scmp.eq.s32.totalorder %s26, 3
    %p180 = por %p178, %p179
    %p182 = scmp.ne.s32.totalorder %s167, %s181
    %p183 = scmp.eq.s32.totalorder %s26, 0
    %p184 = por %p182, %p183
    %s186 = sadd.s32 %s185, 1
    %p189 = scmp.eq.s32.totalorder %s20, 3
    %p190 = scmp.ne.s32.totalorder %s185, %s187
    %p191 = scmp.eq.s32.totalorder %s20, 0
    %p192 = por %p190, %p191
    %p193 = scmp.ne.s32.totalorder %s185, %s187
    %p194 = scmp.eq.s32.totalorder %s25, 3
    %p195 = por %p193, %p194
    %p196 = scmp.ne.s32.totalorder %s187, %s188
    %p197 = scmp.eq.s32.totalorder %s25, 0
    %p198 = por %p196, %p197
    %p199 = scmp.ne.s32.totalorder %s187, %s188
    %p200 = scmp.eq.s32.totalorder %s26, 3
    %p201 = por %p199, %p200
    %p203 = scmp.ne.s32.totalorder %s188, %s202
    %p204 = scmp.eq.s32.totalorder %s26, 0
    %p205 = por %p203, %p204
    %s207 = sadd.s32 %s206, 1
    %p210 = scmp.eq.s32.totalorder %s20, 3
    %p211 = scmp.ne.s32.totalorder %s206, %s208
    %p212 = scmp.eq.s32.totalorder %s20, 0
    %p213 = por %p211, %p212
    %p214 = scmp.ne.s32.totalorder %s206, %s208
    %p215 = scmp.eq.s32.totalorder %s25, 3
    %p216 = por %p214, %p215
    %p217 = scmp.ne.s32.totalorder %s208, %s209
    %p218 = scmp.eq.s32.totalorder %s25, 0
    %p219 = por %p217, %p218
    %p220 = scmp.ne.s32.totalorder %s208, %s209
    %p221 = scmp.eq.s32.totalorder %s26, 3
    %p222 = por %p220, %p221
    %p224 = scmp.ne.s32.totalorder %s209, %s223
    %p225 = scmp.eq.s32.totalorder %s26, 0
    %p226 = por %p224, %p225
    %s228 = sadd.s32 %s227, 1
    %p231 = scmp.eq.s32.totalorder %s20, 3
    %p232 = scmp.ne.s32.totalorder %s227, %s229
    %p233 = scmp.eq.s32.totalorder %s20, 0
    %p234 = por %p232, %p233
    %p235 = scmp.ne.s32.totalorder %s227, %s229
    %p236 = scmp.eq.s32.totalorder %s25, 3
    %p237 = por %p235, %p236
    %p238 = scmp.ne.s32.totalorder %s229, %s230
    %p239 = scmp.eq.s32.totalorder %s25, 0
    %p240 = por %p238, %p239
    %p241 = scmp.ne.s32.totalorder %s229, %s230
    %p242 = scmp.eq.s32.totalorder %s26, 3
    %p243 = por %p241, %p242
    %p245 = scmp.ne.s32.totalorder %s230, %s244
    %p246 = scmp.eq.s32.totalorder %s26, 0
    %p247 = por %p245, %p246
    %s249 = sadd.s32 %s248, 1
    %p252 = scmp.eq.s32.totalorder %s20, 3
    %p253 = scmp.ne.s32.totalorder %s248, %s250
    %p254 = scmp.eq.s32.totalorder %s20, 0
    %p255 = por %p253, %p254
    %p256 = scmp.ne.s32.totalorder %s248, %s250
    %p257 = scmp.eq.s32.totalorder %s25, 3
    %p258 = por %p256, %p257
    %p259 = scmp.ne.s32.totalorder %s250, %s251
    %p260 = scmp.eq.s32.totalorder %s25, 0
    %p261 = por %p259, %p260
    %p262 = scmp.ne.s32.totalorder %s250, %s251
    %p263 = scmp.eq.s32.totalorder %s26, 3
    %p264 = por %p262, %p263
    %p266 = scmp.ne.s32.totalorder %s251, %s265
    %p267 = scmp.eq.s32.totalorder %s26, 0
    %p268 = por %p266, %p267
    %s270 = sadd.s32 %s269, 1
    %p273 = scmp.eq.s32.totalorder %s20, 3
    %p274 = scmp.ne.s32.totalorder %s269, %s271
    %p275 = scmp.eq.s32.totalorder %s20, 0
    %p276 = por %p274, %p275
    %p277 = scmp.ne.s32.totalorder %s269, %s271
    %p278 = scmp.eq.s32.totalorder %s25, 3
    %p279 = por %p277, %p278
    %p280 = scmp.ne.s32.totalorder %s271, %s272
    %p281 = scmp.eq.s32.totalorder %s25, 0
    %p282 = por %p280, %p281
    %p283 = scmp.ne.s32.totalorder %s271, %s272
    %p284 = scmp.eq.s32.totalorder %s26, 3
    %p285 = por %p283, %p284
    %p287 = scmp.ne.s32.totalorder %s272, %s286
    %p288 = scmp.eq.s32.totalorder %s26, 0
    %p289 = por %p287, %p288
    %s291 = sadd.s32 %s290, 1
    %p294 = scmp.eq.s32.totalorder %s20, 3
    %p295 = scmp.ne.s32.totalorder %s290, %s292
    %p296 = scmp.eq.s32.totalorder %s20, 0
    %p297 = por %p295, %p296
    %p298 = scmp.ne.s32.totalorder %s290, %s292
    %p299 = scmp.eq.s32.totalorder %s25, 3
    %p300 = por %p298, %p299
    %p301 = scmp.ne.s32.totalorder %s292, %s293
    %p302 = scmp.eq.s32.totalorder %s25, 0
    %p303 = por %p301, %p302
    %p304 = scmp.ne.s32.totalorder %s292, %s293
    %p305 = scmp.eq.s32.totalorder %s26, 3
    %p306 = por %p304, %p305
    %p308 = scmp.ne.s32.totalorder %s293, %s307
    %p309 = scmp.eq.s32.totalorder %s26, 0
    %p310 = por %p308, %p309
    %s312 = sadd.s32 %s311, 1
    %p315 = scmp.eq.s32.totalorder %s20, 3
    %p316 = scmp.ne.s32.totalorder %s311, %s313
    %p317 = scmp.eq.s32.totalorder %s20, 0
    %p318 = por %p316, %p317
    %p319 = scmp.ne.s32.totalorder %s311, %s313
    %p320 = scmp.eq.s32.totalorder %s25, 3
    %p321 = por %p319, %p320
    %p322 = scmp.ne.s32.totalorder %s313, %s314
    %p323 = scmp.eq.s32.totalorder %s25, 0
    %p324 = por %p322, %p323
    %p325 = scmp.ne.s32.totalorder %s313, %s314
    %p326 = scmp.eq.s32.totalorder %s26, 3
    %p327 = por %p325, %p326
    %p329 = scmp.ne.s32.totalorder %s314, %s328
    %p330 = scmp.eq.s32.totalorder %s26, 0
    %p331 = por %p329, %p330
    %s332 = ssub.s32 %s20, %s27
    %p333 = scmp.eq.s32.totalorder %s332, 0
    %s335 = sadd.s32 %s334, 1
    %s336 = scalar_select %p333, %s334, %s335
    %p339 = pneg %p333
    %p340 = scmp.eq.s32.totalorder %s20, 3
    %p341 = por %p339, %p340
    %p342 = scmp.ne.s32.totalorder %s334, %s337
    %p343 = scmp.eq.s32.totalorder %s20, 0
    %p344 = por %p342, %p343
    %p345 = scmp.ne.s32.totalorder %s334, %s337
    %p346 = scmp.eq.s32.totalorder %s25, 3
    %p347 = por %p345, %p346
    %p348 = scmp.ne.s32.totalorder %s337, %s338
    %p349 = scmp.eq.s32.totalorder %s25, 0
    %p350 = por %p348, %p349
    %p351 = scmp.ne.s32.totalorder %s337, %s338
    %p352 = scmp.eq.s32.totalorder %s26, 3
    %p353 = por %p351, %p352
    %p355 = scmp.ne.s32.totalorder %s338, %s354
    %p356 = scmp.eq.s32.totalorder %s26, 0
    %p357 = por %p355, %p356
    %p358 = scmp.le.s32.totalorder 1, %s20
    %p359 = scmp.lt.s32.totalorder %s20, 5
    %p360 = pnand %p358, %p359
    %p361 = pneg %p360
    // Predicated region
    $region9: #{tpu_custom_call.1} parent=5 // pred_check
      _
    $region10: #{tpu_custom_call.1} parent=5 // pred_check_branch
      %363 = sbr.rel (%p360) target = $region12
    $region11: #{tpu_custom_call.1} parent=5 // pred_region
      %s364 = ssub.s32 %s20, 1
      // Predicated region
      $region13: #{tpu_custom_call.1} parent=11 // pred_check
        %p365 = pneg %p93
      $region14: #{tpu_custom_call.1} parent=11 // pred_check_branch
        %367 = sbr.rel (%p365) target = $region16
      $region15: #{tpu_custom_call.1} parent=11 // pred_region
        _
      $region16: #{tpu_custom_call.1} parent=11 // pred_fallthru
        _
      // Predicated region
      $region17: #{tpu_custom_call.1} parent=11 // pred_check
        %p368 = pneg %p114
      $region18: #{tpu_custom_call.1} parent=11 // pred_check_branch
        %370 = sbr.rel (%p368) target = $region20
      $region19: #{tpu_custom_call.1} parent=11 // pred_region
        _
      $region20: #{tpu_custom_call.1} parent=11 // pred_fallthru
        _
      // Predicated region
      $region21: #{tpu_custom_call.1} parent=11 // pred_check
        %p371 = pneg %p135
      $region22: #{tpu_custom_call.1} parent=11 // pred_check_branch
        %373 = sbr.rel (%p371) target = $region24
      $region23: #{tpu_custom_call.1} parent=11 // pred_region
        _
      $region24: #{tpu_custom_call.1} parent=11 // pred_fallthru
        _
      // Predicated region
      $region25: #{tpu_custom_call.1} parent=11 // pred_check
        %p374 = pneg %p156
      $region26: #{tpu_custom_call.1} parent=11 // pred_check_branch
        %376 = sbr.rel (%p374) target = $region28
      $region27: #{tpu_custom_call.1} parent=11 // pred_region
        _
      $region28: #{tpu_custom_call.1} parent=11 // pred_fallthru
        _
      // Predicated region
      $region29: #{tpu_custom_call.1} parent=11 // pred_check
        %p377 = pneg %p177
      $region30: #{tpu_custom_call.1} parent=11 // pred_check_branch
        %379 = sbr.rel (%p377) target = $region32
      $region31: #{tpu_custom_call.1} parent=11 // pred_region
        _
      $region32: #{tpu_custom_call.1} parent=11 // pred_fallthru
        _
      // Predicated region
      $region33: #{tpu_custom_call.1} parent=11 // pred_check
        %p380 = pneg %p198
      $region34: #{tpu_custom_call.1} parent=11 // pred_check_branch
        %382 = sbr.rel (%p380) target = $region36
      $region35: #{tpu_custom_call.1} parent=11 // pred_region
        _
      $region36: #{tpu_custom_call.1} parent=11 // pred_fallthru
        _
      // Predicated region
      $region37: #{tpu_custom_call.1} parent=11 // pred_check
        %p383 = pneg %p219
      $region38: #{tpu_custom_call.1} parent=11 // pred_check_branch
        %385 = sbr.rel (%p383) target = $region40
      $region39: #{tpu_custom_call.1} parent=11 // pred_region
        _
      $region40: #{tpu_custom_call.1} parent=11 // pred_fallthru
        _
      // Predicated region
      $region41: #{tpu_custom_call.1} parent=11 // pred_check
        %p386 = pneg %p240
      $region42: #{tpu_custom_call.1} parent=11 // pred_check_branch
        %388 = sbr.rel (%p386) target = $region44
      $region43: #{tpu_custom_call.1} parent=11 // pred_region
        _
      $region44: #{tpu_custom_call.1} parent=11 // pred_fallthru
        _
      // Predicated region
      $region45: #{tpu_custom_call.1} parent=11 // pred_check
        %p389 = pneg %p261
      $region46: #{tpu_custom_call.1} parent=11 // pred_check_branch
        %391 = sbr.rel (%p389) target = $region48
      $region47: #{tpu_custom_call.1} parent=11 // pred_region
        _
      $region48: #{tpu_custom_call.1} parent=11 // pred_fallthru
        _
      // Predicated region
      $region49: #{tpu_custom_call.1} parent=11 // pred_check
        %p392 = pneg %p282
      $region50: #{tpu_custom_call.1} parent=11 // pred_check_branch
        %394 = sbr.rel (%p392) target = $region52
      $region51: #{tpu_custom_call.1} parent=11 // pred_region
        _
      $region52: #{tpu_custom_call.1} parent=11 // pred_fallthru
        _
      // Predicated region
      $region53: #{tpu_custom_call.1} parent=11 // pred_check
        %p395 = pneg %p303
      $region54: #{tpu_custom_call.1} parent=11 // pred_check_branch
        %397 = sbr.rel (%p395) target = $region56
      $region55: #{tpu_custom_call.1} parent=11 // pred_region
        _
      $region56: #{tpu_custom_call.1} parent=11 // pred_fallthru
        _
      // Predicated region
      $region57: #{tpu_custom_call.1} parent=11 // pred_check
        %p398 = pneg %p324
      $region58: #{tpu_custom_call.1} parent=11 // pred_check_branch
        %400 = sbr.rel (%p398) target = $region60
      $region59: #{tpu_custom_call.1} parent=11 // pred_region
        _
      $region60: #{tpu_custom_call.1} parent=11 // pred_fallthru
        _
    $region12: #{tpu_custom_call.1} parent=5 // pred_fallthru
      _
    %p401 = scmp.lt.s32.totalorder %s20, 4
    // Predicated region
    $region61: #{tpu_custom_call.1} parent=5 // pred_check
      %p402 = pneg %p401
    $region62: #{tpu_custom_call.1} parent=5 // pred_check_branch
      %404 = sbr.rel (%p402) target = $region64
    $region63: #{tpu_custom_call.1} parent=5 // pred_region
      // Predicated region
      $region65: #{tpu_custom_call.1} parent=63 // pred_check
        %p405 = pneg %p40
      $region66: #{tpu_custom_call.1} parent=63 // pred_check_branch
        %407 = sbr.rel (%p405) target = $region68
      $region67: #{tpu_custom_call.1} parent=63 // pred_region
        %s408 = smul.u32 16, %s20
        %p409 = scmp.lt.s32.totalorder %s408, 63
        %s410 = scalar_select %p409, %s408, 63
        %s411 = smul.addr %s410, 8
        %s412 = scalar_lea.vmem %s0, %s411
        %s413 = smul.u32 16, %s20
      $region68: #{tpu_custom_call.1} parent=63 // pred_fallthru
        _
      // Predicated region
      $region69: #{tpu_custom_call.1} parent=63 // pred_check
        %p414 = pneg %p66
      $region70: #{tpu_custom_call.1} parent=63 // pred_check_branch
        %416 = sbr.rel (%p414) target = $region72
      $region71: #{tpu_custom_call.1} parent=63 // pred_region
        %p417 = scmp.lt.s32.totalorder %s20, 3
        %s418 = scalar_select %p417, %s20, 3
        %s419 = smul.addr %s418, 4
        %s420 = smul.addr %s419, 8
        %s421 = scalar_lea.vmem %s1, %s420
      $region72: #{tpu_custom_call.1} parent=63 // pred_fallthru
        _
    $region64: #{tpu_custom_call.1} parent=5 // pred_fallthru
      _
    %p422 = scmp.le.s32.totalorder 1, %s20
    %p423 = scmp.lt.s32.totalorder %s20, 5
    %p424 = pnand %p422, %p423
    %p425 = pneg %p424
    // Predicated region
    $region73: #{tpu_custom_call.1} parent=5 // pred_check
      _
    $region74: #{tpu_custom_call.1} parent=5 // pred_check_branch
      %427 = sbr.rel (%p424) target = $region76
    $region75: #{tpu_custom_call.1} parent=5 // pred_region
      %s428 = ssub.s32 %s20, 1
      %s429 = smul.u32 16, %s25
      %p430 = scmp.lt.s32.totalorder %s429, 63
      %s431 = scalar_select %p430, %s429, 63
      %s432 = smul.addr %s431, 8
      %s433 = scalar_lea.vmem %s0, %s432
      %p434 = pneg %p46
      %p435 = pneg %p43
      %p436 = scmp.lt.s32.totalorder %s25, 3
      %s437 = scalar_select %p436, %s25, 3
      %s438 = smul.addr %s437, 4
      %s439 = smul.addr %s438, 8
      %s440 = scalar_lea.vmem %s1, %s439
      %p441 = pneg %p72
      %p442 = pneg %p69
      %p443 = pneg %p93
      %p444 = pneg %p90
      %p445 = pneg %p114
      %p446 = pneg %p111
      %p447 = pneg %p135
      %p448 = pneg %p132
      %p449 = pneg %p156
      %p450 = pneg %p153
      %p451 = pneg %p177
      %p452 = pneg %p174
      %p453 = pneg %p198
      %p454 = pneg %p195
      %p455 = pneg %p219
      %p456 = pneg %p216
      %p457 = pneg %p240
      %p458 = pneg %p237
      %p459 = pneg %p261
      %p460 = pneg %p258
      %p461 = pneg %p282
      %p462 = pneg %p279
      %p463 = pneg %p303
      %p464 = pneg %p300
      %p465 = pneg %p324
      %p466 = pneg %p321
      %p467 = pneg %p350
      %p468 = pneg %p347
      %s469 = smul.u32 16, %s25
      %p470 = scmp.lt.s32.totalorder %s469, 63
      %s471 = scalar_select %p470, %s469, 63
      %s472 = smul.addr %s471, 8
      %s473 = scalar_lea.vmem %s14, %s472
      %s474 = smul.u32 16, %s25
      %p475 = scmp.lt.s32.totalorder %s474, 63
      %s476 = scalar_select %p475, %s474, 63
      %s477 = smul.addr %s476, 8
      %s478 = scalar_lea.vmem %s0, %s477
      %s479 = smul.u32 16, %s25
      %p480 = scmp.lt.s32.totalorder %s25, 3
      %s481 = scalar_select %p480, %s25, 3
      %s482 = smul.addr %s481, 4
      %s483 = smul.addr %s482, 8
      %s484 = scalar_lea.vmem %s1, %s483
      %s485 = smul.u32 16, %s25
      %p486 = scmp.lt.s32.totalorder %s485, 63
      %s487 = scalar_select %p486, %s485, 63
      %s488 = smul.addr %s487, 8
      %s489 = scalar_lea.vmem %s14, %s488
      %s490 = smul.u32 16, %s25
      %v492 = vld [vmem:[%s478] sm:$0xff]
      %v493 = vld [vmem:[%s478 + $0x8] sm:$0xff]
      %v494 = vld [vmem:[%s478 + $0x10] sm:$0xff]
      %v495 = vld [vmem:[%s478 + $0x18] sm:$0xff]
      %v496 = vld [vmem:[%s478 + $0x20] sm:$0xff]
      %v497 = vld [vmem:[%s478 + $0x28] sm:$0xff]
      %v498 = vld [vmem:[%s478 + $0x30] sm:$0xff]
      %v499 = vld [vmem:[%s478 + $0x38] sm:$0xff]
      %v500 = vld [vmem:[%s478 + $0x40] sm:$0xff]
      %v501 = vld [vmem:[%s478 + $0x48] sm:$0xff]
      %v502 = vld [vmem:[%s478 + $0x50] sm:$0xff]
      %v503 = vld [vmem:[%s478 + $0x58] sm:$0xff]
      %v504 = vld [vmem:[%s478 + $0x60] sm:$0xff]
      %v505 = vld [vmem:[%s478 + $0x68] sm:$0xff]
      %v506 = vld [vmem:[%s478 + $0x70] sm:$0xff]
      %v507 = vld [vmem:[%s478 + $0x78] sm:$0xff]
      %v508 = vld [vmem:[%s484] sm:$0xff]
      %v509 = vld [vmem:[%s484 + $0x8] sm:$0xff]
      %v510 = vld [vmem:[%s484 + $0x10] sm:$0xff]
      %v511 = vld [vmem:[%s484 + $0x18] sm:$0xff]
      %v512 = vunpack.c.0.s8 %v508
      %v513 = vunpack.c.1.s8 %v508
      %v514 = vunpack.c.2.s8 %v508
      %v515 = vunpack.c.3.s8 %v508
      %v516 = vunpack.c.0.s8 %v509
      %v517 = vunpack.c.1.s8 %v509
      %v518 = vunpack.c.2.s8 %v509
      %v519 = vunpack.c.3.s8 %v509
      %v520 = vunpack.c.0.s8 %v510
      %v521 = vunpack.c.1.s8 %v510
      %v522 = vunpack.c.2.s8 %v510
      %v523 = vunpack.c.3.s8 %v510
      %v524 = vunpack.c.0.s8 %v511
      %v525 = vunpack.c.1.s8 %v511
      %v526 = vunpack.c.2.s8 %v511
      %v527 = vunpack.c.3.s8 %v511
      %v528 = vcvt.s32.f32 %v512
      %v529 = vcvt.s32.f32 %v513
      %v530 = vcvt.s32.f32 %v514
      %v531 = vcvt.s32.f32 %v515
      %v532 = vcvt.s32.f32 %v516
      %v533 = vcvt.s32.f32 %v517
      %v534 = vcvt.s32.f32 %v518
      %v535 = vcvt.s32.f32 %v519
      %v536 = vcvt.s32.f32 %v520
      %v537 = vcvt.s32.f32 %v521
      %v538 = vcvt.s32.f32 %v522
      %v539 = vcvt.s32.f32 %v523
      %v540 = vcvt.s32.f32 %v524
      %v541 = vcvt.s32.f32 %v525
      %v542 = vcvt.s32.f32 %v526
      %v543 = vcvt.s32.f32 %v527
      %v544 = vpack.c.bf16 %v493, %v492
      %v545 = vpack.c.bf16 %v495, %v494
      %v546 = vpack.c.bf16 %v497, %v496
      %v547 = vpack.c.bf16 %v499, %v498
      %v548 = vpack.c.bf16 %v501, %v500
      %v549 = vpack.c.bf16 %v503, %v502
      %v550 = vpack.c.bf16 %v505, %v504
      %v551 = vpack.c.bf16 %v507, %v506
      %v552 = vld [vmem:[%s2] sm:$0xf]
      %v553 = vld [vmem:[%s2 + $0x4] sm:$0xf]
      %v554 = vld [vmem:[%s2 + $0x8] sm:$0xf]
      %v555 = vld [vmem:[%s2 + $0xc] sm:$0xf]
      %v556 = vld [vmem:[%s3] sm:$0x1]
      %v558 = vlaneseq
      %v559 = vshrl.u32 %v558, 7
      %v560 = vsub.s32 0, %v559
      %v561 = vrot.slane %v556, %v560
      %v567 = vunpack.c.l.b16 %v552
      %v568 = vunpack.c.l.b16 %v553
      %v569 = vunpack.c.l.b16 %v554
      %v570 = vunpack.c.l.b16 %v555
      %v571 = vpack.c.b16 %v568, %v567
      %v572 = vpack.c.b16 %v570, %v569
      %vm575 = vcmask 261120
      %v577 = vsel %vm575, %v544, 0
      %v580 = vsel %vm575, %v545, 0
      %v583 = vsel %vm575, %v546, 0
      %v586 = vsel %vm575, %v547, 0
      %v589 = vsel %vm575, %v548, 0
      %v592 = vsel %vm575, %v549, 0
      %v595 = vsel %vm575, %v550, 0
      %v598 = vsel %vm575, %v551, 0
      %600 = vmatprep.subr.bf16.mxu0 0
      %601 = vmatpush1.bf16.msra.mxu0 0
      %602 = vmatprep.subr.bf16.mxu0 0
      %603 = vmatpush1.bf16.msra.mxu0 0
      %604 = vmatprep.subr.bf16.mxu0 0
      %605 = vmatpush1.bf16.msra.mxu0 0
      %606 = vmatprep.subr.bf16.mxu0 0
      %607 = vmatpush1.bf16.msra.mxu0 0
      %608 = vmatprep.subr.bf16.mxu0 0
      %609 = vmatpush1.bf16.msra.mxu0 0
      %610 = vmatprep.subr.bf16.mxu0 0
      %611 = vmatpush1.bf16.msra.mxu0 0
      %612 = vmatprep.subr.bf16.mxu0 0
      %613 = vmatpush1.bf16.msra.mxu0 %v572
      %614 = vmatprep.subr.bf16.mxu0 0
      %615 = vmatpush1.bf16.msra.mxu0 %v571
      %616 = vmatprep.subr.bf16.mxu0 0
      %617 = vmatpush2.bf16.msra.mxu0 0
      %618 = vmatprep.subr.bf16.mxu0 0
      %619 = vmatpush2.bf16.msra.mxu0 0
      %620 = vmatprep.subr.bf16.mxu0 0
      %621 = vmatpush2.bf16.msra.mxu0 0
      %622 = vmatprep.subr.bf16.mxu0 0
      %623 = vmatpush2.bf16.msra.mxu0 0
      %624 = vmatprep.subr.bf16.mxu0 0
      %625 = vmatpush2.bf16.msra.mxu0 0
      %626 = vmatprep.subr.bf16.mxu0 0
      %627 = vmatpush2.bf16.msra.mxu0 0
      %628 = vmatprep.subr.bf16.mxu0 0
      %629 = vmatpush2.bf16.msra.mxu0 0
      %630 = vmatprep.subr.bf16.mxu0 0
      %631 = vmatpush2.bf16.msra.mxu0 0
      %632 = vmatprep.mubr.bf16.mxu0 0
      %633 = vmatmul.mubr.bf16.gmra.mxu0 %v577
      %v634 = vpop.f32.mrf.mxu0
      %v635 = vadd.f32 %v561, %v634
      %v636 = vpop.f32.mrf.mxu0
      %v637 = vpop.f32.mrf.mxu0
      %v638 = vadd.f32 %v561, %v637
      %v639 = vpop.f32.mrf.mxu0
      %640 = vmatprep.mubr.bf16.mxu0 0
      %641 = vmatmul.mubr.bf16.gmra.mxu0 %v580
      %v642 = vpop.f32.mrf.mxu0
      %v643 = vadd.f32 %v561, %v642
      %v644 = vpop.f32.mrf.mxu0
      %v645 = vpop.f32.mrf.mxu0
      %v646 = vadd.f32 %v561, %v645
      %v647 = vpop.f32.mrf.mxu0
      %648 = vmatprep.mubr.bf16.mxu0 0
      %649 = vmatmul.mubr.bf16.gmra.mxu0 %v583
      %v650 = vpop.f32.mrf.mxu0
      %v651 = vadd.f32 %v561, %v650
      %v652 = vpop.f32.mrf.mxu0
      %v653 = vpop.f32.mrf.mxu0
      %v654 = vadd.f32 %v561, %v653
      %v655 = vpop.f32.mrf.mxu0
      %656 = vmatprep.mubr.bf16.mxu0 0
      %657 = vmatmul.mubr.bf16.gmra.mxu0 %v586
      %v658 = vpop.f32.mrf.mxu0
      %v659 = vadd.f32 %v561, %v658
      %v660 = vpop.f32.mrf.mxu0
      %v661 = vpop.f32.mrf.mxu0
      %v662 = vadd.f32 %v561, %v661
      %v663 = vpop.f32.mrf.mxu0
      %664 = vmatprep.mubr.bf16.mxu0 0
      %665 = vmatmul.mubr.bf16.gmra.mxu0 %v589
      %v666 = vpop.f32.mrf.mxu0
      %v667 = vadd.f32 %v561, %v666
      %v668 = vpop.f32.mrf.mxu0
      %v669 = vpop.f32.mrf.mxu0
      %v670 = vadd.f32 %v561, %v669
      %v671 = vpop.f32.mrf.mxu0
      %672 = vmatprep.mubr.bf16.mxu0 0
      %673 = vmatmul.mubr.bf16.gmra.mxu0 %v592
      %v674 = vpop.f32.mrf.mxu0
      %v675 = vadd.f32 %v561, %v674
      %v676 = vpop.f32.mrf.mxu0
      %v677 = vpop.f32.mrf.mxu0
      %v678 = vadd.f32 %v561, %v677
      %v679 = vpop.f32.mrf.mxu0
      %680 = vmatprep.mubr.bf16.mxu0 0
      %681 = vmatmul.mubr.bf16.gmra.mxu0 %v595
      %v682 = vpop.f32.mrf.mxu0
      %v683 = vadd.f32 %v561, %v682
      %v684 = vpop.f32.mrf.mxu0
      %v685 = vpop.f32.mrf.mxu0
      %v686 = vadd.f32 %v561, %v685
      %v687 = vpop.f32.mrf.mxu0
      %688 = vmatprep.mubr.bf16.mxu0 0
      %689 = vmatmul.mubr.bf16.gmra.mxu0 %v598
      %v690 = vpop.f32.mrf.mxu0
      %v691 = vadd.f32 %v561, %v690
      %v692 = vpop.f32.mrf.mxu0
      %v693 = vpop.f32.mrf.mxu0
      %v694 = vadd.f32 %v561, %v693
      %v695 = vpop.f32.mrf.mxu0
      %696 = vdwg.mxu0
      %v697 = vpack.c.bf16 %v638, %v635
      %v698 = vpack.c.bf16 %v646, %v643
      %v699 = vpack.c.bf16 %v654, %v651
      %v700 = vpack.c.bf16 %v662, %v659
      %v701 = vpack.c.bf16 %v670, %v667
      %v702 = vpack.c.bf16 %v678, %v675
      %v703 = vpack.c.bf16 %v686, %v683
      %v704 = vpack.c.bf16 %v694, %v691
      %v705 = vld [vmem:[%s5] sm:$0x1]
      %v707 = vlaneseq
      %v708 = vshrl.u32 %v707, 7
      %v709 = vsub.s32 0, %v708
      %v710 = vrot.slane %v705, %v709
      %v712 = vadd.f32 %v492, %v710
      %v713 = vadd.f32 %v493, %v710
      %v714 = vadd.f32 %v494, %v710
      %v715 = vadd.f32 %v495, %v710
      %v716 = vadd.f32 %v496, %v710
      %v717 = vadd.f32 %v497, %v710
      %v718 = vadd.f32 %v498, %v710
      %v719 = vadd.f32 %v499, %v710
      %v720 = vadd.f32 %v500, %v710
      %v721 = vadd.f32 %v501, %v710
      %v722 = vadd.f32 %v502, %v710
      %v723 = vadd.f32 %v503, %v710
      %v724 = vadd.f32 %v504, %v710
      %v725 = vadd.f32 %v505, %v710
      %v726 = vadd.f32 %v506, %v710
      %v727 = vadd.f32 %v507, %v710
      %736 = vrot.lane.b32.xlu0 %v697, 96
      %v737 = vpop.permute.xlu0 %736
      %738 = vrot.lane.b32.xlu0 %v698, 96
      %v739 = vpop.permute.xlu0 %738
      %740 = vrot.lane.b32.xlu0 %v699, 96
      %v741 = vpop.permute.xlu0 %740
      %742 = vrot.lane.b32.xlu0 %v700, 96
      %v743 = vpop.permute.xlu0 %742
      %744 = vrot.lane.b32.xlu0 %v701, 96
      %v745 = vpop.permute.xlu0 %744
      %746 = vrot.lane.b32.xlu0 %v702, 96
      %v747 = vpop.permute.xlu0 %746
      %748 = vrot.lane.b32.xlu0 %v703, 96
      %v749 = vpop.permute.xlu0 %748
      %750 = vrot.lane.b32.xlu0 %v704, 96
      %v751 = vpop.permute.xlu0 %750
      %vm752 = vcmask 64512
      %v754 = vsel %vm752, %v697, 0
      %v757 = vsel %vm752, %v698, 0
      %v760 = vsel %vm752, %v699, 0
      %v763 = vsel %vm752, %v700, 0
      %v766 = vsel %vm752, %v701, 0
      %v769 = vsel %vm752, %v702, 0
      %v772 = vsel %vm752, %v703, 0
      %v775 = vsel %vm752, %v704, 0
      %v778 = vsel %vm752, %v737, 0
      %v781 = vsel %vm752, %v739, 0
      %v784 = vsel %vm752, %v741, 0
      %v787 = vsel %vm752, %v743, 0
      %v790 = vsel %vm752, %v745, 0
      %v793 = vsel %vm752, %v747, 0
      %v796 = vsel %vm752, %v749, 0
      %v799 = vsel %vm752, %v751, 0
      %801 = vmatprep.subr.bf16.mxu0 0
      %802 = vmatpush1.bf16.xpose.msra.mxu0 %v799
      %803 = vmatprep.subr.bf16.mxu0 0
      %804 = vmatpush1.bf16.xpose.msra.mxu0 %v796
      %805 = vmatprep.subr.bf16.mxu0 0
      %806 = vmatpush1.bf16.xpose.msra.mxu0 %v793
      %807 = vmatprep.subr.bf16.mxu0 0
      %808 = vmatpush1.bf16.xpose.msra.mxu0 %v790
      %809 = vmatprep.subr.bf16.mxu0 0
      %810 = vmatpush1.bf16.xpose.msra.mxu0 %v787
      %811 = vmatprep.subr.bf16.mxu0 0
      %812 = vmatpush1.bf16.xpose.msra.mxu0 %v784
      %813 = vmatprep.subr.bf16.mxu0 0
      %814 = vmatpush1.bf16.xpose.msra.mxu0 %v781
      %815 = vmatprep.subr.bf16.mxu0 0
      %816 = vmatpush1.bf16.xpose.msra.mxu0 %v778
      %817 = vmatprep.subr.bf16.mxu0 0
      %818 = vmatpush2.bf16.xpose.msra.mxu0 0
      %819 = vmatprep.subr.bf16.mxu0 0
      %820 = vmatpush2.bf16.xpose.msra.mxu0 0
      %821 = vmatprep.subr.bf16.mxu0 0
      %822 = vmatpush2.bf16.xpose.msra.mxu0 0
      %823 = vmatprep.subr.bf16.mxu0 0
      %824 = vmatpush2.bf16.xpose.msra.mxu0 0
      %825 = vmatprep.subr.bf16.mxu0 0
      %826 = vmatpush2.bf16.xpose.msra.mxu0 0
      %827 = vmatprep.subr.bf16.mxu0 0
      %828 = vmatpush2.bf16.xpose.msra.mxu0 0
      %829 = vmatprep.subr.bf16.mxu0 0
      %830 = vmatpush2.bf16.xpose.msra.mxu0 0
      %831 = vmatprep.subr.bf16.mxu0 0
      %832 = vmatpush2.bf16.xpose.msra.mxu0 0
      %833 = vmatprep.mubr.bf16.mxu0 0
      %834 = vmatmul.mubr.bf16.gmra.mxu0 %v754
      %v835 = vpop.f32.mrf.mxu0
      %v836 = vadd.f32 0.0, %v835
      %v837 = vpop.f32.mrf.mxu0
      %v838 = vpop.f32.mrf.mxu0
      %v839 = vadd.f32 0.0, %v838
      %v840 = vpop.f32.mrf.mxu0
      %841 = vmatprep.mubr.bf16.mxu0 0
      %842 = vmatmul.mubr.bf16.gmra.mxu0 %v757
      %v843 = vpop.f32.mrf.mxu0
      %v844 = vadd.f32 0.0, %v843
      %v845 = vpop.f32.mrf.mxu0
      %v846 = vpop.f32.mrf.mxu0
      %v847 = vadd.f32 0.0, %v846
      %v848 = vpop.f32.mrf.mxu0
      %849 = vmatprep.mubr.bf16.mxu0 0
      %850 = vmatmul.mubr.bf16.gmra.mxu0 %v760
      %v851 = vpop.f32.mrf.mxu0
      %v852 = vadd.f32 0.0, %v851
      %v853 = vpop.f32.mrf.mxu0
      %v854 = vpop.f32.mrf.mxu0
      %v855 = vadd.f32 0.0, %v854
      %v856 = vpop.f32.mrf.mxu0
      %857 = vmatprep.mubr.bf16.mxu0 0
      %858 = vmatmul.mubr.bf16.gmra.mxu0 %v763
      %v859 = vpop.f32.mrf.mxu0
      %v860 = vadd.f32 0.0, %v859
      %v861 = vpop.f32.mrf.mxu0
      %v862 = vpop.f32.mrf.mxu0
      %v863 = vadd.f32 0.0, %v862
      %v864 = vpop.f32.mrf.mxu0
      %865 = vmatprep.mubr.bf16.mxu0 0
      %866 = vmatmul.mubr.bf16.gmra.mxu0 %v766
      %v867 = vpop.f32.mrf.mxu0
      %v868 = vadd.f32 0.0, %v867
      %v869 = vpop.f32.mrf.mxu0
      %v870 = vpop.f32.mrf.mxu0
      %v871 = vadd.f32 0.0, %v870
      %v872 = vpop.f32.mrf.mxu0
      %873 = vmatprep.mubr.bf16.mxu0 0
      %874 = vmatmul.mubr.bf16.gmra.mxu0 %v769
      %v875 = vpop.f32.mrf.mxu0
      %v876 = vadd.f32 0.0, %v875
      %v877 = vpop.f32.mrf.mxu0
      %v878 = vpop.f32.mrf.mxu0
      %v879 = vadd.f32 0.0, %v878
      %v880 = vpop.f32.mrf.mxu0
      %881 = vmatprep.mubr.bf16.mxu0 0
      %882 = vmatmul.mubr.bf16.gmra.mxu0 %v772
      %v883 = vpop.f32.mrf.mxu0
      %v884 = vadd.f32 0.0, %v883
      %v885 = vpop.f32.mrf.mxu0
      %v886 = vpop.f32.mrf.mxu0
      %v887 = vadd.f32 0.0, %v886
      %v888 = vpop.f32.mrf.mxu0
      %889 = vmatprep.mubr.bf16.mxu0 0
      %890 = vmatmul.mubr.bf16.gmra.mxu0 %v775
      %v891 = vpop.f32.mrf.mxu0
      %v892 = vadd.f32 0.0, %v891
      %v893 = vpop.f32.mrf.mxu0
      %v894 = vpop.f32.mrf.mxu0
      %v895 = vadd.f32 0.0, %v894
      %v896 = vpop.f32.mrf.mxu0
      %897 = vdwg.mxu0
      %v898 = vmax.f32 %v836, -5.0
      %v899 = vmax.f32 %v839, -5.0
      %v900 = vmax.f32 %v844, -5.0
      %v901 = vmax.f32 %v847, -5.0
      %v902 = vmax.f32 %v852, -5.0
      %v903 = vmax.f32 %v855, -5.0
      %v904 = vmax.f32 %v860, -5.0
      %v905 = vmax.f32 %v863, -5.0
      %v906 = vmax.f32 %v868, -5.0
      %v907 = vmax.f32 %v871, -5.0
      %v908 = vmax.f32 %v876, -5.0
      %v909 = vmax.f32 %v879, -5.0
      %v910 = vmax.f32 %v884, -5.0
      %v911 = vmax.f32 %v887, -5.0
      %v912 = vmax.f32 %v892, -5.0
      %v913 = vmax.f32 %v895, -5.0
      %v914 = vmin.f32 %v898, 5.0
      %v915 = vmin.f32 %v899, 5.0
      %v916 = vmin.f32 %v900, 5.0
      %v917 = vmin.f32 %v901, 5.0
      %v918 = vmin.f32 %v902, 5.0
      %v919 = vmin.f32 %v903, 5.0
      %v920 = vmin.f32 %v904, 5.0
      %v921 = vmin.f32 %v905, 5.0
      %v922 = vmin.f32 %v906, 5.0
      %v923 = vmin.f32 %v907, 5.0
      %v924 = vmin.f32 %v908, 5.0
      %v925 = vmin.f32 %v909, 5.0
      %v926 = vmin.f32 %v910, 5.0
      %v927 = vmin.f32 %v911, 5.0
      %v928 = vmin.f32 %v912, 5.0
      %v929 = vmin.f32 %v913, 5.0
      %v930 = vmul.f32 %v914, 1.442695
      %v931 = vpow.pop %v930
      %v932 = vmul.f32 %v915, 1.442695
      %v933 = vpow.pop %v932
      %v934 = vmul.f32 %v916, 1.442695
      %v935 = vpow.pop %v934
      %v936 = vmul.f32 %v917, 1.442695
      %v937 = vpow.pop %v936
      %v938 = vmul.f32 %v918, 1.442695
      %v939 = vpow.pop %v938
      %v940 = vmul.f32 %v919, 1.442695
      %v941 = vpow.pop %v940
      %v942 = vmul.f32 %v920, 1.442695
      %v943 = vpow.pop %v942
      %v944 = vmul.f32 %v921, 1.442695
      %v945 = vpow.pop %v944
      %v946 = vmul.f32 %v922, 1.442695
      %v947 = vpow.pop %v946
      %v948 = vmul.f32 %v923, 1.442695
      %v949 = vpow.pop %v948
      %v950 = vmul.f32 %v924, 1.442695
      %v951 = vpow.pop %v950
      %v952 = vmul.f32 %v925, 1.442695
      %v953 = vpow.pop %v952
      %v954 = vmul.f32 %v926, 1.442695
      %v955 = vpow.pop %v954
      %v956 = vmul.f32 %v927, 1.442695
      %v957 = vpow.pop %v956
      %v958 = vmul.f32 %v928, 1.442695
      %v959 = vpow.pop %v958
      %v960 = vmul.f32 %v929, 1.442695
      %v961 = vpow.pop %v960
      %v962 = vmul.f32 %v931, %v528
      %v963 = vmul.f32 %v933, %v529
      %v964 = vmul.f32 %v935, %v530
      %v965 = vmul.f32 %v937, %v531
      %v966 = vmul.f32 %v939, %v532
      %v967 = vmul.f32 %v941, %v533
      %v968 = vmul.f32 %v943, %v534
      %v969 = vmul.f32 %v945, %v535
      %v970 = vmul.f32 %v947, %v536
      %v971 = vmul.f32 %v949, %v537
      %v972 = vmul.f32 %v951, %v538
      %v973 = vmul.f32 %v953, %v539
      %v974 = vmul.f32 %v955, %v540
      %v975 = vmul.f32 %v957, %v541
      %v976 = vmul.f32 %v959, %v542
      %v977 = vmul.f32 %v961, %v543
      %978 = vadd.xlane.f32.xlu0 %v962
      %v979 = vpop.xlane.xlu0 %978
      %980 = vadd.xlane.f32.xlu0 %v963
      %v981 = vpop.xlane.xlu0 %980
      %982 = vadd.xlane.f32.xlu0 %v964
      %v983 = vpop.xlane.xlu0 %982
      %984 = vadd.xlane.f32.xlu0 %v965
      %v985 = vpop.xlane.xlu0 %984
      %986 = vadd.xlane.f32.xlu0 %v966
      %v987 = vpop.xlane.xlu0 %986
      %988 = vadd.xlane.f32.xlu0 %v967
      %v989 = vpop.xlane.xlu0 %988
      %990 = vadd.xlane.f32.xlu0 %v968
      %v991 = vpop.xlane.xlu0 %990
      %992 = vadd.xlane.f32.xlu0 %v969
      %v993 = vpop.xlane.xlu0 %992
      %994 = vadd.xlane.f32.xlu0 %v970
      %v995 = vpop.xlane.xlu0 %994
      %996 = vadd.xlane.f32.xlu0 %v971
      %v997 = vpop.xlane.xlu0 %996
      %998 = vadd.xlane.f32.xlu0 %v972
      %v999 = vpop.xlane.xlu0 %998
      %1000 = vadd.xlane.f32.xlu0 %v973
      %v1001 = vpop.xlane.xlu0 %1000
      %1002 = vadd.xlane.f32.xlu0 %v974
      %v1003 = vpop.xlane.xlu0 %1002
      %1004 = vadd.xlane.f32.xlu0 %v975
      %v1005 = vpop.xlane.xlu0 %1004
      %1006 = vadd.xlane.f32.xlu0 %v976
      %v1007 = vpop.xlane.xlu0 %1006
      %1008 = vadd.xlane.f32.xlu0 %v977
      %v1009 = vpop.xlane.xlu0 %1008
      %v1010 = vpack.c.bf16 %v963, %v962
      %v1011 = vpack.c.bf16 %v965, %v964
      %v1012 = vpack.c.bf16 %v967, %v966
      %v1013 = vpack.c.bf16 %v969, %v968
      %v1014 = vpack.c.bf16 %v971, %v970
      %v1015 = vpack.c.bf16 %v973, %v972
      %v1016 = vpack.c.bf16 %v975, %v974
      %v1017 = vpack.c.bf16 %v977, %v976
      %1018 = vrot.lane.b32.xlu0 %v697, 64
      %v1019 = vpop.permute.xlu0 %1018
      %1020 = vrot.lane.b32.xlu0 %v698, 64
      %v1021 = vpop.permute.xlu0 %1020
      %1022 = vrot.lane.b32.xlu0 %v699, 64
      %v1023 = vpop.permute.xlu0 %1022
      %1024 = vrot.lane.b32.xlu0 %v700, 64
      %v1025 = vpop.permute.xlu0 %1024
      %1026 = vrot.lane.b32.xlu0 %v701, 64
      %v1027 = vpop.permute.xlu0 %1026
      %1028 = vrot.lane.b32.xlu0 %v702, 64
      %v1029 = vpop.permute.xlu0 %1028
      %1030 = vrot.lane.b32.xlu0 %v703, 64
      %v1031 = vpop.permute.xlu0 %1030
      %1032 = vrot.lane.b32.xlu0 %v704, 64
      %v1033 = vpop.permute.xlu0 %1032
      %1042 = vmatprep.subr.bf16.mxu0 0
      %1043 = vmatpush1.bf16.msra.mxu0 %v1033
      %1044 = vmatprep.subr.bf16.mxu0 0
      %1045 = vmatpush1.bf16.msra.mxu0 %v1031
      %1046 = vmatprep.subr.bf16.mxu0 0
      %1047 = vmatpush1.bf16.msra.mxu0 %v1029
      %1048 = vmatprep.subr.bf16.mxu0 0
      %1049 = vmatpush1.bf16.msra.mxu0 %v1027
      %1050 = vmatprep.subr.bf16.mxu0 0
      %1051 = vmatpush1.bf16.msra.mxu0 %v1025
      %1052 = vmatprep.subr.bf16.mxu0 0
      %1053 = vmatpush1.bf16.msra.mxu0 %v1023
      %1054 = vmatprep.subr.bf16.mxu0 0
      %1055 = vmatpush1.bf16.msra.mxu0 %v1021
      %1056 = vmatprep.subr.bf16.mxu0 0
      %1057 = vmatpush1.bf16.msra.mxu0 %v1019
      %1058 = vmatprep.subr.bf16.mxu0 0
      %1059 = vmatpush2.bf16.msra.mxu0 0
      %1060 = vmatprep.subr.bf16.mxu0 0
      %1061 = vmatpush2.bf16.msra.mxu0 0
      %1062 = vmatprep.subr.bf16.mxu0 0
      %1063 = vmatpush2.bf16.msra.mxu0 0
      %1064 = vmatprep.subr.bf16.mxu0 0
      %1065 = vmatpush2.bf16.msra.mxu0 0
      %1066 = vmatprep.subr.bf16.mxu0 0
      %1067 = vmatpush2.bf16.msra.mxu0 0
      %1068 = vmatprep.subr.bf16.mxu0 0
      %1069 = vmatpush2.bf16.msra.mxu0 0
      %1070 = vmatprep.subr.bf16.mxu0 0
      %1071 = vmatpush2.bf16.msra.mxu0 0
      %1072 = vmatprep.subr.bf16.mxu0 0
      %1073 = vmatpush2.bf16.msra.mxu0 0
      %1074 = vmatprep.mubr.bf16.mxu0 0
      %1075 = vmatmul.mubr.bf16.gmra.mxu0 %v1010
      %v1076 = vpop.f32.mrf.mxu0
      %v1077 = vadd.f32 0.0, %v1076
      %v1078 = vpop.f32.mrf.mxu0
      %v1079 = vpop.f32.mrf.mxu0
      %v1080 = vadd.f32 0.0, %v1079
      %v1081 = vpop.f32.mrf.mxu0
      %1082 = vmatprep.mubr.bf16.mxu0 0
      %1083 = vmatmul.mubr.bf16.gmra.mxu0 %v1011
      %v1084 = vpop.f32.mrf.mxu0
      %v1085 = vadd.f32 0.0, %v1084
      %v1086 = vpop.f32.mrf.mxu0
      %v1087 = vpop.f32.mrf.mxu0
      %v1088 = vadd.f32 0.0, %v1087
      %v1089 = vpop.f32.mrf.mxu0
      %1090 = vmatprep.mubr.bf16.mxu0 0
      %1091 = vmatmul.mubr.bf16.gmra.mxu0 %v1012
      %v1092 = vpop.f32.mrf.mxu0
      %v1093 = vadd.f32 0.0, %v1092
      %v1094 = vpop.f32.mrf.mxu0
      %v1095 = vpop.f32.mrf.mxu0
      %v1096 = vadd.f32 0.0, %v1095
      %v1097 = vpop.f32.mrf.mxu0
      %1098 = vmatprep.mubr.bf16.mxu0 0
      %1099 = vmatmul.mubr.bf16.gmra.mxu0 %v1013
      %v1100 = vpop.f32.mrf.mxu0
      %v1101 = vadd.f32 0.0, %v1100
      %v1102 = vpop.f32.mrf.mxu0
      %v1103 = vpop.f32.mrf.mxu0
      %v1104 = vadd.f32 0.0, %v1103
      %v1105 = vpop.f32.mrf.mxu0
      %1106 = vmatprep.mubr.bf16.mxu0 0
      %1107 = vmatmul.mubr.bf16.gmra.mxu0 %v1014
      %v1108 = vpop.f32.mrf.mxu0
      %v1109 = vadd.f32 0.0, %v1108
      %v1110 = vpop.f32.mrf.mxu0
      %v1111 = vpop.f32.mrf.mxu0
      %v1112 = vadd.f32 0.0, %v1111
      %v1113 = vpop.f32.mrf.mxu0
      %1114 = vmatprep.mubr.bf16.mxu0 0
      %1115 = vmatmul.mubr.bf16.gmra.mxu0 %v1015
      %v1116 = vpop.f32.mrf.mxu0
      %v1117 = vadd.f32 0.0, %v1116
      %v1118 = vpop.f32.mrf.mxu0
      %v1119 = vpop.f32.mrf.mxu0
      %v1120 = vadd.f32 0.0, %v1119
      %v1121 = vpop.f32.mrf.mxu0
      %1122 = vmatprep.mubr.bf16.mxu0 0
      %1123 = vmatmul.mubr.bf16.gmra.mxu0 %v1016
      %v1124 = vpop.f32.mrf.mxu0
      %v1125 = vadd.f32 0.0, %v1124
      %v1126 = vpop.f32.mrf.mxu0
      %v1127 = vpop.f32.mrf.mxu0
      %v1128 = vadd.f32 0.0, %v1127
      %v1129 = vpop.f32.mrf.mxu0
      %1130 = vmatprep.mubr.bf16.mxu0 0
      %1131 = vmatmul.mubr.bf16.gmra.mxu0 %v1017
      %v1132 = vpop.f32.mrf.mxu0
      %v1133 = vadd.f32 0.0, %v1132
      %v1134 = vpop.f32.mrf.mxu0
      %v1135 = vpop.f32.mrf.mxu0
      %v1136 = vadd.f32 0.0, %v1135
      %v1137 = vpop.f32.mrf.mxu0
      %1138 = vdwg.mxu0
      %v1139 = vmax.f32 %v979, 1e-30
      %v1140 = vmax.f32 %v981, 1e-30
      %v1141 = vmax.f32 %v983, 1e-30
      %v1142 = vmax.f32 %v985, 1e-30
      %v1143 = vmax.f32 %v987, 1e-30
      %v1144 = vmax.f32 %v989, 1e-30
      %v1145 = vmax.f32 %v991, 1e-30
      %v1146 = vmax.f32 %v993, 1e-30
      %v1147 = vmax.f32 %v995, 1e-30
      %v1148 = vmax.f32 %v997, 1e-30
      %v1149 = vmax.f32 %v999, 1e-30
      %v1150 = vmax.f32 %v1001, 1e-30
      %v1151 = vmax.f32 %v1003, 1e-30
      %v1152 = vmax.f32 %v1005, 1e-30
      %v1153 = vmax.f32 %v1007, 1e-30
      %v1154 = vmax.f32 %v1009, 1e-30
      %v1155 = vrcp.pop %v1139
      %v1156 = vrcp.pop %v1140
      %v1157 = vrcp.pop %v1141
      %v1158 = vrcp.pop %v1142
      %v1159 = vrcp.pop %v1143
      %v1160 = vrcp.pop %v1144
      %v1161 = vrcp.pop %v1145
      %v1162 = vrcp.pop %v1146
      %v1163 = vrcp.pop %v1147
      %v1164 = vrcp.pop %v1148
      %v1165 = vrcp.pop %v1149
      %v1166 = vrcp.pop %v1150
      %v1167 = vrcp.pop %v1151
      %v1168 = vrcp.pop %v1152
      %v1169 = vrcp.pop %v1153
      %v1170 = vrcp.pop %v1154
      %v1171 = vmul.f32 %v1077, %v1155
      %v1172 = vmul.f32 %v1080, %v1156
      %v1173 = vmul.f32 %v1085, %v1157
      %v1174 = vmul.f32 %v1088, %v1158
      %v1175 = vmul.f32 %v1093, %v1159
      %v1176 = vmul.f32 %v1096, %v1160
      %v1177 = vmul.f32 %v1101, %v1161
      %v1178 = vmul.f32 %v1104, %v1162
      %v1179 = vmul.f32 %v1109, %v1163
      %v1180 = vmul.f32 %v1112, %v1164
      %v1181 = vmul.f32 %v1117, %v1165
      %v1182 = vmul.f32 %v1120, %v1166
      %v1183 = vmul.f32 %v1125, %v1167
      %v1184 = vmul.f32 %v1128, %v1168
      %v1185 = vmul.f32 %v1133, %v1169
      %v1186 = vmul.f32 %v1136, %v1170
      %v1187 = vpack.c.bf16 %v1172, %v1171
      %v1188 = vpack.c.bf16 %v1174, %v1173
      %v1189 = vpack.c.bf16 %v1176, %v1175
      %v1190 = vpack.c.bf16 %v1178, %v1177
      %v1191 = vpack.c.bf16 %v1180, %v1179
      %v1192 = vpack.c.bf16 %v1182, %v1181
      %v1193 = vpack.c.bf16 %v1184, %v1183
      %v1194 = vpack.c.bf16 %v1186, %v1185
      %v1195 = vld [vmem:[%s4] sm:$0xf]
      %v1197 = vsel %vm752, %v1187, 0
      %v1200 = vsel %vm752, %v1188, 0
      %v1203 = vsel %vm752, %v1189, 0
      %v1206 = vsel %vm752, %v1190, 0
      %v1209 = vsel %vm752, %v1191, 0
      %v1212 = vsel %vm752, %v1192, 0
      %v1215 = vsel %vm752, %v1193, 0
      %v1218 = vsel %vm752, %v1194, 0
      %vm1220 = vcmask 1043456
      %v1222 = vsel %vm1220, %v1195, 0
      %1224 = vmatprep.subr.bf16.mxu0 0
      %1225 = vmatpush1.bf16.msra.mxu0 0
      %1226 = vmatprep.subr.bf16.mxu0 0
      %1227 = vmatpush1.bf16.msra.mxu0 0
      %1228 = vmatprep.subr.bf16.mxu0 0
      %1229 = vmatpush1.bf16.msra.mxu0 0
      %1230 = vmatprep.subr.bf16.mxu0 0
      %1231 = vmatpush1.bf16.msra.mxu0 0
      %1232 = vmatprep.subr.bf16.mxu0 0
      %1233 = vmatpush1.bf16.msra.mxu0 0
      %1234 = vmatprep.subr.bf16.mxu0 0
      %1235 = vmatpush1.bf16.msra.mxu0 0
      %1236 = vmatprep.subr.bf16.mxu0 0
      %1237 = vmatpush1.bf16.msra.mxu0 0
      %1238 = vmatprep.subr.bf16.mxu0 0
      %1239 = vmatpush1.bf16.msra.mxu0 %v1222
      %1240 = vmatprep.subr.bf16.mxu0 0
      %1241 = vmatpush2.bf16.msra.mxu0 0
      %1242 = vmatprep.subr.bf16.mxu0 0
      %1243 = vmatpush2.bf16.msra.mxu0 0
      %1244 = vmatprep.subr.bf16.mxu0 0
      %1245 = vmatpush2.bf16.msra.mxu0 0
      %1246 = vmatprep.subr.bf16.mxu0 0
      %1247 = vmatpush2.bf16.msra.mxu0 0
      %1248 = vmatprep.subr.bf16.mxu0 0
      %1249 = vmatpush2.bf16.msra.mxu0 0
      %1250 = vmatprep.subr.bf16.mxu0 0
      %1251 = vmatpush2.bf16.msra.mxu0 0
      %1252 = vmatprep.subr.bf16.mxu0 0
      %1253 = vmatpush2.bf16.msra.mxu0 0
      %1254 = vmatprep.subr.bf16.mxu0 0
      %1255 = vmatpush2.bf16.msra.mxu0 0
      %1256 = vmatprep.mubr.bf16.mxu0 0
      %1257 = vmatmul.mubr.bf16.gmra.mxu0 %v1197
      %v1258 = vpop.f32.mrf.mxu0
      %v1259 = vadd.f32 0.0, %v1258
      %v1260 = vpop.f32.mrf.mxu0
      %v1261 = vpop.f32.mrf.mxu0
      %v1262 = vadd.f32 0.0, %v1261
      %v1263 = vpop.f32.mrf.mxu0
      %1264 = vmatprep.mubr.bf16.mxu0 0
      %1265 = vmatmul.mubr.bf16.gmra.mxu0 %v1200
      %v1266 = vpop.f32.mrf.mxu0
      %v1267 = vadd.f32 0.0, %v1266
      %v1268 = vpop.f32.mrf.mxu0
      %v1269 = vpop.f32.mrf.mxu0
      %v1270 = vadd.f32 0.0, %v1269
      %v1271 = vpop.f32.mrf.mxu0
      %1272 = vmatprep.mubr.bf16.mxu0 0
      %1273 = vmatmul.mubr.bf16.gmra.mxu0 %v1203
      %v1274 = vpop.f32.mrf.mxu0
      %v1275 = vadd.f32 0.0, %v1274
      %v1276 = vpop.f32.mrf.mxu0
      %v1277 = vpop.f32.mrf.mxu0
      %v1278 = vadd.f32 0.0, %v1277
      %v1279 = vpop.f32.mrf.mxu0
      %1280 = vmatprep.mubr.bf16.mxu0 0
      %1281 = vmatmul.mubr.bf16.gmra.mxu0 %v1206
      %v1282 = vpop.f32.mrf.mxu0
      %v1283 = vadd.f32 0.0, %v1282
      %v1284 = vpop.f32.mrf.mxu0
      %v1285 = vpop.f32.mrf.mxu0
      %v1286 = vadd.f32 0.0, %v1285
      %v1287 = vpop.f32.mrf.mxu0
      %1288 = vmatprep.mubr.bf16.mxu0 0
      %1289 = vmatmul.mubr.bf16.gmra.mxu0 %v1209
      %v1290 = vpop.f32.mrf.mxu0
      %v1291 = vadd.f32 0.0, %v1290
      %v1292 = vpop.f32.mrf.mxu0
      %v1293 = vpop.f32.mrf.mxu0
      %v1294 = vadd.f32 0.0, %v1293
      %v1295 = vpop.f32.mrf.mxu0
      %1296 = vmatprep.mubr.bf16.mxu0 0
      %1297 = vmatmul.mubr.bf16.gmra.mxu0 %v1212
      %v1298 = vpop.f32.mrf.mxu0
      %v1299 = vadd.f32 0.0, %v1298
      %v1300 = vpop.f32.mrf.mxu0
      %v1301 = vpop.f32.mrf.mxu0
      %v1302 = vadd.f32 0.0, %v1301
      %v1303 = vpop.f32.mrf.mxu0
      %1304 = vmatprep.mubr.bf16.mxu0 0
      %1305 = vmatmul.mubr.bf16.gmra.mxu0 %v1215
      %v1306 = vpop.f32.mrf.mxu0
      %v1307 = vadd.f32 0.0, %v1306
      %v1308 = vpop.f32.mrf.mxu0
      %v1309 = vpop.f32.mrf.mxu0
      %v1310 = vadd.f32 0.0, %v1309
      %v1311 = vpop.f32.mrf.mxu0
      %1312 = vmatprep.mubr.bf16.mxu0 0
      %1313 = vmatmul.mubr.bf16.gmra.mxu0 %v1218
      %v1314 = vpop.f32.mrf.mxu0
      %v1315 = vadd.f32 0.0, %v1314
      %v1316 = vpop.f32.mrf.mxu0
      %v1317 = vpop.f32.mrf.mxu0
      %v1318 = vadd.f32 0.0, %v1317
      %v1319 = vpop.f32.mrf.mxu0
      %1320 = vdwg.mxu0
      %v1321 = vadd.f32 %v712, %v1259
      %v1322 = vadd.f32 %v713, %v1262
      %v1323 = vadd.f32 %v714, %v1267
      %v1324 = vadd.f32 %v715, %v1270
      %v1325 = vadd.f32 %v716, %v1275
      %v1326 = vadd.f32 %v717, %v1278
      %v1327 = vadd.f32 %v718, %v1283
      %v1328 = vadd.f32 %v719, %v1286
      %v1329 = vadd.f32 %v720, %v1291
      %v1330 = vadd.f32 %v721, %v1294
      %v1331 = vadd.f32 %v722, %v1299
      %v1332 = vadd.f32 %v723, %v1302
      %v1333 = vadd.f32 %v724, %v1307
      %v1334 = vadd.f32 %v725, %v1310
      %v1335 = vadd.f32 %v726, %v1315
      %v1336 = vadd.f32 %v727, %v1318
      %1337 = vrot.lane.b32.xlu0 %v697, 120
      %v1338 = vpop.permute.xlu0 %1337
      %1339 = vrot.lane.b32.xlu0 %v698, 120
      %v1340 = vpop.permute.xlu0 %1339
      %1341 = vrot.lane.b32.xlu0 %v699, 120
      %v1342 = vpop.permute.xlu0 %1341
      %1343 = vrot.lane.b32.xlu0 %v700, 120
      %v1344 = vpop.permute.xlu0 %1343
      %1345 = vrot.lane.b32.xlu0 %v701, 120
      %v1346 = vpop.permute.xlu0 %1345
      %1347 = vrot.lane.b32.xlu0 %v702, 120
      %v1348 = vpop.permute.xlu0 %1347
      %1349 = vrot.lane.b32.xlu0 %v703, 120
      %v1350 = vpop.permute.xlu0 %1349
      %1351 = vrot.lane.b32.xlu0 %v704, 120
      %v1352 = vpop.permute.xlu0 %1351
      %1353 = vrot.lane.b32.xlu0 %v697, 88
      %v1354 = vpop.permute.xlu0 %1353
      %1355 = vrot.lane.b32.xlu0 %v698, 88
      %v1356 = vpop.permute.xlu0 %1355
      %1357 = vrot.lane.b32.xlu0 %v699, 88
      %v1358 = vpop.permute.xlu0 %1357
      %1359 = vrot.lane.b32.xlu0 %v700, 88
      %v1360 = vpop.permute.xlu0 %1359
      %1361 = vrot.lane.b32.xlu0 %v701, 88
      %v1362 = vpop.permute.xlu0 %1361
      %1363 = vrot.lane.b32.xlu0 %v702, 88
      %v1364 = vpop.permute.xlu0 %1363
      %1365 = vrot.lane.b32.xlu0 %v703, 88
      %v1366 = vpop.permute.xlu0 %1365
      %1367 = vrot.lane.b32.xlu0 %v704, 88
      %v1368 = vpop.permute.xlu0 %1367
      %v1370 = vsel %vm752, %v1338, 0
      %v1373 = vsel %vm752, %v1340, 0
      %v1376 = vsel %vm752, %v1342, 0
      %v1379 = vsel %vm752, %v1344, 0
      %v1382 = vsel %vm752, %v1346, 0
      %v1385 = vsel %vm752, %v1348, 0
      %v1388 = vsel %vm752, %v1350, 0
      %v1391 = vsel %vm752, %v1352, 0
      %v1394 = vsel %vm752, %v1354, 0
      %v1397 = vsel %vm752, %v1356, 0
      %v1400 = vsel %vm752, %v1358, 0
      %v1403 = vsel %vm752, %v1360, 0
      %v1406 = vsel %vm752, %v1362, 0
      %v1409 = vsel %vm752, %v1364, 0
      %v1412 = vsel %vm752, %v1366, 0
      %v1415 = vsel %vm752, %v1368, 0
      %1417 = vmatprep.subr.bf16.mxu0 0
      %1418 = vmatpush1.bf16.xpose.msra.mxu0 %v1415
      %1419 = vmatprep.subr.bf16.mxu0 0
      %1420 = vmatpush1.bf16.xpose.msra.mxu0 %v1412
      %1421 = vmatprep.subr.bf16.mxu0 0
      %1422 = vmatpush1.bf16.xpose.msra.mxu0 %v1409
      %1423 = vmatprep.subr.bf16.mxu0 0
      %1424 = vmatpush1.bf16.xpose.msra.mxu0 %v1406
      %1425 = vmatprep.subr.bf16.mxu0 0
      %1426 = vmatpush1.bf16.xpose.msra.mxu0 %v1403
      %1427 = vmatprep.subr.bf16.mxu0 0
      %1428 = vmatpush1.bf16.xpose.msra.mxu0 %v1400
      %1429 = vmatprep.subr.bf16.mxu0 0
      %1430 = vmatpush1.bf16.xpose.msra.mxu0 %v1397
      %1431 = vmatprep.subr.bf16.mxu0 0
      %1432 = vmatpush1.bf16.xpose.msra.mxu0 %v1394
      %1433 = vmatprep.subr.bf16.mxu0 0
      %1434 = vmatpush2.bf16.xpose.msra.mxu0 0
      %1435 = vmatprep.subr.bf16.mxu0 0
      %1436 = vmatpush2.bf16.xpose.msra.mxu0 0
      %1437 = vmatprep.subr.bf16.mxu0 0
      %1438 = vmatpush2.bf16.xpose.msra.mxu0 0
      %1439 = vmatprep.subr.bf16.mxu0 0
      %1440 = vmatpush2.bf16.xpose.msra.mxu0 0
      %1441 = vmatprep.subr.bf16.mxu0 0
      %1442 = vmatpush2.bf16.xpose.msra.mxu0 0
      %1443 = vmatprep.subr.bf16.mxu0 0
      %1444 = vmatpush2.bf16.xpose.msra.mxu0 0
      %1445 = vmatprep.subr.bf16.mxu0 0
      %1446 = vmatpush2.bf16.xpose.msra.mxu0 0
      %1447 = vmatprep.subr.bf16.mxu0 0
      %1448 = vmatpush2.bf16.xpose.msra.mxu0 0
      %1449 = vmatprep.mubr.bf16.mxu0 0
      %1450 = vmatmul.mubr.bf16.gmra.mxu0 %v1370
      %v1451 = vpop.f32.mrf.mxu0
      %v1452 = vadd.f32 0.0, %v1451
      %v1453 = vpop.f32.mrf.mxu0
      %v1454 = vpop.f32.mrf.mxu0
      %v1455 = vadd.f32 0.0, %v1454
      %v1456 = vpop.f32.mrf.mxu0
      %1457 = vmatprep.mubr.bf16.mxu0 0
      %1458 = vmatmul.mubr.bf16.gmra.mxu0 %v1373
      %v1459 = vpop.f32.mrf.mxu0
      %v1460 = vadd.f32 0.0, %v1459
      %v1461 = vpop.f32.mrf.mxu0
      %v1462 = vpop.f32.mrf.mxu0
      %v1463 = vadd.f32 0.0, %v1462
      %v1464 = vpop.f32.mrf.mxu0
      %1465 = vmatprep.mubr.bf16.mxu0 0
      %1466 = vmatmul.mubr.bf16.gmra.mxu0 %v1376
      %v1467 = vpop.f32.mrf.mxu0
      %v1468 = vadd.f32 0.0, %v1467
      %v1469 = vpop.f32.mrf.mxu0
      %v1470 = vpop.f32.mrf.mxu0
      %v1471 = vadd.f32 0.0, %v1470
      %v1472 = vpop.f32.mrf.mxu0
      %1473 = vmatprep.mubr.bf16.mxu0 0
      %1474 = vmatmul.mubr.bf16.gmra.mxu0 %v1379
      %v1475 = vpop.f32.mrf.mxu0
      %v1476 = vadd.f32 0.0, %v1475
      %v1477 = vpop.f32.mrf.mxu0
      %v1478 = vpop.f32.mrf.mxu0
      %v1479 = vadd.f32 0.0, %v1478
      %v1480 = vpop.f32.mrf.mxu0
      %1481 = vmatprep.mubr.bf16.mxu0 0
      %1482 = vmatmul.mubr.bf16.gmra.mxu0 %v1382
      %v1483 = vpop.f32.mrf.mxu0
      %v1484 = vadd.f32 0.0, %v1483
      %v1485 = vpop.f32.mrf.mxu0
      %v1486 = vpop.f32.mrf.mxu0
      %v1487 = vadd.f32 0.0, %v1486
      %v1488 = vpop.f32.mrf.mxu0
      %1489 = vmatprep.mubr.bf16.mxu0 0
      %1490 = vmatmul.mubr.bf16.gmra.mxu0 %v1385
      %v1491 = vpop.f32.mrf.mxu0
      %v1492 = vadd.f32 0.0, %v1491
      %v1493 = vpop.f32.mrf.mxu0
      %v1494 = vpop.f32.mrf.mxu0
      %v1495 = vadd.f32 0.0, %v1494
      %v1496 = vpop.f32.mrf.mxu0
      %1497 = vmatprep.mubr.bf16.mxu0 0
      %1498 = vmatmul.mubr.bf16.gmra.mxu0 %v1388
      %v1499 = vpop.f32.mrf.mxu0
      %v1500 = vadd.f32 0.0, %v1499
      %v1501 = vpop.f32.mrf.mxu0
      %v1502 = vpop.f32.mrf.mxu0
      %v1503 = vadd.f32 0.0, %v1502
      %v1504 = vpop.f32.mrf.mxu0
      %1505 = vmatprep.mubr.bf16.mxu0 0
      %1506 = vmatmul.mubr.bf16.gmra.mxu0 %v1391
      %v1507 = vpop.f32.mrf.mxu0
      %v1508 = vadd.f32 0.0, %v1507
      %v1509 = vpop.f32.mrf.mxu0
      %v1510 = vpop.f32.mrf.mxu0
      %v1511 = vadd.f32 0.0, %v1510
      %v1512 = vpop.f32.mrf.mxu0
      %1513 = vdwg.mxu0
      %v1514 = vmax.f32 %v1452, -5.0
      %v1515 = vmax.f32 %v1455, -5.0
      %v1516 = vmax.f32 %v1460, -5.0
      %v1517 = vmax.f32 %v1463, -5.0
      %v1518 = vmax.f32 %v1468, -5.0
      %v1519 = vmax.f32 %v1471, -5.0
      %v1520 = vmax.f32 %v1476, -5.0
      %v1521 = vmax.f32 %v1479, -5.0
      %v1522 = vmax.f32 %v1484, -5.0
      %v1523 = vmax.f32 %v1487, -5.0
      %v1524 = vmax.f32 %v1492, -5.0
      %v1525 = vmax.f32 %v1495, -5.0
      %v1526 = vmax.f32 %v1500, -5.0
      %v1527 = vmax.f32 %v1503, -5.0
      %v1528 = vmax.f32 %v1508, -5.0
      %v1529 = vmax.f32 %v1511, -5.0
      %v1530 = vmin.f32 %v1514, 5.0
      %v1531 = vmin.f32 %v1515, 5.0
      %v1532 = vmin.f32 %v1516, 5.0
      %v1533 = vmin.f32 %v1517, 5.0
      %v1534 = vmin.f32 %v1518, 5.0
      %v1535 = vmin.f32 %v1519, 5.0
      %v1536 = vmin.f32 %v1520, 5.0
      %v1537 = vmin.f32 %v1521, 5.0
      %v1538 = vmin.f32 %v1522, 5.0
      %v1539 = vmin.f32 %v1523, 5.0
      %v1540 = vmin.f32 %v1524, 5.0
      %v1541 = vmin.f32 %v1525, 5.0
      %v1542 = vmin.f32 %v1526, 5.0
      %v1543 = vmin.f32 %v1527, 5.0
      %v1544 = vmin.f32 %v1528, 5.0
      %v1545 = vmin.f32 %v1529, 5.0
      %v1546 = vmul.f32 %v1530, 1.442695
      %v1547 = vpow.pop %v1546
      %v1548 = vmul.f32 %v1531, 1.442695
      %v1549 = vpow.pop %v1548
      %v1550 = vmul.f32 %v1532, 1.442695
      %v1551 = vpow.pop %v1550
      %v1552 = vmul.f32 %v1533, 1.442695
      %v1553 = vpow.pop %v1552
      %v1554 = vmul.f32 %v1534, 1.442695
      %v1555 = vpow.pop %v1554
      %v1556 = vmul.f32 %v1535, 1.442695
      %v1557 = vpow.pop %v1556
      %v1558 = vmul.f32 %v1536, 1.442695
      %v1559 = vpow.pop %v1558
      %v1560 = vmul.f32 %v1537, 1.442695
      %v1561 = vpow.pop %v1560
      %v1562 = vmul.f32 %v1538, 1.442695
      %v1563 = vpow.pop %v1562
      %v1564 = vmul.f32 %v1539, 1.442695
      %v1565 = vpow.pop %v1564
      %v1566 = vmul.f32 %v1540, 1.442695
      %v1567 = vpow.pop %v1566
      %v1568 = vmul.f32 %v1541, 1.442695
      %v1569 = vpow.pop %v1568
      %v1570 = vmul.f32 %v1542, 1.442695
      %v1571 = vpow.pop %v1570
      %v1572 = vmul.f32 %v1543, 1.442695
      %v1573 = vpow.pop %v1572
      %v1574 = vmul.f32 %v1544, 1.442695
      %v1575 = vpow.pop %v1574
      %v1576 = vmul.f32 %v1545, 1.442695
      %v1577 = vpow.pop %v1576
      %v1578 = vmul.f32 %v1547, %v528
      %v1579 = vmul.f32 %v1549, %v529
      %v1580 = vmul.f32 %v1551, %v530
      %v1581 = vmul.f32 %v1553, %v531
      %v1582 = vmul.f32 %v1555, %v532
      %v1583 = vmul.f32 %v1557, %v533
      %v1584 = vmul.f32 %v1559, %v534
      %v1585 = vmul.f32 %v1561, %v535
      %v1586 = vmul.f32 %v1563, %v536
      %v1587 = vmul.f32 %v1565, %v537
      %v1588 = vmul.f32 %v1567, %v538
      %v1589 = vmul.f32 %v1569, %v539
      %v1590 = vmul.f32 %v1571, %v540
      %v1591 = vmul.f32 %v1573, %v541
      %v1592 = vmul.f32 %v1575, %v542
      %v1593 = vmul.f32 %v1577, %v543
      %1594 = vadd.xlane.f32.xlu0 %v1578
      %v1595 = vpop.xlane.xlu0 %1594
      %1596 = vadd.xlane.f32.xlu0 %v1579
      %v1597 = vpop.xlane.xlu0 %1596
      %1598 = vadd.xlane.f32.xlu0 %v1580
      %v1599 = vpop.xlane.xlu0 %1598
      %1600 = vadd.xlane.f32.xlu0 %v1581
      %v1601 = vpop.xlane.xlu0 %1600
      %1602 = vadd.xlane.f32.xlu0 %v1582
      %v1603 = vpop.xlane.xlu0 %1602
      %1604 = vadd.xlane.f32.xlu0 %v1583
      %v1605 = vpop.xlane.xlu0 %1604
      %1606 = vadd.xlane.f32.xlu0 %v1584
      %v1607 = vpop.xlane.xlu0 %1606
      %1608 = vadd.xlane.f32.xlu0 %v1585
      %v1609 = vpop.xlane.xlu0 %1608
      %1610 = vadd.xlane.f32.xlu0 %v1586
      %v1611 = vpop.xlane.xlu0 %1610
      %1612 = vadd.xlane.f32.xlu0 %v1587
      %v1613 = vpop.xlane.xlu0 %1612
      %1614 = vadd.xlane.f32.xlu0 %v1588
      %v1615 = vpop.xlane.xlu0 %1614
      %1616 = vadd.xlane.f32.xlu0 %v1589
      %v1617 = vpop.xlane.xlu0 %1616
      %1618 = vadd.xlane.f32.xlu0 %v1590
      %v1619 = vpop.xlane.xlu0 %1618
      %1620 = vadd.xlane.f32.xlu0 %v1591
      %v1621 = vpop.xlane.xlu0 %1620
      %1622 = vadd.xlane.f32.xlu0 %v1592
      %v1623 = vpop.xlane.xlu0 %1622
      %1624 = vadd.xlane.f32.xlu0 %v1593
      %v1625 = vpop.xlane.xlu0 %1624
      %v1626 = vpack.c.bf16 %v1579, %v1578
      %v1627 = vpack.c.bf16 %v1581, %v1580
      %v1628 = vpack.c.bf16 %v1583, %v1582
      %v1629 = vpack.c.bf16 %v1585, %v1584
      %v1630 = vpack.c.bf16 %v1587, %v1586
      %v1631 = vpack.c.bf16 %v1589, %v1588
      %v1632 = vpack.c.bf16 %v1591, %v1590
      %v1633 = vpack.c.bf16 %v1593, %v1592
      %1634 = vrot.lane.b32.xlu0 %v697, 56
      %v1635 = vpop.permute.xlu0 %1634
      %1636 = vrot.lane.b32.xlu0 %v698, 56
      %v1637 = vpop.permute.xlu0 %1636
      %1638 = vrot.lane.b32.xlu0 %v699, 56
      %v1639 = vpop.permute.xlu0 %1638
      %1640 = vrot.lane.b32.xlu0 %v700, 56
      %v1641 = vpop.permute.xlu0 %1640
      %1642 = vrot.lane.b32.xlu0 %v701, 56
      %v1643 = vpop.permute.xlu0 %1642
      %1644 = vrot.lane.b32.xlu0 %v702, 56
      %v1645 = vpop.permute.xlu0 %1644
      %1646 = vrot.lane.b32.xlu0 %v703, 56
      %v1647 = vpop.permute.xlu0 %1646
      %1648 = vrot.lane.b32.xlu0 %v704, 56
      %v1649 = vpop.permute.xlu0 %1648
      %1658 = vmatprep.subr.bf16.mxu0 0
      %1659 = vmatpush1.bf16.msra.mxu0 %v1649
      %1660 = vmatprep.subr.bf16.mxu0 0
      %1661 = vmatpush1.bf16.msra.mxu0 %v1647
      %1662 = vmatprep.subr.bf16.mxu0 0
      %1663 = vmatpush1.bf16.msra.mxu0 %v1645
      %1664 = vmatprep.subr.bf16.mxu0 0
      %1665 = vmatpush1.bf16.msra.mxu0 %v1643
      %1666 = vmatprep.subr.bf16.mxu0 0
      %1667 = vmatpush1.bf16.msra.mxu0 %v1641
      %1668 = vmatprep.subr.bf16.mxu0 0
      %1669 = vmatpush1.bf16.msra.mxu0 %v1639
      %1670 = vmatprep.subr.bf16.mxu0 0
      %1671 = vmatpush1.bf16.msra.mxu0 %v1637
      %1672 = vmatprep.subr.bf16.mxu0 0
      %1673 = vmatpush1.bf16.msra.mxu0 %v1635
      %1674 = vmatprep.subr.bf16.mxu0 0
      %1675 = vmatpush2.bf16.msra.mxu0 0
      %1676 = vmatprep.subr.bf16.mxu0 0
      %1677 = vmatpush2.bf16.msra.mxu0 0
      %1678 = vmatprep.subr.bf16.mxu0 0
      %1679 = vmatpush2.bf16.msra.mxu0 0
      %1680 = vmatprep.subr.bf16.mxu0 0
      %1681 = vmatpush2.bf16.msra.mxu0 0
      %1682 = vmatprep.subr.bf16.mxu0 0
      %1683 = vmatpush2.bf16.msra.mxu0 0
      %1684 = vmatprep.subr.bf16.mxu0 0
      %1685 = vmatpush2.bf16.msra.mxu0 0
      %1686 = vmatprep.subr.bf16.mxu0 0
      %1687 = vmatpush2.bf16.msra.mxu0 0
      %1688 = vmatprep.subr.bf16.mxu0 0
      %1689 = vmatpush2.bf16.msra.mxu0 0
      %1690 = vmatprep.mubr.bf16.mxu0 0
      %1691 = vmatmul.mubr.bf16.gmra.mxu0 %v1626
      %v1692 = vpop.f32.mrf.mxu0
      %v1693 = vadd.f32 0.0, %v1692
      %v1694 = vpop.f32.mrf.mxu0
      %v1695 = vpop.f32.mrf.mxu0
      %v1696 = vadd.f32 0.0, %v1695
      %v1697 = vpop.f32.mrf.mxu0
      %1698 = vmatprep.mubr.bf16.mxu0 0
      %1699 = vmatmul.mubr.bf16.gmra.mxu0 %v1627
      %v1700 = vpop.f32.mrf.mxu0
      %v1701 = vadd.f32 0.0, %v1700
      %v1702 = vpop.f32.mrf.mxu0
      %v1703 = vpop.f32.mrf.mxu0
      %v1704 = vadd.f32 0.0, %v1703
      %v1705 = vpop.f32.mrf.mxu0
      %1706 = vmatprep.mubr.bf16.mxu0 0
      %1707 = vmatmul.mubr.bf16.gmra.mxu0 %v1628
      %v1708 = vpop.f32.mrf.mxu0
      %v1709 = vadd.f32 0.0, %v1708
      %v1710 = vpop.f32.mrf.mxu0
      %v1711 = vpop.f32.mrf.mxu0
      %v1712 = vadd.f32 0.0, %v1711
      %v1713 = vpop.f32.mrf.mxu0
      %1714 = vmatprep.mubr.bf16.mxu0 0
      %1715 = vmatmul.mubr.bf16.gmra.mxu0 %v1629
      %v1716 = vpop.f32.mrf.mxu0
      %v1717 = vadd.f32 0.0, %v1716
      %v1718 = vpop.f32.mrf.mxu0
      %v1719 = vpop.f32.mrf.mxu0
      %v1720 = vadd.f32 0.0, %v1719
      %v1721 = vpop.f32.mrf.mxu0
      %1722 = vmatprep.mubr.bf16.mxu0 0
      %1723 = vmatmul.mubr.bf16.gmra.mxu0 %v1630
      %v1724 = vpop.f32.mrf.mxu0
      %v1725 = vadd.f32 0.0, %v1724
      %v1726 = vpop.f32.mrf.mxu0
      %v1727 = vpop.f32.mrf.mxu0
      %v1728 = vadd.f32 0.0, %v1727
      %v1729 = vpop.f32.mrf.mxu0
      %1730 = vmatprep.mubr.bf16.mxu0 0
      %1731 = vmatmul.mubr.bf16.gmra.mxu0 %v1631
      %v1732 = vpop.f32.mrf.mxu0
      %v1733 = vadd.f32 0.0, %v1732
      %v1734 = vpop.f32.mrf.mxu0
      %v1735 = vpop.f32.mrf.mxu0
      %v1736 = vadd.f32 0.0, %v1735
      %v1737 = vpop.f32.mrf.mxu0
      %1738 = vmatprep.mubr.bf16.mxu0 0
      %1739 = vmatmul.mubr.bf16.gmra.mxu0 %v1632
      %v1740 = vpop.f32.mrf.mxu0
      %v1741 = vadd.f32 0.0, %v1740
      %v1742 = vpop.f32.mrf.mxu0
      %v1743 = vpop.f32.mrf.mxu0
      %v1744 = vadd.f32 0.0, %v1743
      %v1745 = vpop.f32.mrf.mxu0
      %1746 = vmatprep.mubr.bf16.mxu0 0
      %1747 = vmatmul.mubr.bf16.gmra.mxu0 %v1633
      %v1748 = vpop.f32.mrf.mxu0
      %v1749 = vadd.f32 0.0, %v1748
      %v1750 = vpop.f32.mrf.mxu0
      %v1751 = vpop.f32.mrf.mxu0
      %v1752 = vadd.f32 0.0, %v1751
      %v1753 = vpop.f32.mrf.mxu0
      %1754 = vdwg.mxu0
      %v1755 = vmax.f32 %v1595, 1e-30
      %v1756 = vmax.f32 %v1597, 1e-30
      %v1757 = vmax.f32 %v1599, 1e-30
      %v1758 = vmax.f32 %v1601, 1e-30
      %v1759 = vmax.f32 %v1603, 1e-30
      %v1760 = vmax.f32 %v1605, 1e-30
      %v1761 = vmax.f32 %v1607, 1e-30
      %v1762 = vmax.f32 %v1609, 1e-30
      %v1763 = vmax.f32 %v1611, 1e-30
      %v1764 = vmax.f32 %v1613, 1e-30
      %v1765 = vmax.f32 %v1615, 1e-30
      %v1766 = vmax.f32 %v1617, 1e-30
      %v1767 = vmax.f32 %v1619, 1e-30
      %v1768 = vmax.f32 %v1621, 1e-30
      %v1769 = vmax.f32 %v1623, 1e-30
      %v1770 = vmax.f32 %v1625, 1e-30
      %v1771 = vrcp.pop %v1755
      %v1772 = vrcp.pop %v1756
      %v1773 = vrcp.pop %v1757
      %v1774 = vrcp.pop %v1758
      %v1775 = vrcp.pop %v1759
      %v1776 = vrcp.pop %v1760
      %v1777 = vrcp.pop %v1761
      %v1778 = vrcp.pop %v1762
      %v1779 = vrcp.pop %v1763
      %v1780 = vrcp.pop %v1764
      %v1781 = vrcp.pop %v1765
      %v1782 = vrcp.pop %v1766
      %v1783 = vrcp.pop %v1767
      %v1784 = vrcp.pop %v1768
      %v1785 = vrcp.pop %v1769
      %v1786 = vrcp.pop %v1770
      %v1787 = vmul.f32 %v1693, %v1771
      %v1788 = vmul.f32 %v1696, %v1772
      %v1789 = vmul.f32 %v1701, %v1773
      %v1790 = vmul.f32 %v1704, %v1774
      %v1791 = vmul.f32 %v1709, %v1775
      %v1792 = vmul.f32 %v1712, %v1776
      %v1793 = vmul.f32 %v1717, %v1777
      %v1794 = vmul.f32 %v1720, %v1778
      %v1795 = vmul.f32 %v1725, %v1779
      %v1796 = vmul.f32 %v1728, %v1780
      %v1797 = vmul.f32 %v1733, %v1781
      %v1798 = vmul.f32 %v1736, %v1782
      %v1799 = vmul.f32 %v1741, %v1783
      %v1800 = vmul.f32 %v1744, %v1784
      %v1801 = vmul.f32 %v1749, %v1785
      %v1802 = vmul.f32 %v1752, %v1786
      %v1803 = vpack.c.bf16 %v1788, %v1787
      %v1804 = vpack.c.bf16 %v1790, %v1789
      %v1805 = vpack.c.bf16 %v1792, %v1791
      %v1806 = vpack.c.bf16 %v1794, %v1793
      %v1807 = vpack.c.bf16 %v1796, %v1795
      %v1808 = vpack.c.bf16 %v1798, %v1797
      %v1809 = vpack.c.bf16 %v1800, %v1799
      %v1810 = vpack.c.bf16 %v1802, %v1801
      %s1811 = scalar_lea.vmem %s4, 4
      %v1812 = vld [vmem:[%s1811] sm:$0xf]
      %v1814 = vsel %vm752, %v1803, 0
      %v1817 = vsel %vm752, %v1804, 0
      %v1820 = vsel %vm752, %v1805, 0
      %v1823 = vsel %vm752, %v1806, 0
      %v1826 = vsel %vm752, %v1807, 0
      %v1829 = vsel %vm752, %v1808, 0
      %v1832 = vsel %vm752, %v1809, 0
      %v1835 = vsel %vm752, %v1810, 0
      %v1838 = vsel %vm1220, %v1812, 0
      %1840 = vmatprep.subr.bf16.mxu0 0
      %1841 = vmatpush1.bf16.msra.mxu0 0
      %1842 = vmatprep.subr.bf16.mxu0 0
      %1843 = vmatpush1.bf16.msra.mxu0 0
      %1844 = vmatprep.subr.bf16.mxu0 0
      %1845 = vmatpush1.bf16.msra.mxu0 0
      %1846 = vmatprep.subr.bf16.mxu0 0
      %1847 = vmatpush1.bf16.msra.mxu0 0
      %1848 = vmatprep.subr.bf16.mxu0 0
      %1849 = vmatpush1.bf16.msra.mxu0 0
      %1850 = vmatprep.subr.bf16.mxu0 0
      %1851 = vmatpush1.bf16.msra.mxu0 0
      %1852 = vmatprep.subr.bf16.mxu0 0
      %1853 = vmatpush1.bf16.msra.mxu0 0
      %1854 = vmatprep.subr.bf16.mxu0 0
      %1855 = vmatpush1.bf16.msra.mxu0 %v1838
      %1856 = vmatprep.subr.bf16.mxu0 0
      %1857 = vmatpush2.bf16.msra.mxu0 0
      %1858 = vmatprep.subr.bf16.mxu0 0
      %1859 = vmatpush2.bf16.msra.mxu0 0
      %1860 = vmatprep.subr.bf16.mxu0 0
      %1861 = vmatpush2.bf16.msra.mxu0 0
      %1862 = vmatprep.subr.bf16.mxu0 0
      %1863 = vmatpush2.bf16.msra.mxu0 0
      %1864 = vmatprep.subr.bf16.mxu0 0
      %1865 = vmatpush2.bf16.msra.mxu0 0
      %1866 = vmatprep.subr.bf16.mxu0 0
      %1867 = vmatpush2.bf16.msra.mxu0 0
      %1868 = vmatprep.subr.bf16.mxu0 0
      %1869 = vmatpush2.bf16.msra.mxu0 0
      %1870 = vmatprep.subr.bf16.mxu0 0
      %1871 = vmatpush2.bf16.msra.mxu0 0
      %1872 = vmatprep.mubr.bf16.mxu0 0
      %1873 = vmatmul.mubr.bf16.gmra.mxu0 %v1814
      %v1874 = vpop.f32.mrf.mxu0
      %v1875 = vadd.f32 0.0, %v1874
      %v1876 = vpop.f32.mrf.mxu0
      %v1877 = vpop.f32.mrf.mxu0
      %v1878 = vadd.f32 0.0, %v1877
      %v1879 = vpop.f32.mrf.mxu0
      %1880 = vmatprep.mubr.bf16.mxu0 0
      %1881 = vmatmul.mubr.bf16.gmra.mxu0 %v1817
      %v1882 = vpop.f32.mrf.mxu0
      %v1883 = vadd.f32 0.0, %v1882
      %v1884 = vpop.f32.mrf.mxu0
      %v1885 = vpop.f32.mrf.mxu0
      %v1886 = vadd.f32 0.0, %v1885
      %v1887 = vpop.f32.mrf.mxu0
      %1888 = vmatprep.mubr.bf16.mxu0 0
      %1889 = vmatmul.mubr.bf16.gmra.mxu0 %v1820
      %v1890 = vpop.f32.mrf.mxu0
      %v1891 = vadd.f32 0.0, %v1890
      %v1892 = vpop.f32.mrf.mxu0
      %v1893 = vpop.f32.mrf.mxu0
      %v1894 = vadd.f32 0.0, %v1893
      %v1895 = vpop.f32.mrf.mxu0
      %1896 = vmatprep.mubr.bf16.mxu0 0
      %1897 = vmatmul.mubr.bf16.gmra.mxu0 %v1823
      %v1898 = vpop.f32.mrf.mxu0
      %v1899 = vadd.f32 0.0, %v1898
      %v1900 = vpop.f32.mrf.mxu0
      %v1901 = vpop.f32.mrf.mxu0
      %v1902 = vadd.f32 0.0, %v1901
      %v1903 = vpop.f32.mrf.mxu0
      %1904 = vmatprep.mubr.bf16.mxu0 0
      %1905 = vmatmul.mubr.bf16.gmra.mxu0 %v1826
      %v1906 = vpop.f32.mrf.mxu0
      %v1907 = vadd.f32 0.0, %v1906
      %v1908 = vpop.f32.mrf.mxu0
      %v1909 = vpop.f32.mrf.mxu0
      %v1910 = vadd.f32 0.0, %v1909
      %v1911 = vpop.f32.mrf.mxu0
      %1912 = vmatprep.mubr.bf16.mxu0 0
      %1913 = vmatmul.mubr.bf16.gmra.mxu0 %v1829
      %v1914 = vpop.f32.mrf.mxu0
      %v1915 = vadd.f32 0.0, %v1914
      %v1916 = vpop.f32.mrf.mxu0
      %v1917 = vpop.f32.mrf.mxu0
      %v1918 = vadd.f32 0.0, %v1917
      %v1919 = vpop.f32.mrf.mxu0
      %1920 = vmatprep.mubr.bf16.mxu0 0
      %1921 = vmatmul.mubr.bf16.gmra.mxu0 %v1832
      %v1922 = vpop.f32.mrf.mxu0
      %v1923 = vadd.f32 0.0, %v1922
      %v1924 = vpop.f32.mrf.mxu0
      %v1925 = vpop.f32.mrf.mxu0
      %v1926 = vadd.f32 0.0, %v1925
      %v1927 = vpop.f32.mrf.mxu0
      %1928 = vmatprep.mubr.bf16.mxu0 0
      %1929 = vmatmul.mubr.bf16.gmra.mxu0 %v1835
      %v1930 = vpop.f32.mrf.mxu0
      %v1931 = vadd.f32 0.0, %v1930
      %v1932 = vpop.f32.mrf.mxu0
      %v1933 = vpop.f32.mrf.mxu0
      %v1934 = vadd.f32 0.0, %v1933
      %v1935 = vpop.f32.mrf.mxu0
      %1936 = vdwg.mxu0
      %v1937 = vadd.f32 %v1321, %v1875
      %v1938 = vadd.f32 %v1322, %v1878
      %v1939 = vadd.f32 %v1323, %v1883
      %v1940 = vadd.f32 %v1324, %v1886
      %v1941 = vadd.f32 %v1325, %v1891
      %v1942 = vadd.f32 %v1326, %v1894
      %v1943 = vadd.f32 %v1327, %v1899
      %v1944 = vadd.f32 %v1328, %v1902
      %v1945 = vadd.f32 %v1329, %v1907
      %v1946 = vadd.f32 %v1330, %v1910
      %v1947 = vadd.f32 %v1331, %v1915
      %v1948 = vadd.f32 %v1332, %v1918
      %v1949 = vadd.f32 %v1333, %v1923
      %v1950 = vadd.f32 %v1334, %v1926
      %v1951 = vadd.f32 %v1335, %v1931
      %v1952 = vadd.f32 %v1336, %v1934
      %1953 = vrot.lane.b32.xlu0 %v697, 112
      %v1954 = vpop.permute.xlu0 %1953
      %1955 = vrot.lane.b32.xlu0 %v698, 112
      %v1956 = vpop.permute.xlu0 %1955
      %1957 = vrot.lane.b32.xlu0 %v699, 112
      %v1958 = vpop.permute.xlu0 %1957
      %1959 = vrot.lane.b32.xlu0 %v700, 112
      %v1960 = vpop.permute.xlu0 %1959
      %1961 = vrot.lane.b32.xlu0 %v701, 112
      %v1962 = vpop.permute.xlu0 %1961
      %1963 = vrot.lane.b32.xlu0 %v702, 112
      %v1964 = vpop.permute.xlu0 %1963
      %1965 = vrot.lane.b32.xlu0 %v703, 112
      %v1966 = vpop.permute.xlu0 %1965
      %1967 = vrot.lane.b32.xlu0 %v704, 112
      %v1968 = vpop.permute.xlu0 %1967
      %1969 = vrot.lane.b32.xlu0 %v697, 80
      %v1970 = vpop.permute.xlu0 %1969
      %1971 = vrot.lane.b32.xlu0 %v698, 80
      %v1972 = vpop.permute.xlu0 %1971
      %1973 = vrot.lane.b32.xlu0 %v699, 80
      %v1974 = vpop.permute.xlu0 %1973
      %1975 = vrot.lane.b32.xlu0 %v700, 80
      %v1976 = vpop.permute.xlu0 %1975
      %1977 = vrot.lane.b32.xlu0 %v701, 80
      %v1978 = vpop.permute.xlu0 %1977
      %1979 = vrot.lane.b32.xlu0 %v702, 80
      %v1980 = vpop.permute.xlu0 %1979
      %1981 = vrot.lane.b32.xlu0 %v703, 80
      %v1982 = vpop.permute.xlu0 %1981
      %1983 = vrot.lane.b32.xlu0 %v704, 80
      %v1984 = vpop.permute.xlu0 %1983
      %v1986 = vsel %vm752, %v1954, 0
      %v1989 = vsel %vm752, %v1956, 0
      %v1992 = vsel %vm752, %v1958, 0
      %v1995 = vsel %vm752, %v1960, 0
      %v1998 = vsel %vm752, %v1962, 0
      %v2001 = vsel %vm752, %v1964, 0
      %v2004 = vsel %vm752, %v1966, 0
      %v2007 = vsel %vm752, %v1968, 0
      %v2010 = vsel %vm752, %v1970, 0
      %v2013 = vsel %vm752, %v1972, 0
      %v2016 = vsel %vm752, %v1974, 0
      %v2019 = vsel %vm752, %v1976, 0
      %v2022 = vsel %vm752, %v1978, 0
      %v2025 = vsel %vm752, %v1980, 0
      %v2028 = vsel %vm752, %v1982, 0
      %v2031 = vsel %vm752, %v1984, 0
      %2033 = vmatprep.subr.bf16.mxu0 0
      %2034 = vmatpush1.bf16.xpose.msra.mxu0 %v2031
      %2035 = vmatprep.subr.bf16.mxu0 0
      %2036 = vmatpush1.bf16.xpose.msra.mxu0 %v2028
      %2037 = vmatprep.subr.bf16.mxu0 0
      %2038 = vmatpush1.bf16.xpose.msra.mxu0 %v2025
      %2039 = vmatprep.subr.bf16.mxu0 0
      %2040 = vmatpush1.bf16.xpose.msra.mxu0 %v2022
      %2041 = vmatprep.subr.bf16.mxu0 0
      %2042 = vmatpush1.bf16.xpose.msra.mxu0 %v2019
      %2043 = vmatprep.subr.bf16.mxu0 0
      %2044 = vmatpush1.bf16.xpose.msra.mxu0 %v2016
      %2045 = vmatprep.subr.bf16.mxu0 0
      %2046 = vmatpush1.bf16.xpose.msra.mxu0 %v2013
      %2047 = vmatprep.subr.bf16.mxu0 0
      %2048 = vmatpush1.bf16.xpose.msra.mxu0 %v2010
      %2049 = vmatprep.subr.bf16.mxu0 0
      %2050 = vmatpush2.bf16.xpose.msra.mxu0 0
      %2051 = vmatprep.subr.bf16.mxu0 0
      %2052 = vmatpush2.bf16.xpose.msra.mxu0 0
      %2053 = vmatprep.subr.bf16.mxu0 0
      %2054 = vmatpush2.bf16.xpose.msra.mxu0 0
      %2055 = vmatprep.subr.bf16.mxu0 0
      %2056 = vmatpush2.bf16.xpose.msra.mxu0 0
      %2057 = vmatprep.subr.bf16.mxu0 0
      %2058 = vmatpush2.bf16.xpose.msra.mxu0 0
      %2059 = vmatprep.subr.bf16.mxu0 0
      %2060 = vmatpush2.bf16.xpose.msra.mxu0 0
      %2061 = vmatprep.subr.bf16.mxu0 0
      %2062 = vmatpush2.bf16.xpose.msra.mxu0 0
      %2063 = vmatprep.subr.bf16.mxu0 0
      %2064 = vmatpush2.bf16.xpose.msra.mxu0 0
      %2065 = vmatprep.mubr.bf16.mxu0 0
      %2066 = vmatmul.mubr.bf16.gmra.mxu0 %v1986
      %v2067 = vpop.f32.mrf.mxu0
      %v2068 = vadd.f32 0.0, %v2067
      %v2069 = vpop.f32.mrf.mxu0
      %v2070 = vpop.f32.mrf.mxu0
      %v2071 = vadd.f32 0.0, %v2070
      %v2072 = vpop.f32.mrf.mxu0
      %2073 = vmatprep.mubr.bf16.mxu0 0
      %2074 = vmatmul.mubr.bf16.gmra.mxu0 %v1989
      %v2075 = vpop.f32.mrf.mxu0
      %v2076 = vadd.f32 0.0, %v2075
      %v2077 = vpop.f32.mrf.mxu0
      %v2078 = vpop.f32.mrf.mxu0
      %v2079 = vadd.f32 0.0, %v2078
      %v2080 = vpop.f32.mrf.mxu0
      %2081 = vmatprep.mubr.bf16.mxu0 0
      %2082 = vmatmul.mubr.bf16.gmra.mxu0 %v1992
      %v2083 = vpop.f32.mrf.mxu0
      %v2084 = vadd.f32 0.0, %v2083
      %v2085 = vpop.f32.mrf.mxu0
      %v2086 = vpop.f32.mrf.mxu0
      %v2087 = vadd.f32 0.0, %v2086
      %v2088 = vpop.f32.mrf.mxu0
      %2089 = vmatprep.mubr.bf16.mxu0 0
      %2090 = vmatmul.mubr.bf16.gmra.mxu0 %v1995
      %v2091 = vpop.f32.mrf.mxu0
      %v2092 = vadd.f32 0.0, %v2091
      %v2093 = vpop.f32.mrf.mxu0
      %v2094 = vpop.f32.mrf.mxu0
      %v2095 = vadd.f32 0.0, %v2094
      %v2096 = vpop.f32.mrf.mxu0
      %2097 = vmatprep.mubr.bf16.mxu0 0
      %2098 = vmatmul.mubr.bf16.gmra.mxu0 %v1998
      %v2099 = vpop.f32.mrf.mxu0
      %v2100 = vadd.f32 0.0, %v2099
      %v2101 = vpop.f32.mrf.mxu0
      %v2102 = vpop.f32.mrf.mxu0
      %v2103 = vadd.f32 0.0, %v2102
      %v2104 = vpop.f32.mrf.mxu0
      %2105 = vmatprep.mubr.bf16.mxu0 0
      %2106 = vmatmul.mubr.bf16.gmra.mxu0 %v2001
      %v2107 = vpop.f32.mrf.mxu0
      %v2108 = vadd.f32 0.0, %v2107
      %v2109 = vpop.f32.mrf.mxu0
      %v2110 = vpop.f32.mrf.mxu0
      %v2111 = vadd.f32 0.0, %v2110
      %v2112 = vpop.f32.mrf.mxu0
      %2113 = vmatprep.mubr.bf16.mxu0 0
      %2114 = vmatmul.mubr.bf16.gmra.mxu0 %v2004
      %v2115 = vpop.f32.mrf.mxu0
      %v2116 = vadd.f32 0.0, %v2115
      %v2117 = vpop.f32.mrf.mxu0
      %v2118 = vpop.f32.mrf.mxu0
      %v2119 = vadd.f32 0.0, %v2118
      %v2120 = vpop.f32.mrf.mxu0
      %2121 = vmatprep.mubr.bf16.mxu0 0
      %2122 = vmatmul.mubr.bf16.gmra.mxu0 %v2007
      %v2123 = vpop.f32.mrf.mxu0
      %v2124 = vadd.f32 0.0, %v2123
      %v2125 = vpop.f32.mrf.mxu0
      %v2126 = vpop.f32.mrf.mxu0
      %v2127 = vadd.f32 0.0, %v2126
      %v2128 = vpop.f32.mrf.mxu0
      %2129 = vdwg.mxu0
      %v2130 = vmax.f32 %v2068, -5.0
      %v2131 = vmax.f32 %v2071, -5.0
      %v2132 = vmax.f32 %v2076, -5.0
      %v2133 = vmax.f32 %v2079, -5.0
      %v2134 = vmax.f32 %v2084, -5.0
      %v2135 = vmax.f32 %v2087, -5.0
      %v2136 = vmax.f32 %v2092, -5.0
      %v2137 = vmax.f32 %v2095, -5.0
      %v2138 = vmax.f32 %v2100, -5.0
      %v2139 = vmax.f32 %v2103, -5.0
      %v2140 = vmax.f32 %v2108, -5.0
      %v2141 = vmax.f32 %v2111, -5.0
      %v2142 = vmax.f32 %v2116, -5.0
      %v2143 = vmax.f32 %v2119, -5.0
      %v2144 = vmax.f32 %v2124, -5.0
      %v2145 = vmax.f32 %v2127, -5.0
      %v2146 = vmin.f32 %v2130, 5.0
      %v2147 = vmin.f32 %v2131, 5.0
      %v2148 = vmin.f32 %v2132, 5.0
      %v2149 = vmin.f32 %v2133, 5.0
      %v2150 = vmin.f32 %v2134, 5.0
      %v2151 = vmin.f32 %v2135, 5.0
      %v2152 = vmin.f32 %v2136, 5.0
      %v2153 = vmin.f32 %v2137, 5.0
      %v2154 = vmin.f32 %v2138, 5.0
      %v2155 = vmin.f32 %v2139, 5.0
      %v2156 = vmin.f32 %v2140, 5.0
      %v2157 = vmin.f32 %v2141, 5.0
      %v2158 = vmin.f32 %v2142, 5.0
      %v2159 = vmin.f32 %v2143, 5.0
      %v2160 = vmin.f32 %v2144, 5.0
      %v2161 = vmin.f32 %v2145, 5.0
      %v2162 = vmul.f32 %v2146, 1.442695
      %v2163 = vpow.pop %v2162
      %v2164 = vmul.f32 %v2147, 1.442695
      %v2165 = vpow.pop %v2164
      %v2166 = vmul.f32 %v2148, 1.442695
      %v2167 = vpow.pop %v2166
      %v2168 = vmul.f32 %v2149, 1.442695
      %v2169 = vpow.pop %v2168
      %v2170 = vmul.f32 %v2150, 1.442695
      %v2171 = vpow.pop %v2170
      %v2172 = vmul.f32 %v2151, 1.442695
      %v2173 = vpow.pop %v2172
      %v2174 = vmul.f32 %v2152, 1.442695
      %v2175 = vpow.pop %v2174
      %v2176 = vmul.f32 %v2153, 1.442695
      %v2177 = vpow.pop %v2176
      %v2178 = vmul.f32 %v2154, 1.442695
      %v2179 = vpow.pop %v2178
      %v2180 = vmul.f32 %v2155, 1.442695
      %v2181 = vpow.pop %v2180
      %v2182 = vmul.f32 %v2156, 1.442695
      %v2183 = vpow.pop %v2182
      %v2184 = vmul.f32 %v2157, 1.442695
      %v2185 = vpow.pop %v2184
      %v2186 = vmul.f32 %v2158, 1.442695
      %v2187 = vpow.pop %v2186
      %v2188 = vmul.f32 %v2159, 1.442695
      %v2189 = vpow.pop %v2188
      %v2190 = vmul.f32 %v2160, 1.442695
      %v2191 = vpow.pop %v2190
      %v2192 = vmul.f32 %v2161, 1.442695
      %v2193 = vpow.pop %v2192
      %v2194 = vmul.f32 %v2163, %v528
      %v2195 = vmul.f32 %v2165, %v529
      %v2196 = vmul.f32 %v2167, %v530
      %v2197 = vmul.f32 %v2169, %v531
      %v2198 = vmul.f32 %v2171, %v532
      %v2199 = vmul.f32 %v2173, %v533
      %v2200 = vmul.f32 %v2175, %v534
      %v2201 = vmul.f32 %v2177, %v535
      %v2202 = vmul.f32 %v2179, %v536
      %v2203 = vmul.f32 %v2181, %v537
      %v2204 = vmul.f32 %v2183, %v538
      %v2205 = vmul.f32 %v2185, %v539
      %v2206 = vmul.f32 %v2187, %v540
      %v2207 = vmul.f32 %v2189, %v541
      %v2208 = vmul.f32 %v2191, %v542
      %v2209 = vmul.f32 %v2193, %v543
      %2210 = vadd.xlane.f32.xlu0 %v2194
      %v2211 = vpop.xlane.xlu0 %2210
      %2212 = vadd.xlane.f32.xlu0 %v2195
      %v2213 = vpop.xlane.xlu0 %2212
      %2214 = vadd.xlane.f32.xlu0 %v2196
      %v2215 = vpop.xlane.xlu0 %2214
      %2216 = vadd.xlane.f32.xlu0 %v2197
      %v2217 = vpop.xlane.xlu0 %2216
      %2218 = vadd.xlane.f32.xlu0 %v2198
      %v2219 = vpop.xlane.xlu0 %2218
      %2220 = vadd.xlane.f32.xlu0 %v2199
      %v2221 = vpop.xlane.xlu0 %2220
      %2222 = vadd.xlane.f32.xlu0 %v2200
      %v2223 = vpop.xlane.xlu0 %2222
      %2224 = vadd.xlane.f32.xlu0 %v2201
      %v2225 = vpop.xlane.xlu0 %2224
      %2226 = vadd.xlane.f32.xlu0 %v2202
      %v2227 = vpop.xlane.xlu0 %2226
      %2228 = vadd.xlane.f32.xlu0 %v2203
      %v2229 = vpop.xlane.xlu0 %2228
      %2230 = vadd.xlane.f32.xlu0 %v2204
      %v2231 = vpop.xlane.xlu0 %2230
      %2232 = vadd.xlane.f32.xlu0 %v2205
      %v2233 = vpop.xlane.xlu0 %2232
      %2234 = vadd.xlane.f32.xlu0 %v2206
      %v2235 = vpop.xlane.xlu0 %2234
      %2236 = vadd.xlane.f32.xlu0 %v2207
      %v2237 = vpop.xlane.xlu0 %2236
      %2238 = vadd.xlane.f32.xlu0 %v2208
      %v2239 = vpop.xlane.xlu0 %2238
      %2240 = vadd.xlane.f32.xlu0 %v2209
      %v2241 = vpop.xlane.xlu0 %2240
      %v2242 = vpack.c.bf16 %v2195, %v2194
      %v2243 = vpack.c.bf16 %v2197, %v2196
      %v2244 = vpack.c.bf16 %v2199, %v2198
      %v2245 = vpack.c.bf16 %v2201, %v2200
      %v2246 = vpack.c.bf16 %v2203, %v2202
      %v2247 = vpack.c.bf16 %v2205, %v2204
      %v2248 = vpack.c.bf16 %v2207, %v2206
      %v2249 = vpack.c.bf16 %v2209, %v2208
      %2250 = vrot.lane.b32.xlu0 %v697, 48
      %v2251 = vpop.permute.xlu0 %2250
      %2252 = vrot.lane.b32.xlu0 %v698, 48
      %v2253 = vpop.permute.xlu0 %2252
      %2254 = vrot.lane.b32.xlu0 %v699, 48
      %v2255 = vpop.permute.xlu0 %2254
      %2256 = vrot.lane.b32.xlu0 %v700, 48
      %v2257 = vpop.permute.xlu0 %2256
      %2258 = vrot.lane.b32.xlu0 %v701, 48
      %v2259 = vpop.permute.xlu0 %2258
      %2260 = vrot.lane.b32.xlu0 %v702, 48
      %v2261 = vpop.permute.xlu0 %2260
      %2262 = vrot.lane.b32.xlu0 %v703, 48
      %v2263 = vpop.permute.xlu0 %2262
      %2264 = vrot.lane.b32.xlu0 %v704, 48
      %v2265 = vpop.permute.xlu0 %2264
      %2274 = vmatprep.subr.bf16.mxu0 0
      %2275 = vmatpush1.bf16.msra.mxu0 %v2265
      %2276 = vmatprep.subr.bf16.mxu0 0
      %2277 = vmatpush1.bf16.msra.mxu0 %v2263
      %2278 = vmatprep.subr.bf16.mxu0 0
      %2279 = vmatpush1.bf16.msra.mxu0 %v2261
      %2280 = vmatprep.subr.bf16.mxu0 0
      %2281 = vmatpush1.bf16.msra.mxu0 %v2259
      %2282 = vmatprep.subr.bf16.mxu0 0
      %2283 = vmatpush1.bf16.msra.mxu0 %v2257
      %2284 = vmatprep.subr.bf16.mxu0 0
      %2285 = vmatpush1.bf16.msra.mxu0 %v2255
      %2286 = vmatprep.subr.bf16.mxu0 0
      %2287 = vmatpush1.bf16.msra.mxu0 %v2253
      %2288 = vmatprep.subr.bf16.mxu0 0
      %2289 = vmatpush1.bf16.msra.mxu0 %v2251
      %2290 = vmatprep.subr.bf16.mxu0 0
      %2291 = vmatpush2.bf16.msra.mxu0 0
      %2292 = vmatprep.subr.bf16.mxu0 0
      %2293 = vmatpush2.bf16.msra.mxu0 0
      %2294 = vmatprep.subr.bf16.mxu0 0
      %2295 = vmatpush2.bf16.msra.mxu0 0
      %2296 = vmatprep.subr.bf16.mxu0 0
      %2297 = vmatpush2.bf16.msra.mxu0 0
      %2298 = vmatprep.subr.bf16.mxu0 0
      %2299 = vmatpush2.bf16.msra.mxu0 0
      %2300 = vmatprep.subr.bf16.mxu0 0
      %2301 = vmatpush2.bf16.msra.mxu0 0
      %2302 = vmatprep.subr.bf16.mxu0 0
      %2303 = vmatpush2.bf16.msra.mxu0 0
      %2304 = vmatprep.subr.bf16.mxu0 0
      %2305 = vmatpush2.bf16.msra.mxu0 0
      %2306 = vmatprep.mubr.bf16.mxu0 0
      %2307 = vmatmul.mubr.bf16.gmra.mxu0 %v2242
      %v2308 = vpop.f32.mrf.mxu0
      %v2309 = vadd.f32 0.0, %v2308
      %v2310 = vpop.f32.mrf.mxu0
      %v2311 = vpop.f32.mrf.mxu0
      %v2312 = vadd.f32 0.0, %v2311
      %v2313 = vpop.f32.mrf.mxu0
      %2314 = vmatprep.mubr.bf16.mxu0 0
      %2315 = vmatmul.mubr.bf16.gmra.mxu0 %v2243
      %v2316 = vpop.f32.mrf.mxu0
      %v2317 = vadd.f32 0.0, %v2316
      %v2318 = vpop.f32.mrf.mxu0
      %v2319 = vpop.f32.mrf.mxu0
      %v2320 = vadd.f32 0.0, %v2319
      %v2321 = vpop.f32.mrf.mxu0
      %2322 = vmatprep.mubr.bf16.mxu0 0
      %2323 = vmatmul.mubr.bf16.gmra.mxu0 %v2244
      %v2324 = vpop.f32.mrf.mxu0
      %v2325 = vadd.f32 0.0, %v2324
      %v2326 = vpop.f32.mrf.mxu0
      %v2327 = vpop.f32.mrf.mxu0
      %v2328 = vadd.f32 0.0, %v2327
      %v2329 = vpop.f32.mrf.mxu0
      %2330 = vmatprep.mubr.bf16.mxu0 0
      %2331 = vmatmul.mubr.bf16.gmra.mxu0 %v2245
      %v2332 = vpop.f32.mrf.mxu0
      %v2333 = vadd.f32 0.0, %v2332
      %v2334 = vpop.f32.mrf.mxu0
      %v2335 = vpop.f32.mrf.mxu0
      %v2336 = vadd.f32 0.0, %v2335
      %v2337 = vpop.f32.mrf.mxu0
      %2338 = vmatprep.mubr.bf16.mxu0 0
      %2339 = vmatmul.mubr.bf16.gmra.mxu0 %v2246
      %v2340 = vpop.f32.mrf.mxu0
      %v2341 = vadd.f32 0.0, %v2340
      %v2342 = vpop.f32.mrf.mxu0
      %v2343 = vpop.f32.mrf.mxu0
      %v2344 = vadd.f32 0.0, %v2343
      %v2345 = vpop.f32.mrf.mxu0
      %2346 = vmatprep.mubr.bf16.mxu0 0
      %2347 = vmatmul.mubr.bf16.gmra.mxu0 %v2247
      %v2348 = vpop.f32.mrf.mxu0
      %v2349 = vadd.f32 0.0, %v2348
      %v2350 = vpop.f32.mrf.mxu0
      %v2351 = vpop.f32.mrf.mxu0
      %v2352 = vadd.f32 0.0, %v2351
      %v2353 = vpop.f32.mrf.mxu0
      %2354 = vmatprep.mubr.bf16.mxu0 0
      %2355 = vmatmul.mubr.bf16.gmra.mxu0 %v2248
      %v2356 = vpop.f32.mrf.mxu0
      %v2357 = vadd.f32 0.0, %v2356
      %v2358 = vpop.f32.mrf.mxu0
      %v2359 = vpop.f32.mrf.mxu0
      %v2360 = vadd.f32 0.0, %v2359
      %v2361 = vpop.f32.mrf.mxu0
      %2362 = vmatprep.mubr.bf16.mxu0 0
      %2363 = vmatmul.mubr.bf16.gmra.mxu0 %v2249
      %v2364 = vpop.f32.mrf.mxu0
      %v2365 = vadd.f32 0.0, %v2364
      %v2366 = vpop.f32.mrf.mxu0
      %v2367 = vpop.f32.mrf.mxu0
      %v2368 = vadd.f32 0.0, %v2367
      %v2369 = vpop.f32.mrf.mxu0
      %2370 = vdwg.mxu0
      %v2371 = vmax.f32 %v2211, 1e-30
      %v2372 = vmax.f32 %v2213, 1e-30
      %v2373 = vmax.f32 %v2215, 1e-30
      %v2374 = vmax.f32 %v2217, 1e-30
      %v2375 = vmax.f32 %v2219, 1e-30
      %v2376 = vmax.f32 %v2221, 1e-30
      %v2377 = vmax.f32 %v2223, 1e-30
      %v2378 = vmax.f32 %v2225, 1e-30
      %v2379 = vmax.f32 %v2227, 1e-30
      %v2380 = vmax.f32 %v2229, 1e-30
      %v2381 = vmax.f32 %v2231, 1e-30
      %v2382 = vmax.f32 %v2233, 1e-30
      %v2383 = vmax.f32 %v2235, 1e-30
      %v2384 = vmax.f32 %v2237, 1e-30
      %v2385 = vmax.f32 %v2239, 1e-30
      %v2386 = vmax.f32 %v2241, 1e-30
      %v2387 = vrcp.pop %v2371
      %v2388 = vrcp.pop %v2372
      %v2389 = vrcp.pop %v2373
      %v2390 = vrcp.pop %v2374
      %v2391 = vrcp.pop %v2375
      %v2392 = vrcp.pop %v2376
      %v2393 = vrcp.pop %v2377
      %v2394 = vrcp.pop %v2378
      %v2395 = vrcp.pop %v2379
      %v2396 = vrcp.pop %v2380
      %v2397 = vrcp.pop %v2381
      %v2398 = vrcp.pop %v2382
      %v2399 = vrcp.pop %v2383
      %v2400 = vrcp.pop %v2384
      %v2401 = vrcp.pop %v2385
      %v2402 = vrcp.pop %v2386
      %v2403 = vmul.f32 %v2309, %v2387
      %v2404 = vmul.f32 %v2312, %v2388
      %v2405 = vmul.f32 %v2317, %v2389
      %v2406 = vmul.f32 %v2320, %v2390
      %v2407 = vmul.f32 %v2325, %v2391
      %v2408 = vmul.f32 %v2328, %v2392
      %v2409 = vmul.f32 %v2333, %v2393
      %v2410 = vmul.f32 %v2336, %v2394
      %v2411 = vmul.f32 %v2341, %v2395
      %v2412 = vmul.f32 %v2344, %v2396
      %v2413 = vmul.f32 %v2349, %v2397
      %v2414 = vmul.f32 %v2352, %v2398
      %v2415 = vmul.f32 %v2357, %v2399
      %v2416 = vmul.f32 %v2360, %v2400
      %v2417 = vmul.f32 %v2365, %v2401
      %v2418 = vmul.f32 %v2368, %v2402
      %v2419 = vpack.c.bf16 %v2404, %v2403
      %v2420 = vpack.c.bf16 %v2406, %v2405
      %v2421 = vpack.c.bf16 %v2408, %v2407
      %v2422 = vpack.c.bf16 %v2410, %v2409
      %v2423 = vpack.c.bf16 %v2412, %v2411
      %v2424 = vpack.c.bf16 %v2414, %v2413
      %v2425 = vpack.c.bf16 %v2416, %v2415
      %v2426 = vpack.c.bf16 %v2418, %v2417
      %s2427 = scalar_lea.vmem %s4, 8
      %v2428 = vld [vmem:[%s2427] sm:$0xf]
      %v2430 = vsel %vm752, %v2419, 0
      %v2433 = vsel %vm752, %v2420, 0
      %v2436 = vsel %vm752, %v2421, 0
      %v2439 = vsel %vm752, %v2422, 0
      %v2442 = vsel %vm752, %v2423, 0
      %v2445 = vsel %vm752, %v2424, 0
      %v2448 = vsel %vm752, %v2425, 0
      %v2451 = vsel %vm752, %v2426, 0
      %v2454 = vsel %vm1220, %v2428, 0
      %2456 = vmatprep.subr.bf16.mxu0 0
      %2457 = vmatpush1.bf16.msra.mxu0 0
      %2458 = vmatprep.subr.bf16.mxu0 0
      %2459 = vmatpush1.bf16.msra.mxu0 0
      %2460 = vmatprep.subr.bf16.mxu0 0
      %2461 = vmatpush1.bf16.msra.mxu0 0
      %2462 = vmatprep.subr.bf16.mxu0 0
      %2463 = vmatpush1.bf16.msra.mxu0 0
      %2464 = vmatprep.subr.bf16.mxu0 0
      %2465 = vmatpush1.bf16.msra.mxu0 0
      %2466 = vmatprep.subr.bf16.mxu0 0
      %2467 = vmatpush1.bf16.msra.mxu0 0
      %2468 = vmatprep.subr.bf16.mxu0 0
      %2469 = vmatpush1.bf16.msra.mxu0 0
      %2470 = vmatprep.subr.bf16.mxu0 0
      %2471 = vmatpush1.bf16.msra.mxu0 %v2454
      %2472 = vmatprep.subr.bf16.mxu0 0
      %2473 = vmatpush2.bf16.msra.mxu0 0
      %2474 = vmatprep.subr.bf16.mxu0 0
      %2475 = vmatpush2.bf16.msra.mxu0 0
      %2476 = vmatprep.subr.bf16.mxu0 0
      %2477 = vmatpush2.bf16.msra.mxu0 0
      %2478 = vmatprep.subr.bf16.mxu0 0
      %2479 = vmatpush2.bf16.msra.mxu0 0
      %2480 = vmatprep.subr.bf16.mxu0 0
      %2481 = vmatpush2.bf16.msra.mxu0 0
      %2482 = vmatprep.subr.bf16.mxu0 0
      %2483 = vmatpush2.bf16.msra.mxu0 0
      %2484 = vmatprep.subr.bf16.mxu0 0
      %2485 = vmatpush2.bf16.msra.mxu0 0
      %2486 = vmatprep.subr.bf16.mxu0 0
      %2487 = vmatpush2.bf16.msra.mxu0 0
      %2488 = vmatprep.mubr.bf16.mxu0 0
      %2489 = vmatmul.mubr.bf16.gmra.mxu0 %v2430
      %v2490 = vpop.f32.mrf.mxu0
      %v2491 = vadd.f32 0.0, %v2490
      %v2492 = vpop.f32.mrf.mxu0
      %v2493 = vpop.f32.mrf.mxu0
      %v2494 = vadd.f32 0.0, %v2493
      %v2495 = vpop.f32.mrf.mxu0
      %2496 = vmatprep.mubr.bf16.mxu0 0
      %2497 = vmatmul.mubr.bf16.gmra.mxu0 %v2433
      %v2498 = vpop.f32.mrf.mxu0
      %v2499 = vadd.f32 0.0, %v2498
      %v2500 = vpop.f32.mrf.mxu0
      %v2501 = vpop.f32.mrf.mxu0
      %v2502 = vadd.f32 0.0, %v2501
      %v2503 = vpop.f32.mrf.mxu0
      %2504 = vmatprep.mubr.bf16.mxu0 0
      %2505 = vmatmul.mubr.bf16.gmra.mxu0 %v2436
      %v2506 = vpop.f32.mrf.mxu0
      %v2507 = vadd.f32 0.0, %v2506
      %v2508 = vpop.f32.mrf.mxu0
      %v2509 = vpop.f32.mrf.mxu0
      %v2510 = vadd.f32 0.0, %v2509
      %v2511 = vpop.f32.mrf.mxu0
      %2512 = vmatprep.mubr.bf16.mxu0 0
      %2513 = vmatmul.mubr.bf16.gmra.mxu0 %v2439
      %v2514 = vpop.f32.mrf.mxu0
      %v2515 = vadd.f32 0.0, %v2514
      %v2516 = vpop.f32.mrf.mxu0
      %v2517 = vpop.f32.mrf.mxu0
      %v2518 = vadd.f32 0.0, %v2517
      %v2519 = vpop.f32.mrf.mxu0
      %2520 = vmatprep.mubr.bf16.mxu0 0
      %2521 = vmatmul.mubr.bf16.gmra.mxu0 %v2442
      %v2522 = vpop.f32.mrf.mxu0
      %v2523 = vadd.f32 0.0, %v2522
      %v2524 = vpop.f32.mrf.mxu0
      %v2525 = vpop.f32.mrf.mxu0
      %v2526 = vadd.f32 0.0, %v2525
      %v2527 = vpop.f32.mrf.mxu0
      %2528 = vmatprep.mubr.bf16.mxu0 0
      %2529 = vmatmul.mubr.bf16.gmra.mxu0 %v2445
      %v2530 = vpop.f32.mrf.mxu0
      %v2531 = vadd.f32 0.0, %v2530
      %v2532 = vpop.f32.mrf.mxu0
      %v2533 = vpop.f32.mrf.mxu0
      %v2534 = vadd.f32 0.0, %v2533
      %v2535 = vpop.f32.mrf.mxu0
      %2536 = vmatprep.mubr.bf16.mxu0 0
      %2537 = vmatmul.mubr.bf16.gmra.mxu0 %v2448
      %v2538 = vpop.f32.mrf.mxu0
      %v2539 = vadd.f32 0.0, %v2538
      %v2540 = vpop.f32.mrf.mxu0
      %v2541 = vpop.f32.mrf.mxu0
      %v2542 = vadd.f32 0.0, %v2541
      %v2543 = vpop.f32.mrf.mxu0
      %2544 = vmatprep.mubr.bf16.mxu0 0
      %2545 = vmatmul.mubr.bf16.gmra.mxu0 %v2451
      %v2546 = vpop.f32.mrf.mxu0
      %v2547 = vadd.f32 0.0, %v2546
      %v2548 = vpop.f32.mrf.mxu0
      %v2549 = vpop.f32.mrf.mxu0
      %v2550 = vadd.f32 0.0, %v2549
      %v2551 = vpop.f32.mrf.mxu0
      %2552 = vdwg.mxu0
      %v2553 = vadd.f32 %v1937, %v2491
      %v2554 = vadd.f32 %v1938, %v2494
      %v2555 = vadd.f32 %v1939, %v2499
      %v2556 = vadd.f32 %v1940, %v2502
      %v2557 = vadd.f32 %v1941, %v2507
      %v2558 = vadd.f32 %v1942, %v2510
      %v2559 = vadd.f32 %v1943, %v2515
      %v2560 = vadd.f32 %v1944, %v2518
      %v2561 = vadd.f32 %v1945, %v2523
      %v2562 = vadd.f32 %v1946, %v2526
      %v2563 = vadd.f32 %v1947, %v2531
      %v2564 = vadd.f32 %v1948, %v2534
      %v2565 = vadd.f32 %v1949, %v2539
      %v2566 = vadd.f32 %v1950, %v2542
      %v2567 = vadd.f32 %v1951, %v2547
      %v2568 = vadd.f32 %v1952, %v2550
      %2569 = vrot.lane.b32.xlu0 %v697, 104
      %v2570 = vpop.permute.xlu0 %2569
      %2571 = vrot.lane.b32.xlu0 %v698, 104
      %v2572 = vpop.permute.xlu0 %2571
      %2573 = vrot.lane.b32.xlu0 %v699, 104
      %v2574 = vpop.permute.xlu0 %2573
      %2575 = vrot.lane.b32.xlu0 %v700, 104
      %v2576 = vpop.permute.xlu0 %2575
      %2577 = vrot.lane.b32.xlu0 %v701, 104
      %v2578 = vpop.permute.xlu0 %2577
      %2579 = vrot.lane.b32.xlu0 %v702, 104
      %v2580 = vpop.permute.xlu0 %2579
      %2581 = vrot.lane.b32.xlu0 %v703, 104
      %v2582 = vpop.permute.xlu0 %2581
      %2583 = vrot.lane.b32.xlu0 %v704, 104
      %v2584 = vpop.permute.xlu0 %2583
      %2585 = vrot.lane.b32.xlu0 %v697, 72
      %v2586 = vpop.permute.xlu0 %2585
      %2587 = vrot.lane.b32.xlu0 %v698, 72
      %v2588 = vpop.permute.xlu0 %2587
      %2589 = vrot.lane.b32.xlu0 %v699, 72
      %v2590 = vpop.permute.xlu0 %2589
      %2591 = vrot.lane.b32.xlu0 %v700, 72
      %v2592 = vpop.permute.xlu0 %2591
      %2593 = vrot.lane.b32.xlu0 %v701, 72
      %v2594 = vpop.permute.xlu0 %2593
      %2595 = vrot.lane.b32.xlu0 %v702, 72
      %v2596 = vpop.permute.xlu0 %2595
      %2597 = vrot.lane.b32.xlu0 %v703, 72
      %v2598 = vpop.permute.xlu0 %2597
      %2599 = vrot.lane.b32.xlu0 %v704, 72
      %v2600 = vpop.permute.xlu0 %2599
      %v2602 = vsel %vm752, %v2570, 0
      %v2605 = vsel %vm752, %v2572, 0
      %v2608 = vsel %vm752, %v2574, 0
      %v2611 = vsel %vm752, %v2576, 0
      %v2614 = vsel %vm752, %v2578, 0
      %v2617 = vsel %vm752, %v2580, 0
      %v2620 = vsel %vm752, %v2582, 0
      %v2623 = vsel %vm752, %v2584, 0
      %v2626 = vsel %vm752, %v2586, 0
      %v2629 = vsel %vm752, %v2588, 0
      %v2632 = vsel %vm752, %v2590, 0
      %v2635 = vsel %vm752, %v2592, 0
      %v2638 = vsel %vm752, %v2594, 0
      %v2641 = vsel %vm752, %v2596, 0
      %v2644 = vsel %vm752, %v2598, 0
      %v2647 = vsel %vm752, %v2600, 0
      %2649 = vmatprep.subr.bf16.mxu0 0
      %2650 = vmatpush1.bf16.xpose.msra.mxu0 %v2647
      %2651 = vmatprep.subr.bf16.mxu0 0
      %2652 = vmatpush1.bf16.xpose.msra.mxu0 %v2644
      %2653 = vmatprep.subr.bf16.mxu0 0
      %2654 = vmatpush1.bf16.xpose.msra.mxu0 %v2641
      %2655 = vmatprep.subr.bf16.mxu0 0
      %2656 = vmatpush1.bf16.xpose.msra.mxu0 %v2638
      %2657 = vmatprep.subr.bf16.mxu0 0
      %2658 = vmatpush1.bf16.xpose.msra.mxu0 %v2635
      %2659 = vmatprep.subr.bf16.mxu0 0
      %2660 = vmatpush1.bf16.xpose.msra.mxu0 %v2632
      %2661 = vmatprep.subr.bf16.mxu0 0
      %2662 = vmatpush1.bf16.xpose.msra.mxu0 %v2629
      %2663 = vmatprep.subr.bf16.mxu0 0
      %2664 = vmatpush1.bf16.xpose.msra.mxu0 %v2626
      %2665 = vmatprep.subr.bf16.mxu0 0
      %2666 = vmatpush2.bf16.xpose.msra.mxu0 0
      %2667 = vmatprep.subr.bf16.mxu0 0
      %2668 = vmatpush2.bf16.xpose.msra.mxu0 0
      %2669 = vmatprep.subr.bf16.mxu0 0
      %2670 = vmatpush2.bf16.xpose.msra.mxu0 0
      %2671 = vmatprep.subr.bf16.mxu0 0
      %2672 = vmatpush2.bf16.xpose.msra.mxu0 0
      %2673 = vmatprep.subr.bf16.mxu0 0
      %2674 = vmatpush2.bf16.xpose.msra.mxu0 0
      %2675 = vmatprep.subr.bf16.mxu0 0
      %2676 = vmatpush2.bf16.xpose.msra.mxu0 0
      %2677 = vmatprep.subr.bf16.mxu0 0
      %2678 = vmatpush2.bf16.xpose.msra.mxu0 0
      %2679 = vmatprep.subr.bf16.mxu0 0
      %2680 = vmatpush2.bf16.xpose.msra.mxu0 0
      %2681 = vmatprep.mubr.bf16.mxu0 0
      %2682 = vmatmul.mubr.bf16.gmra.mxu0 %v2602
      %v2683 = vpop.f32.mrf.mxu0
      %v2684 = vadd.f32 0.0, %v2683
      %v2685 = vpop.f32.mrf.mxu0
      %v2686 = vpop.f32.mrf.mxu0
      %v2687 = vadd.f32 0.0, %v2686
      %v2688 = vpop.f32.mrf.mxu0
      %2689 = vmatprep.mubr.bf16.mxu0 0
      %2690 = vmatmul.mubr.bf16.gmra.mxu0 %v2605
      %v2691 = vpop.f32.mrf.mxu0
      %v2692 = vadd.f32 0.0, %v2691
      %v2693 = vpop.f32.mrf.mxu0
      %v2694 = vpop.f32.mrf.mxu0
      %v2695 = vadd.f32 0.0, %v2694
      %v2696 = vpop.f32.mrf.mxu0
      %2697 = vmatprep.mubr.bf16.mxu0 0
      %2698 = vmatmul.mubr.bf16.gmra.mxu0 %v2608
      %v2699 = vpop.f32.mrf.mxu0
      %v2700 = vadd.f32 0.0, %v2699
      %v2701 = vpop.f32.mrf.mxu0
      %v2702 = vpop.f32.mrf.mxu0
      %v2703 = vadd.f32 0.0, %v2702
      %v2704 = vpop.f32.mrf.mxu0
      %2705 = vmatprep.mubr.bf16.mxu0 0
      %2706 = vmatmul.mubr.bf16.gmra.mxu0 %v2611
      %v2707 = vpop.f32.mrf.mxu0
      %v2708 = vadd.f32 0.0, %v2707
      %v2709 = vpop.f32.mrf.mxu0
      %v2710 = vpop.f32.mrf.mxu0
      %v2711 = vadd.f32 0.0, %v2710
      %v2712 = vpop.f32.mrf.mxu0
      %2713 = vmatprep.mubr.bf16.mxu0 0
      %2714 = vmatmul.mubr.bf16.gmra.mxu0 %v2614
      %v2715 = vpop.f32.mrf.mxu0
      %v2716 = vadd.f32 0.0, %v2715
      %v2717 = vpop.f32.mrf.mxu0
      %v2718 = vpop.f32.mrf.mxu0
      %v2719 = vadd.f32 0.0, %v2718
      %v2720 = vpop.f32.mrf.mxu0
      %2721 = vmatprep.mubr.bf16.mxu0 0
      %2722 = vmatmul.mubr.bf16.gmra.mxu0 %v2617
      %v2723 = vpop.f32.mrf.mxu0
      %v2724 = vadd.f32 0.0, %v2723
      %v2725 = vpop.f32.mrf.mxu0
      %v2726 = vpop.f32.mrf.mxu0
      %v2727 = vadd.f32 0.0, %v2726
      %v2728 = vpop.f32.mrf.mxu0
      %2729 = vmatprep.mubr.bf16.mxu0 0
      %2730 = vmatmul.mubr.bf16.gmra.mxu0 %v2620
      %v2731 = vpop.f32.mrf.mxu0
      %v2732 = vadd.f32 0.0, %v2731
      %v2733 = vpop.f32.mrf.mxu0
      %v2734 = vpop.f32.mrf.mxu0
      %v2735 = vadd.f32 0.0, %v2734
      %v2736 = vpop.f32.mrf.mxu0
      %2737 = vmatprep.mubr.bf16.mxu0 0
      %2738 = vmatmul.mubr.bf16.gmra.mxu0 %v2623
      %v2739 = vpop.f32.mrf.mxu0
      %v2740 = vadd.f32 0.0, %v2739
      %v2741 = vpop.f32.mrf.mxu0
      %v2742 = vpop.f32.mrf.mxu0
      %v2743 = vadd.f32 0.0, %v2742
      %v2744 = vpop.f32.mrf.mxu0
      %2745 = vdwg.mxu0
      %v2746 = vmax.f32 %v2684, -5.0
      %v2747 = vmax.f32 %v2687, -5.0
      %v2748 = vmax.f32 %v2692, -5.0
      %v2749 = vmax.f32 %v2695, -5.0
      %v2750 = vmax.f32 %v2700, -5.0
      %v2751 = vmax.f32 %v2703, -5.0
      %v2752 = vmax.f32 %v2708, -5.0
      %v2753 = vmax.f32 %v2711, -5.0
      %v2754 = vmax.f32 %v2716, -5.0
      %v2755 = vmax.f32 %v2719, -5.0
      %v2756 = vmax.f32 %v2724, -5.0
      %v2757 = vmax.f32 %v2727, -5.0
      %v2758 = vmax.f32 %v2732, -5.0
      %v2759 = vmax.f32 %v2735, -5.0
      %v2760 = vmax.f32 %v2740, -5.0
      %v2761 = vmax.f32 %v2743, -5.0
      %v2762 = vmin.f32 %v2746, 5.0
      %v2763 = vmin.f32 %v2747, 5.0
      %v2764 = vmin.f32 %v2748, 5.0
      %v2765 = vmin.f32 %v2749, 5.0
      %v2766 = vmin.f32 %v2750, 5.0
      %v2767 = vmin.f32 %v2751, 5.0
      %v2768 = vmin.f32 %v2752, 5.0
      %v2769 = vmin.f32 %v2753, 5.0
      %v2770 = vmin.f32 %v2754, 5.0
      %v2771 = vmin.f32 %v2755, 5.0
      %v2772 = vmin.f32 %v2756, 5.0
      %v2773 = vmin.f32 %v2757, 5.0
      %v2774 = vmin.f32 %v2758, 5.0
      %v2775 = vmin.f32 %v2759, 5.0
      %v2776 = vmin.f32 %v2760, 5.0
      %v2777 = vmin.f32 %v2761, 5.0
      %v2778 = vmul.f32 %v2762, 1.442695
      %v2779 = vpow.pop %v2778
      %v2780 = vmul.f32 %v2763, 1.442695
      %v2781 = vpow.pop %v2780
      %v2782 = vmul.f32 %v2764, 1.442695
      %v2783 = vpow.pop %v2782
      %v2784 = vmul.f32 %v2765, 1.442695
      %v2785 = vpow.pop %v2784
      %v2786 = vmul.f32 %v2766, 1.442695
      %v2787 = vpow.pop %v2786
      %v2788 = vmul.f32 %v2767, 1.442695
      %v2789 = vpow.pop %v2788
      %v2790 = vmul.f32 %v2768, 1.442695
      %v2791 = vpow.pop %v2790
      %v2792 = vmul.f32 %v2769, 1.442695
      %v2793 = vpow.pop %v2792
      %v2794 = vmul.f32 %v2770, 1.442695
      %v2795 = vpow.pop %v2794
      %v2796 = vmul.f32 %v2771, 1.442695
      %v2797 = vpow.pop %v2796
      %v2798 = vmul.f32 %v2772, 1.442695
      %v2799 = vpow.pop %v2798
      %v2800 = vmul.f32 %v2773, 1.442695
      %v2801 = vpow.pop %v2800
      %v2802 = vmul.f32 %v2774, 1.442695
      %v2803 = vpow.pop %v2802
      %v2804 = vmul.f32 %v2775, 1.442695
      %v2805 = vpow.pop %v2804
      %v2806 = vmul.f32 %v2776, 1.442695
      %v2807 = vpow.pop %v2806
      %v2808 = vmul.f32 %v2777, 1.442695
      %v2809 = vpow.pop %v2808
      %v2810 = vmul.f32 %v2779, %v528
      %v2811 = vmul.f32 %v2781, %v529
      %v2812 = vmul.f32 %v2783, %v530
      %v2813 = vmul.f32 %v2785, %v531
      %v2814 = vmul.f32 %v2787, %v532
      %v2815 = vmul.f32 %v2789, %v533
      %v2816 = vmul.f32 %v2791, %v534
      %v2817 = vmul.f32 %v2793, %v535
      %v2818 = vmul.f32 %v2795, %v536
      %v2819 = vmul.f32 %v2797, %v537
      %v2820 = vmul.f32 %v2799, %v538
      %v2821 = vmul.f32 %v2801, %v539
      %v2822 = vmul.f32 %v2803, %v540
      %v2823 = vmul.f32 %v2805, %v541
      %v2824 = vmul.f32 %v2807, %v542
      %v2825 = vmul.f32 %v2809, %v543
      %2826 = vadd.xlane.f32.xlu0 %v2810
      %v2827 = vpop.xlane.xlu0 %2826
      %2828 = vadd.xlane.f32.xlu0 %v2811
      %v2829 = vpop.xlane.xlu0 %2828
      %2830 = vadd.xlane.f32.xlu0 %v2812
      %v2831 = vpop.xlane.xlu0 %2830
      %2832 = vadd.xlane.f32.xlu0 %v2813
      %v2833 = vpop.xlane.xlu0 %2832
      %2834 = vadd.xlane.f32.xlu0 %v2814
      %v2835 = vpop.xlane.xlu0 %2834
      %2836 = vadd.xlane.f32.xlu0 %v2815
      %v2837 = vpop.xlane.xlu0 %2836
      %2838 = vadd.xlane.f32.xlu0 %v2816
      %v2839 = vpop.xlane.xlu0 %2838
      %2840 = vadd.xlane.f32.xlu0 %v2817
      %v2841 = vpop.xlane.xlu0 %2840
      %2842 = vadd.xlane.f32.xlu0 %v2818
      %v2843 = vpop.xlane.xlu0 %2842
      %2844 = vadd.xlane.f32.xlu0 %v2819
      %v2845 = vpop.xlane.xlu0 %2844
      %2846 = vadd.xlane.f32.xlu0 %v2820
      %v2847 = vpop.xlane.xlu0 %2846
      %2848 = vadd.xlane.f32.xlu0 %v2821
      %v2849 = vpop.xlane.xlu0 %2848
      %2850 = vadd.xlane.f32.xlu0 %v2822
      %v2851 = vpop.xlane.xlu0 %2850
      %2852 = vadd.xlane.f32.xlu0 %v2823
      %v2853 = vpop.xlane.xlu0 %2852
      %2854 = vadd.xlane.f32.xlu0 %v2824
      %v2855 = vpop.xlane.xlu0 %2854
      %2856 = vadd.xlane.f32.xlu0 %v2825
      %v2857 = vpop.xlane.xlu0 %2856
      %v2858 = vpack.c.bf16 %v2811, %v2810
      %v2859 = vpack.c.bf16 %v2813, %v2812
      %v2860 = vpack.c.bf16 %v2815, %v2814
      %v2861 = vpack.c.bf16 %v2817, %v2816
      %v2862 = vpack.c.bf16 %v2819, %v2818
      %v2863 = vpack.c.bf16 %v2821, %v2820
      %v2864 = vpack.c.bf16 %v2823, %v2822
      %v2865 = vpack.c.bf16 %v2825, %v2824
      %2866 = vrot.lane.b32.xlu0 %v697, 40
      %v2867 = vpop.permute.xlu0 %2866
      %2868 = vrot.lane.b32.xlu0 %v698, 40
      %v2869 = vpop.permute.xlu0 %2868
      %2870 = vrot.lane.b32.xlu0 %v699, 40
      %v2871 = vpop.permute.xlu0 %2870
      %2872 = vrot.lane.b32.xlu0 %v700, 40
      %v2873 = vpop.permute.xlu0 %2872
      %2874 = vrot.lane.b32.xlu0 %v701, 40
      %v2875 = vpop.permute.xlu0 %2874
      %2876 = vrot.lane.b32.xlu0 %v702, 40
      %v2877 = vpop.permute.xlu0 %2876
      %2878 = vrot.lane.b32.xlu0 %v703, 40
      %v2879 = vpop.permute.xlu0 %2878
      %2880 = vrot.lane.b32.xlu0 %v704, 40
      %v2881 = vpop.permute.xlu0 %2880
      %2890 = vmatprep.subr.bf16.mxu0 0
      %2891 = vmatpush1.bf16.msra.mxu0 %v2881
      %2892 = vmatprep.subr.bf16.mxu0 0
      %2893 = vmatpush1.bf16.msra.mxu0 %v2879
      %2894 = vmatprep.subr.bf16.mxu0 0
      %2895 = vmatpush1.bf16.msra.mxu0 %v2877
      %2896 = vmatprep.subr.bf16.mxu0 0
      %2897 = vmatpush1.bf16.msra.mxu0 %v2875
      %2898 = vmatprep.subr.bf16.mxu0 0
      %2899 = vmatpush1.bf16.msra.mxu0 %v2873
      %2900 = vmatprep.subr.bf16.mxu0 0
      %2901 = vmatpush1.bf16.msra.mxu0 %v2871
      %2902 = vmatprep.subr.bf16.mxu0 0
      %2903 = vmatpush1.bf16.msra.mxu0 %v2869
      %2904 = vmatprep.subr.bf16.mxu0 0
      %2905 = vmatpush1.bf16.msra.mxu0 %v2867
      %2906 = vmatprep.subr.bf16.mxu0 0
      %2907 = vmatpush2.bf16.msra.mxu0 0
      %2908 = vmatprep.subr.bf16.mxu0 0
      %2909 = vmatpush2.bf16.msra.mxu0 0
      %2910 = vmatprep.subr.bf16.mxu0 0
      %2911 = vmatpush2.bf16.msra.mxu0 0
      %2912 = vmatprep.subr.bf16.mxu0 0
      %2913 = vmatpush2.bf16.msra.mxu0 0
      %2914 = vmatprep.subr.bf16.mxu0 0
      %2915 = vmatpush2.bf16.msra.mxu0 0
      %2916 = vmatprep.subr.bf16.mxu0 0
      %2917 = vmatpush2.bf16.msra.mxu0 0
      %2918 = vmatprep.subr.bf16.mxu0 0
      %2919 = vmatpush2.bf16.msra.mxu0 0
      %2920 = vmatprep.subr.bf16.mxu0 0
      %2921 = vmatpush2.bf16.msra.mxu0 0
      %2922 = vmatprep.mubr.bf16.mxu0 0
      %2923 = vmatmul.mubr.bf16.gmra.mxu0 %v2858
      %v2924 = vpop.f32.mrf.mxu0
      %v2925 = vadd.f32 0.0, %v2924
      %v2926 = vpop.f32.mrf.mxu0
      %v2927 = vpop.f32.mrf.mxu0
      %v2928 = vadd.f32 0.0, %v2927
      %v2929 = vpop.f32.mrf.mxu0
      %2930 = vmatprep.mubr.bf16.mxu0 0
      %2931 = vmatmul.mubr.bf16.gmra.mxu0 %v2859
      %v2932 = vpop.f32.mrf.mxu0
      %v2933 = vadd.f32 0.0, %v2932
      %v2934 = vpop.f32.mrf.mxu0
      %v2935 = vpop.f32.mrf.mxu0
      %v2936 = vadd.f32 0.0, %v2935
      %v2937 = vpop.f32.mrf.mxu0
      %2938 = vmatprep.mubr.bf16.mxu0 0
      %2939 = vmatmul.mubr.bf16.gmra.mxu0 %v2860
      %v2940 = vpop.f32.mrf.mxu0
      %v2941 = vadd.f32 0.0, %v2940
      %v2942 = vpop.f32.mrf.mxu0
      %v2943 = vpop.f32.mrf.mxu0
      %v2944 = vadd.f32 0.0, %v2943
      %v2945 = vpop.f32.mrf.mxu0
      %2946 = vmatprep.mubr.bf16.mxu0 0
      %2947 = vmatmul.mubr.bf16.gmra.mxu0 %v2861
      %v2948 = vpop.f32.mrf.mxu0
      %v2949 = vadd.f32 0.0, %v2948
      %v2950 = vpop.f32.mrf.mxu0
      %v2951 = vpop.f32.mrf.mxu0
      %v2952 = vadd.f32 0.0, %v2951
      %v2953 = vpop.f32.mrf.mxu0
      %2954 = vmatprep.mubr.bf16.mxu0 0
      %2955 = vmatmul.mubr.bf16.gmra.mxu0 %v2862
      %v2956 = vpop.f32.mrf.mxu0
      %v2957 = vadd.f32 0.0, %v2956
      %v2958 = vpop.f32.mrf.mxu0
      %v2959 = vpop.f32.mrf.mxu0
      %v2960 = vadd.f32 0.0, %v2959
      %v2961 = vpop.f32.mrf.mxu0
      %2962 = vmatprep.mubr.bf16.mxu0 0
      %2963 = vmatmul.mubr.bf16.gmra.mxu0 %v2863
      %v2964 = vpop.f32.mrf.mxu0
      %v2965 = vadd.f32 0.0, %v2964
      %v2966 = vpop.f32.mrf.mxu0
      %v2967 = vpop.f32.mrf.mxu0
      %v2968 = vadd.f32 0.0, %v2967
      %v2969 = vpop.f32.mrf.mxu0
      %2970 = vmatprep.mubr.bf16.mxu0 0
      %2971 = vmatmul.mubr.bf16.gmra.mxu0 %v2864
      %v2972 = vpop.f32.mrf.mxu0
      %v2973 = vadd.f32 0.0, %v2972
      %v2974 = vpop.f32.mrf.mxu0
      %v2975 = vpop.f32.mrf.mxu0
      %v2976 = vadd.f32 0.0, %v2975
      %v2977 = vpop.f32.mrf.mxu0
      %2978 = vmatprep.mubr.bf16.mxu0 0
      %2979 = vmatmul.mubr.bf16.gmra.mxu0 %v2865
      %v2980 = vpop.f32.mrf.mxu0
      %v2981 = vadd.f32 0.0, %v2980
      %v2982 = vpop.f32.mrf.mxu0
      %v2983 = vpop.f32.mrf.mxu0
      %v2984 = vadd.f32 0.0, %v2983
      %v2985 = vpop.f32.mrf.mxu0
      %2986 = vdwg.mxu0
      %v2987 = vmax.f32 %v2827, 1e-30
      %v2988 = vmax.f32 %v2829, 1e-30
      %v2989 = vmax.f32 %v2831, 1e-30
      %v2990 = vmax.f32 %v2833, 1e-30
      %v2991 = vmax.f32 %v2835, 1e-30
      %v2992 = vmax.f32 %v2837, 1e-30
      %v2993 = vmax.f32 %v2839, 1e-30
      %v2994 = vmax.f32 %v2841, 1e-30
      %v2995 = vmax.f32 %v2843, 1e-30
      %v2996 = vmax.f32 %v2845, 1e-30
      %v2997 = vmax.f32 %v2847, 1e-30
      %v2998 = vmax.f32 %v2849, 1e-30
      %v2999 = vmax.f32 %v2851, 1e-30
      %v3000 = vmax.f32 %v2853, 1e-30
      %v3001 = vmax.f32 %v2855, 1e-30
      %v3002 = vmax.f32 %v2857, 1e-30
      %v3003 = vrcp.pop %v2987
      %v3004 = vrcp.pop %v2988
      %v3005 = vrcp.pop %v2989
      %v3006 = vrcp.pop %v2990
      %v3007 = vrcp.pop %v2991
      %v3008 = vrcp.pop %v2992
      %v3009 = vrcp.pop %v2993
      %v3010 = vrcp.pop %v2994
      %v3011 = vrcp.pop %v2995
      %v3012 = vrcp.pop %v2996
      %v3013 = vrcp.pop %v2997
      %v3014 = vrcp.pop %v2998
      %v3015 = vrcp.pop %v2999
      %v3016 = vrcp.pop %v3000
      %v3017 = vrcp.pop %v3001
      %v3018 = vrcp.pop %v3002
      %v3019 = vmul.f32 %v2925, %v3003
      %v3020 = vmul.f32 %v2928, %v3004
      %v3021 = vmul.f32 %v2933, %v3005
      %v3022 = vmul.f32 %v2936, %v3006
      %v3023 = vmul.f32 %v2941, %v3007
      %v3024 = vmul.f32 %v2944, %v3008
      %v3025 = vmul.f32 %v2949, %v3009
      %v3026 = vmul.f32 %v2952, %v3010
      %v3027 = vmul.f32 %v2957, %v3011
      %v3028 = vmul.f32 %v2960, %v3012
      %v3029 = vmul.f32 %v2965, %v3013
      %v3030 = vmul.f32 %v2968, %v3014
      %v3031 = vmul.f32 %v2973, %v3015
      %v3032 = vmul.f32 %v2976, %v3016
      %v3033 = vmul.f32 %v2981, %v3017
      %v3034 = vmul.f32 %v2984, %v3018
      %v3035 = vpack.c.bf16 %v3020, %v3019
      %v3036 = vpack.c.bf16 %v3022, %v3021
      %v3037 = vpack.c.bf16 %v3024, %v3023
      %v3038 = vpack.c.bf16 %v3026, %v3025
      %v3039 = vpack.c.bf16 %v3028, %v3027
      %v3040 = vpack.c.bf16 %v3030, %v3029
      %v3041 = vpack.c.bf16 %v3032, %v3031
      %v3042 = vpack.c.bf16 %v3034, %v3033
      %s3043 = scalar_lea.vmem %s4, 12
      %v3044 = vld [vmem:[%s3043] sm:$0xf]
      %v3046 = vsel %vm752, %v3035, 0
      %v3049 = vsel %vm752, %v3036, 0
      %v3052 = vsel %vm752, %v3037, 0
      %v3055 = vsel %vm752, %v3038, 0
      %v3058 = vsel %vm752, %v3039, 0
      %v3061 = vsel %vm752, %v3040, 0
      %v3064 = vsel %vm752, %v3041, 0
      %v3067 = vsel %vm752, %v3042, 0
      %v3070 = vsel %vm1220, %v3044, 0
      %3072 = vmatprep.subr.bf16.mxu0 0
      %3073 = vmatpush1.bf16.msra.mxu0 0
      %3074 = vmatprep.subr.bf16.mxu0 0
      %3075 = vmatpush1.bf16.msra.mxu0 0
      %3076 = vmatprep.subr.bf16.mxu0 0
      %3077 = vmatpush1.bf16.msra.mxu0 0
      %3078 = vmatprep.subr.bf16.mxu0 0
      %3079 = vmatpush1.bf16.msra.mxu0 0
      %3080 = vmatprep.subr.bf16.mxu0 0
      %3081 = vmatpush1.bf16.msra.mxu0 0
      %3082 = vmatprep.subr.bf16.mxu0 0
      %3083 = vmatpush1.bf16.msra.mxu0 0
      %3084 = vmatprep.subr.bf16.mxu0 0
      %3085 = vmatpush1.bf16.msra.mxu0 0
      %3086 = vmatprep.subr.bf16.mxu0 0
      %3087 = vmatpush1.bf16.msra.mxu0 %v3070
      %3088 = vmatprep.subr.bf16.mxu0 0
      %3089 = vmatpush2.bf16.msra.mxu0 0
      %3090 = vmatprep.subr.bf16.mxu0 0
      %3091 = vmatpush2.bf16.msra.mxu0 0
      %3092 = vmatprep.subr.bf16.mxu0 0
      %3093 = vmatpush2.bf16.msra.mxu0 0
      %3094 = vmatprep.subr.bf16.mxu0 0
      %3095 = vmatpush2.bf16.msra.mxu0 0
      %3096 = vmatprep.subr.bf16.mxu0 0
      %3097 = vmatpush2.bf16.msra.mxu0 0
      %3098 = vmatprep.subr.bf16.mxu0 0
      %3099 = vmatpush2.bf16.msra.mxu0 0
      %3100 = vmatprep.subr.bf16.mxu0 0
      %3101 = vmatpush2.bf16.msra.mxu0 0
      %3102 = vmatprep.subr.bf16.mxu0 0
      %3103 = vmatpush2.bf16.msra.mxu0 0
      %3104 = vmatprep.mubr.bf16.mxu0 0
      %3105 = vmatmul.mubr.bf16.gmra.mxu0 %v3046
      %v3106 = vpop.f32.mrf.mxu0
      %v3107 = vadd.f32 0.0, %v3106
      %v3108 = vpop.f32.mrf.mxu0
      %v3109 = vpop.f32.mrf.mxu0
      %v3110 = vadd.f32 0.0, %v3109
      %v3111 = vpop.f32.mrf.mxu0
      %3112 = vmatprep.mubr.bf16.mxu0 0
      %3113 = vmatmul.mubr.bf16.gmra.mxu0 %v3049
      %v3114 = vpop.f32.mrf.mxu0
      %v3115 = vadd.f32 0.0, %v3114
      %v3116 = vpop.f32.mrf.mxu0
      %v3117 = vpop.f32.mrf.mxu0
      %v3118 = vadd.f32 0.0, %v3117
      %v3119 = vpop.f32.mrf.mxu0
      %3120 = vmatprep.mubr.bf16.mxu0 0
      %3121 = vmatmul.mubr.bf16.gmra.mxu0 %v3052
      %v3122 = vpop.f32.mrf.mxu0
      %v3123 = vadd.f32 0.0, %v3122
      %v3124 = vpop.f32.mrf.mxu0
      %v3125 = vpop.f32.mrf.mxu0
      %v3126 = vadd.f32 0.0, %v3125
      %v3127 = vpop.f32.mrf.mxu0
      %3128 = vmatprep.mubr.bf16.mxu0 0
      %3129 = vmatmul.mubr.bf16.gmra.mxu0 %v3055
      %v3130 = vpop.f32.mrf.mxu0
      %v3131 = vadd.f32 0.0, %v3130
      %v3132 = vpop.f32.mrf.mxu0
      %v3133 = vpop.f32.mrf.mxu0
      %v3134 = vadd.f32 0.0, %v3133
      %v3135 = vpop.f32.mrf.mxu0
      %3136 = vmatprep.mubr.bf16.mxu0 0
      %3137 = vmatmul.mubr.bf16.gmra.mxu0 %v3058
      %v3138 = vpop.f32.mrf.mxu0
      %v3139 = vadd.f32 0.0, %v3138
      %v3140 = vpop.f32.mrf.mxu0
      %v3141 = vpop.f32.mrf.mxu0
      %v3142 = vadd.f32 0.0, %v3141
      %v3143 = vpop.f32.mrf.mxu0
      %3144 = vmatprep.mubr.bf16.mxu0 0
      %3145 = vmatmul.mubr.bf16.gmra.mxu0 %v3061
      %v3146 = vpop.f32.mrf.mxu0
      %v3147 = vadd.f32 0.0, %v3146
      %v3148 = vpop.f32.mrf.mxu0
      %v3149 = vpop.f32.mrf.mxu0
      %v3150 = vadd.f32 0.0, %v3149
      %v3151 = vpop.f32.mrf.mxu0
      %3152 = vmatprep.mubr.bf16.mxu0 0
      %3153 = vmatmul.mubr.bf16.gmra.mxu0 %v3064
      %v3154 = vpop.f32.mrf.mxu0
      %v3155 = vadd.f32 0.0, %v3154
      %v3156 = vpop.f32.mrf.mxu0
      %v3157 = vpop.f32.mrf.mxu0
      %v3158 = vadd.f32 0.0, %v3157
      %v3159 = vpop.f32.mrf.mxu0
      %3160 = vmatprep.mubr.bf16.mxu0 0
      %3161 = vmatmul.mubr.bf16.gmra.mxu0 %v3067
      %v3162 = vpop.f32.mrf.mxu0
      %v3163 = vadd.f32 0.0, %v3162
      %v3164 = vpop.f32.mrf.mxu0
      %v3165 = vpop.f32.mrf.mxu0
      %v3166 = vadd.f32 0.0, %v3165
      %v3167 = vpop.f32.mrf.mxu0
      %3168 = vdwg.mxu0
      %v3169 = vadd.f32 %v2553, %v3107
      %v3170 = vadd.f32 %v2554, %v3110
      %v3171 = vadd.f32 %v2555, %v3115
      %v3172 = vadd.f32 %v2556, %v3118
      %v3173 = vadd.f32 %v2557, %v3123
      %v3174 = vadd.f32 %v2558, %v3126
      %v3175 = vadd.f32 %v2559, %v3131
      %v3176 = vadd.f32 %v2560, %v3134
      %v3177 = vadd.f32 %v2561, %v3139
      %v3178 = vadd.f32 %v2562, %v3142
      %v3179 = vadd.f32 %v2563, %v3147
      %v3180 = vadd.f32 %v2564, %v3150
      %v3181 = vadd.f32 %v2565, %v3155
      %v3182 = vadd.f32 %v2566, %v3158
      %v3183 = vadd.f32 %v2567, %v3163
      %v3184 = vadd.f32 %v2568, %v3166
      %v3185 = vsel %vm575, %v3169, 0.0
      %3186 = vadd.xlane.f32.xlu0 %v3185
      %v3187 = vpop.xlane.xlu0 %3186
      %v3188 = vsel %vm575, %v3170, 0.0
      %3189 = vadd.xlane.f32.xlu0 %v3188
      %v3190 = vpop.xlane.xlu0 %3189
      %v3191 = vsel %vm575, %v3171, 0.0
      %3192 = vadd.xlane.f32.xlu0 %v3191
      %v3193 = vpop.xlane.xlu0 %3192
      %v3194 = vsel %vm575, %v3172, 0.0
      %3195 = vadd.xlane.f32.xlu0 %v3194
      %v3196 = vpop.xlane.xlu0 %3195
      %v3197 = vsel %vm575, %v3173, 0.0
      %3198 = vadd.xlane.f32.xlu0 %v3197
      %v3199 = vpop.xlane.xlu0 %3198
      %v3200 = vsel %vm575, %v3174, 0.0
      %3201 = vadd.xlane.f32.xlu0 %v3200
      %v3202 = vpop.xlane.xlu0 %3201
      %v3203 = vsel %vm575, %v3175, 0.0
      %3204 = vadd.xlane.f32.xlu0 %v3203
      %v3205 = vpop.xlane.xlu0 %3204
      %v3206 = vsel %vm575, %v3176, 0.0
      %3207 = vadd.xlane.f32.xlu0 %v3206
      %v3208 = vpop.xlane.xlu0 %3207
      %v3209 = vsel %vm575, %v3177, 0.0
      %3210 = vadd.xlane.f32.xlu0 %v3209
      %v3211 = vpop.xlane.xlu0 %3210
      %v3212 = vsel %vm575, %v3178, 0.0
      %3213 = vadd.xlane.f32.xlu0 %v3212
      %v3214 = vpop.xlane.xlu0 %3213
      %v3215 = vsel %vm575, %v3179, 0.0
      %3216 = vadd.xlane.f32.xlu0 %v3215
      %v3217 = vpop.xlane.xlu0 %3216
      %v3218 = vsel %vm575, %v3180, 0.0
      %3219 = vadd.xlane.f32.xlu0 %v3218
      %v3220 = vpop.xlane.xlu0 %3219
      %v3221 = vsel %vm575, %v3181, 0.0
      %3222 = vadd.xlane.f32.xlu0 %v3221
      %v3223 = vpop.xlane.xlu0 %3222
      %v3224 = vsel %vm575, %v3182, 0.0
      %3225 = vadd.xlane.f32.xlu0 %v3224
      %v3226 = vpop.xlane.xlu0 %3225
      %v3227 = vsel %vm575, %v3183, 0.0
      %3228 = vadd.xlane.f32.xlu0 %v3227
      %v3229 = vpop.xlane.xlu0 %3228
      %v3230 = vsel %vm575, %v3184, 0.0
      %3231 = vadd.xlane.f32.xlu0 %v3230
      %v3232 = vpop.xlane.xlu0 %3231
      %v3233 = vrcp.pop 32.0
      %v3234 = vmul.f32 %v3187, %v3233
      %v3235 = vmul.f32 %v3190, %v3233
      %v3236 = vmul.f32 %v3193, %v3233
      %v3237 = vmul.f32 %v3196, %v3233
      %v3238 = vmul.f32 %v3199, %v3233
      %v3239 = vmul.f32 %v3202, %v3233
      %v3240 = vmul.f32 %v3205, %v3233
      %v3241 = vmul.f32 %v3208, %v3233
      %v3242 = vmul.f32 %v3211, %v3233
      %v3243 = vmul.f32 %v3214, %v3233
      %v3244 = vmul.f32 %v3217, %v3233
      %v3245 = vmul.f32 %v3220, %v3233
      %v3246 = vmul.f32 %v3223, %v3233
      %v3247 = vmul.f32 %v3226, %v3233
      %v3248 = vmul.f32 %v3229, %v3233
      %v3249 = vmul.f32 %v3232, %v3233
      %v3250 = vsub.f32 %v3169, %v3234
      %v3251 = vsub.f32 %v3170, %v3235
      %v3252 = vsub.f32 %v3171, %v3236
      %v3253 = vsub.f32 %v3172, %v3237
      %v3254 = vsub.f32 %v3173, %v3238
      %v3255 = vsub.f32 %v3174, %v3239
      %v3256 = vsub.f32 %v3175, %v3240
      %v3257 = vsub.f32 %v3176, %v3241
      %v3258 = vsub.f32 %v3177, %v3242
      %v3259 = vsub.f32 %v3178, %v3243
      %v3260 = vsub.f32 %v3179, %v3244
      %v3261 = vsub.f32 %v3180, %v3245
      %v3262 = vsub.f32 %v3181, %v3246
      %v3263 = vsub.f32 %v3182, %v3247
      %v3264 = vsub.f32 %v3183, %v3248
      %v3265 = vsub.f32 %v3184, %v3249
      %v3266 = vmul.f32 %v3250, %v3250
      %v3267 = vmul.f32 %v3251, %v3251
      %v3268 = vmul.f32 %v3252, %v3252
      %v3269 = vmul.f32 %v3253, %v3253
      %v3270 = vmul.f32 %v3254, %v3254
      %v3271 = vmul.f32 %v3255, %v3255
      %v3272 = vmul.f32 %v3256, %v3256
      %v3273 = vmul.f32 %v3257, %v3257
      %v3274 = vmul.f32 %v3258, %v3258
      %v3275 = vmul.f32 %v3259, %v3259
      %v3276 = vmul.f32 %v3260, %v3260
      %v3277 = vmul.f32 %v3261, %v3261
      %v3278 = vmul.f32 %v3262, %v3262
      %v3279 = vmul.f32 %v3263, %v3263
      %v3280 = vmul.f32 %v3264, %v3264
      %v3281 = vmul.f32 %v3265, %v3265
      %v3282 = vsel %vm575, %v3266, 0.0
      %3283 = vadd.xlane.f32.xlu0 %v3282
      %v3284 = vpop.xlane.xlu0 %3283
      %v3285 = vsel %vm575, %v3267, 0.0
      %3286 = vadd.xlane.f32.xlu0 %v3285
      %v3287 = vpop.xlane.xlu0 %3286
      %v3288 = vsel %vm575, %v3268, 0.0
      %3289 = vadd.xlane.f32.xlu0 %v3288
      %v3290 = vpop.xlane.xlu0 %3289
      %v3291 = vsel %vm575, %v3269, 0.0
      %3292 = vadd.xlane.f32.xlu0 %v3291
      %v3293 = vpop.xlane.xlu0 %3292
      %v3294 = vsel %vm575, %v3270, 0.0
      %3295 = vadd.xlane.f32.xlu0 %v3294
      %v3296 = vpop.xlane.xlu0 %3295
      %v3297 = vsel %vm575, %v3271, 0.0
      %3298 = vadd.xlane.f32.xlu0 %v3297
      %v3299 = vpop.xlane.xlu0 %3298
      %v3300 = vsel %vm575, %v3272, 0.0
      %3301 = vadd.xlane.f32.xlu0 %v3300
      %v3302 = vpop.xlane.xlu0 %3301
      %v3303 = vsel %vm575, %v3273, 0.0
      %3304 = vadd.xlane.f32.xlu0 %v3303
      %v3305 = vpop.xlane.xlu0 %3304
      %v3306 = vsel %vm575, %v3274, 0.0
      %3307 = vadd.xlane.f32.xlu0 %v3306
      %v3308 = vpop.xlane.xlu0 %3307
      %v3309 = vsel %vm575, %v3275, 0.0
      %3310 = vadd.xlane.f32.xlu0 %v3309
      %v3311 = vpop.xlane.xlu0 %3310
      %v3312 = vsel %vm575, %v3276, 0.0
      %3313 = vadd.xlane.f32.xlu0 %v3312
      %v3314 = vpop.xlane.xlu0 %3313
      %v3315 = vsel %vm575, %v3277, 0.0
      %3316 = vadd.xlane.f32.xlu0 %v3315
      %v3317 = vpop.xlane.xlu0 %3316
      %v3318 = vsel %vm575, %v3278, 0.0
      %3319 = vadd.xlane.f32.xlu0 %v3318
      %v3320 = vpop.xlane.xlu0 %3319
      %v3321 = vsel %vm575, %v3279, 0.0
      %3322 = vadd.xlane.f32.xlu0 %v3321
      %v3323 = vpop.xlane.xlu0 %3322
      %v3324 = vsel %vm575, %v3280, 0.0
      %3325 = vadd.xlane.f32.xlu0 %v3324
      %v3326 = vpop.xlane.xlu0 %3325
      %v3327 = vsel %vm575, %v3281, 0.0
      %3328 = vadd.xlane.f32.xlu0 %v3327
      %v3329 = vpop.xlane.xlu0 %3328
      %v3330 = vmul.f32 %v3284, %v3233
      %v3331 = vmul.f32 %v3287, %v3233
      %v3332 = vmul.f32 %v3290, %v3233
      %v3333 = vmul.f32 %v3293, %v3233
      %v3334 = vmul.f32 %v3296, %v3233
      %v3335 = vmul.f32 %v3299, %v3233
      %v3336 = vmul.f32 %v3302, %v3233
      %v3337 = vmul.f32 %v3305, %v3233
      %v3338 = vmul.f32 %v3308, %v3233
      %v3339 = vmul.f32 %v3311, %v3233
      %v3340 = vmul.f32 %v3314, %v3233
      %v3341 = vmul.f32 %v3317, %v3233
      %v3342 = vmul.f32 %v3320, %v3233
      %v3343 = vmul.f32 %v3323, %v3233
      %v3344 = vmul.f32 %v3326, %v3233
      %v3345 = vmul.f32 %v3329, %v3233
      %v3346 = vadd.f32 %v3330, 1e-05
      %v3347 = vadd.f32 %v3331, 1e-05
      %v3348 = vadd.f32 %v3332, 1e-05
      %v3349 = vadd.f32 %v3333, 1e-05
      %v3350 = vadd.f32 %v3334, 1e-05
      %v3351 = vadd.f32 %v3335, 1e-05
      %v3352 = vadd.f32 %v3336, 1e-05
      %v3353 = vadd.f32 %v3337, 1e-05
      %v3354 = vadd.f32 %v3338, 1e-05
      %v3355 = vadd.f32 %v3339, 1e-05
      %v3356 = vadd.f32 %v3340, 1e-05
      %v3357 = vadd.f32 %v3341, 1e-05
      %v3358 = vadd.f32 %v3342, 1e-05
      %v3359 = vadd.f32 %v3343, 1e-05
      %v3360 = vadd.f32 %v3344, 1e-05
      %v3361 = vadd.f32 %v3345, 1e-05
      %v3362 = vrsqrt.pop %v3346
      %v3363 = vrsqrt.pop %v3347
      %v3364 = vrsqrt.pop %v3348
      %v3365 = vrsqrt.pop %v3349
      %v3366 = vrsqrt.pop %v3350
      %v3367 = vrsqrt.pop %v3351
      %v3368 = vrsqrt.pop %v3352
      %v3369 = vrsqrt.pop %v3353
      %v3370 = vrsqrt.pop %v3354
      %v3371 = vrsqrt.pop %v3355
      %v3372 = vrsqrt.pop %v3356
      %v3373 = vrsqrt.pop %v3357
      %v3374 = vrsqrt.pop %v3358
      %v3375 = vrsqrt.pop %v3359
      %v3376 = vrsqrt.pop %v3360
      %v3377 = vrsqrt.pop %v3361
      %v3378 = vmul.f32 %v3250, %v3362
      %v3379 = vmul.f32 %v3251, %v3363
      %v3380 = vmul.f32 %v3252, %v3364
      %v3381 = vmul.f32 %v3253, %v3365
      %v3382 = vmul.f32 %v3254, %v3366
      %v3383 = vmul.f32 %v3255, %v3367
      %v3384 = vmul.f32 %v3256, %v3368
      %v3385 = vmul.f32 %v3257, %v3369
      %v3386 = vmul.f32 %v3258, %v3370
      %v3387 = vmul.f32 %v3259, %v3371
      %v3388 = vmul.f32 %v3260, %v3372
      %v3389 = vmul.f32 %v3261, %v3373
      %v3390 = vmul.f32 %v3262, %v3374
      %v3391 = vmul.f32 %v3263, %v3375
      %v3392 = vmul.f32 %v3264, %v3376
      %v3393 = vmul.f32 %v3265, %v3377
      %v3394 = vld [vmem:[%s6] sm:$0x1]
      %v3396 = vlaneseq
      %v3397 = vshrl.u32 %v3396, 7
      %v3398 = vsub.s32 0, %v3397
      %v3399 = vrot.slane %v3394, %v3398
      %v3401 = vmul.f32 %v3378, %v3399
      %v3402 = vmul.f32 %v3379, %v3399
      %v3403 = vmul.f32 %v3380, %v3399
      %v3404 = vmul.f32 %v3381, %v3399
      %v3405 = vmul.f32 %v3382, %v3399
      %v3406 = vmul.f32 %v3383, %v3399
      %v3407 = vmul.f32 %v3384, %v3399
      %v3408 = vmul.f32 %v3385, %v3399
      %v3409 = vmul.f32 %v3386, %v3399
      %v3410 = vmul.f32 %v3387, %v3399
      %v3411 = vmul.f32 %v3388, %v3399
      %v3412 = vmul.f32 %v3389, %v3399
      %v3413 = vmul.f32 %v3390, %v3399
      %v3414 = vmul.f32 %v3391, %v3399
      %v3415 = vmul.f32 %v3392, %v3399
      %v3416 = vmul.f32 %v3393, %v3399
      %v3417 = vld [vmem:[%s7] sm:$0x1]
      %v3419 = vlaneseq
      %v3420 = vshrl.u32 %v3419, 7
      %v3421 = vsub.s32 0, %v3420
      %v3422 = vrot.slane %v3417, %v3421
      %v3424 = vadd.f32 %v3401, %v3422
      %v3425 = vadd.f32 %v3402, %v3422
      %v3426 = vadd.f32 %v3403, %v3422
      %v3427 = vadd.f32 %v3404, %v3422
      %v3428 = vadd.f32 %v3405, %v3422
      %v3429 = vadd.f32 %v3406, %v3422
      %v3430 = vadd.f32 %v3407, %v3422
      %v3431 = vadd.f32 %v3408, %v3422
      %v3432 = vadd.f32 %v3409, %v3422
      %v3433 = vadd.f32 %v3410, %v3422
      %v3434 = vadd.f32 %v3411, %v3422
      %v3435 = vadd.f32 %v3412, %v3422
      %v3436 = vadd.f32 %v3413, %v3422
      %v3437 = vadd.f32 %v3414, %v3422
      %v3438 = vadd.f32 %v3415, %v3422
      %v3439 = vadd.f32 %v3416, %v3422
      %v3440 = vpack.c.bf16 %v3425, %v3424
      %v3441 = vpack.c.bf16 %v3427, %v3426
      %v3442 = vpack.c.bf16 %v3429, %v3428
      %v3443 = vpack.c.bf16 %v3431, %v3430
      %v3444 = vpack.c.bf16 %v3433, %v3432
      %v3445 = vpack.c.bf16 %v3435, %v3434
      %v3446 = vpack.c.bf16 %v3437, %v3436
      %v3447 = vpack.c.bf16 %v3439, %v3438
      %v3448 = vld [vmem:[%s8] sm:$0xf]
      %v3449 = vld [vmem:[%s8 + $0x4] sm:$0xf]
      %v3450 = vld [vmem:[%s8 + $0x8] sm:$0xf]
      %v3451 = vld [vmem:[%s8 + $0xc] sm:$0xf]
      %v3452 = vld [vmem:[%s9] sm:$0x1]
      %v3454 = vlaneseq
      %v3455 = vshrl.u32 %v3454, 7
      %v3456 = vsub.s32 0, %v3455
      %v3457 = vrot.slane %v3452, %v3456
      %v3463 = vunpack.c.l.b16 %v3448
      %v3464 = vunpack.c.l.b16 %v3449
      %v3465 = vunpack.c.l.b16 %v3450
      %v3466 = vunpack.c.l.b16 %v3451
      %v3467 = vpack.c.b16 %v3464, %v3463
      %v3468 = vpack.c.b16 %v3466, %v3465
      %v3472 = vsel %vm575, %v3440, 0
      %v3475 = vsel %vm575, %v3441, 0
      %v3478 = vsel %vm575, %v3442, 0
      %v3481 = vsel %vm575, %v3443, 0
      %v3484 = vsel %vm575, %v3444, 0
      %v3487 = vsel %vm575, %v3445, 0
      %v3490 = vsel %vm575, %v3446, 0
      %v3493 = vsel %vm575, %v3447, 0
      %3495 = vmatprep.subr.bf16.mxu0 0
      %3496 = vmatpush1.bf16.msra.mxu0 0
      %3497 = vmatprep.subr.bf16.mxu0 0
      %3498 = vmatpush1.bf16.msra.mxu0 0
      %3499 = vmatprep.subr.bf16.mxu0 0
      %3500 = vmatpush1.bf16.msra.mxu0 0
      %3501 = vmatprep.subr.bf16.mxu0 0
      %3502 = vmatpush1.bf16.msra.mxu0 0
      %3503 = vmatprep.subr.bf16.mxu0 0
      %3504 = vmatpush1.bf16.msra.mxu0 0
      %3505 = vmatprep.subr.bf16.mxu0 0
      %3506 = vmatpush1.bf16.msra.mxu0 0
      %3507 = vmatprep.subr.bf16.mxu0 0
      %3508 = vmatpush1.bf16.msra.mxu0 %v3468
      %3509 = vmatprep.subr.bf16.mxu0 0
      %3510 = vmatpush1.bf16.msra.mxu0 %v3467
      %3511 = vmatprep.subr.bf16.mxu0 0
      %3512 = vmatpush2.bf16.msra.mxu0 0
      %3513 = vmatprep.subr.bf16.mxu0 0
      %3514 = vmatpush2.bf16.msra.mxu0 0
      %3515 = vmatprep.subr.bf16.mxu0 0
      %3516 = vmatpush2.bf16.msra.mxu0 0
      %3517 = vmatprep.subr.bf16.mxu0 0
      %3518 = vmatpush2.bf16.msra.mxu0 0
      %3519 = vmatprep.subr.bf16.mxu0 0
      %3520 = vmatpush2.bf16.msra.mxu0 0
      %3521 = vmatprep.subr.bf16.mxu0 0
      %3522 = vmatpush2.bf16.msra.mxu0 0
      %3523 = vmatprep.subr.bf16.mxu0 0
      %3524 = vmatpush2.bf16.msra.mxu0 0
      %3525 = vmatprep.subr.bf16.mxu0 0
      %3526 = vmatpush2.bf16.msra.mxu0 0
      %3527 = vmatprep.mubr.bf16.mxu0 0
      %3528 = vmatmul.mubr.bf16.gmra.mxu0 %v3472
      %v3529 = vpop.f32.mrf.mxu0
      %v3530 = vadd.f32 %v3457, %v3529
      %v3531 = vpop.f32.mrf.mxu0
      %v3532 = vpop.f32.mrf.mxu0
      %v3533 = vadd.f32 %v3457, %v3532
      %v3534 = vpop.f32.mrf.mxu0
      %3535 = vmatprep.mubr.bf16.mxu0 0
      %3536 = vmatmul.mubr.bf16.gmra.mxu0 %v3475
      %v3537 = vpop.f32.mrf.mxu0
      %v3538 = vadd.f32 %v3457, %v3537
      %v3539 = vpop.f32.mrf.mxu0
      %v3540 = vpop.f32.mrf.mxu0
      %v3541 = vadd.f32 %v3457, %v3540
      %v3542 = vpop.f32.mrf.mxu0
      %3543 = vmatprep.mubr.bf16.mxu0 0
      %3544 = vmatmul.mubr.bf16.gmra.mxu0 %v3478
      %v3545 = vpop.f32.mrf.mxu0
      %v3546 = vadd.f32 %v3457, %v3545
      %v3547 = vpop.f32.mrf.mxu0
      %v3548 = vpop.f32.mrf.mxu0
      %v3549 = vadd.f32 %v3457, %v3548
      %v3550 = vpop.f32.mrf.mxu0
      %3551 = vmatprep.mubr.bf16.mxu0 0
      %3552 = vmatmul.mubr.bf16.gmra.mxu0 %v3481
      %v3553 = vpop.f32.mrf.mxu0
      %v3554 = vadd.f32 %v3457, %v3553
      %v3555 = vpop.f32.mrf.mxu0
      %v3556 = vpop.f32.mrf.mxu0
      %v3557 = vadd.f32 %v3457, %v3556
      %v3558 = vpop.f32.mrf.mxu0
      %3559 = vmatprep.mubr.bf16.mxu0 0
      %3560 = vmatmul.mubr.bf16.gmra.mxu0 %v3484
      %v3561 = vpop.f32.mrf.mxu0
      %v3562 = vadd.f32 %v3457, %v3561
      %v3563 = vpop.f32.mrf.mxu0
      %v3564 = vpop.f32.mrf.mxu0
      %v3565 = vadd.f32 %v3457, %v3564
      %v3566 = vpop.f32.mrf.mxu0
      %3567 = vmatprep.mubr.bf16.mxu0 0
      %3568 = vmatmul.mubr.bf16.gmra.mxu0 %v3487
      %v3569 = vpop.f32.mrf.mxu0
      %v3570 = vadd.f32 %v3457, %v3569
      %v3571 = vpop.f32.mrf.mxu0
      %v3572 = vpop.f32.mrf.mxu0
      %v3573 = vadd.f32 %v3457, %v3572
      %v3574 = vpop.f32.mrf.mxu0
      %3575 = vmatprep.mubr.bf16.mxu0 0
      %3576 = vmatmul.mubr.bf16.gmra.mxu0 %v3490
      %v3577 = vpop.f32.mrf.mxu0
      %v3578 = vadd.f32 %v3457, %v3577
      %v3579 = vpop.f32.mrf.mxu0
      %v3580 = vpop.f32.mrf.mxu0
      %v3581 = vadd.f32 %v3457, %v3580
      %v3582 = vpop.f32.mrf.mxu0
      %3583 = vmatprep.mubr.bf16.mxu0 0
      %3584 = vmatmul.mubr.bf16.gmra.mxu0 %v3493
      %v3585 = vpop.f32.mrf.mxu0
      %v3586 = vadd.f32 %v3457, %v3585
      %v3587 = vpop.f32.mrf.mxu0
      %v3588 = vpop.f32.mrf.mxu0
      %v3589 = vadd.f32 %v3457, %v3588
      %v3590 = vpop.f32.mrf.mxu0
      %3591 = vdwg.mxu0
      %v3592 = vmax.f32 %v3530, 0.0
      %v3593 = vmax.f32 %v3533, 0.0
      %v3594 = vmax.f32 %v3538, 0.0
      %v3595 = vmax.f32 %v3541, 0.0
      %v3596 = vmax.f32 %v3546, 0.0
      %v3597 = vmax.f32 %v3549, 0.0
      %v3598 = vmax.f32 %v3554, 0.0
      %v3599 = vmax.f32 %v3557, 0.0
      %v3600 = vmax.f32 %v3562, 0.0
      %v3601 = vmax.f32 %v3565, 0.0
      %v3602 = vmax.f32 %v3570, 0.0
      %v3603 = vmax.f32 %v3573, 0.0
      %v3604 = vmax.f32 %v3578, 0.0
      %v3605 = vmax.f32 %v3581, 0.0
      %v3606 = vmax.f32 %v3586, 0.0
      %v3607 = vmax.f32 %v3589, 0.0
      %v3608 = vpack.c.bf16 %v3593, %v3592
      %v3609 = vpack.c.bf16 %v3595, %v3594
      %v3610 = vpack.c.bf16 %v3597, %v3596
      %v3611 = vpack.c.bf16 %v3599, %v3598
      %v3612 = vpack.c.bf16 %v3601, %v3600
      %v3613 = vpack.c.bf16 %v3603, %v3602
      %v3614 = vpack.c.bf16 %v3605, %v3604
      %v3615 = vpack.c.bf16 %v3607, %v3606
      %v3616 = vld [vmem:[%s10] sm:$0xf]
      %v3617 = vld [vmem:[%s10 + $0x4] sm:$0xf]
      %v3618 = vld [vmem:[%s10 + $0x8] sm:$0xf]
      %v3619 = vld [vmem:[%s10 + $0xc] sm:$0xf]
      %v3620 = vld [vmem:[%s10 + $0x10] sm:$0xf]
      %v3621 = vld [vmem:[%s10 + $0x14] sm:$0xf]
      %v3622 = vld [vmem:[%s10 + $0x18] sm:$0xf]
      %v3623 = vld [vmem:[%s10 + $0x1c] sm:$0xf]
      %v3624 = vld [vmem:[%s11] sm:$0x1]
      %v3626 = vlaneseq
      %v3627 = vshrl.u32 %v3626, 7
      %v3628 = vsub.s32 0, %v3627
      %v3629 = vrot.slane %v3624, %v3628
      %v3639 = vunpack.c.l.b16 %v3616
      %v3640 = vunpack.c.l.b16 %v3617
      %v3641 = vunpack.c.l.b16 %v3618
      %v3642 = vunpack.c.l.b16 %v3619
      %v3643 = vunpack.c.l.b16 %v3620
      %v3644 = vunpack.c.l.b16 %v3621
      %v3645 = vunpack.c.l.b16 %v3622
      %v3646 = vunpack.c.l.b16 %v3623
      %v3647 = vpack.c.b16 %v3640, %v3639
      %v3648 = vpack.c.b16 %v3642, %v3641
      %v3649 = vpack.c.b16 %v3644, %v3643
      %v3650 = vpack.c.b16 %v3646, %v3645
      %vm3655 = vcmask 523264
      %v3657 = vsel %vm3655, %v3608, 0
      %v3660 = vsel %vm3655, %v3609, 0
      %v3663 = vsel %vm3655, %v3610, 0
      %v3666 = vsel %vm3655, %v3611, 0
      %v3669 = vsel %vm3655, %v3612, 0
      %v3672 = vsel %vm3655, %v3613, 0
      %v3675 = vsel %vm3655, %v3614, 0
      %v3678 = vsel %vm3655, %v3615, 0
      %3680 = vmatprep.subr.bf16.mxu0 0
      %3681 = vmatpush1.bf16.msra.mxu0 0
      %3682 = vmatprep.subr.bf16.mxu0 0
      %3683 = vmatpush1.bf16.msra.mxu0 0
      %3684 = vmatprep.subr.bf16.mxu0 0
      %3685 = vmatpush1.bf16.msra.mxu0 0
      %3686 = vmatprep.subr.bf16.mxu0 0
      %3687 = vmatpush1.bf16.msra.mxu0 0
      %3688 = vmatprep.subr.bf16.mxu0 0
      %3689 = vmatpush1.bf16.msra.mxu0 %v3650
      %3690 = vmatprep.subr.bf16.mxu0 0
      %3691 = vmatpush1.bf16.msra.mxu0 %v3649
      %3692 = vmatprep.subr.bf16.mxu0 0
      %3693 = vmatpush1.bf16.msra.mxu0 %v3648
      %3694 = vmatprep.subr.bf16.mxu0 0
      %3695 = vmatpush1.bf16.msra.mxu0 %v3647
      %3696 = vmatprep.subr.bf16.mxu0 0
      %3697 = vmatpush2.bf16.msra.mxu0 0
      %3698 = vmatprep.subr.bf16.mxu0 0
      %3699 = vmatpush2.bf16.msra.mxu0 0
      %3700 = vmatprep.subr.bf16.mxu0 0
      %3701 = vmatpush2.bf16.msra.mxu0 0
      %3702 = vmatprep.subr.bf16.mxu0 0
      %3703 = vmatpush2.bf16.msra.mxu0 0
      %3704 = vmatprep.subr.bf16.mxu0 0
      %3705 = vmatpush2.bf16.msra.mxu0 0
      %3706 = vmatprep.subr.bf16.mxu0 0
      %3707 = vmatpush2.bf16.msra.mxu0 0
      %3708 = vmatprep.subr.bf16.mxu0 0
      %3709 = vmatpush2.bf16.msra.mxu0 0
      %3710 = vmatprep.subr.bf16.mxu0 0
      %3711 = vmatpush2.bf16.msra.mxu0 0
      %3712 = vmatprep.mubr.bf16.mxu0 0
      %3713 = vmatmul.mubr.bf16.gmra.mxu0 %v3657
      %v3714 = vpop.f32.mrf.mxu0
      %v3715 = vadd.f32 %v3629, %v3714
      %v3716 = vpop.f32.mrf.mxu0
      %v3717 = vpop.f32.mrf.mxu0
      %v3718 = vadd.f32 %v3629, %v3717
      %v3719 = vpop.f32.mrf.mxu0
      %3720 = vmatprep.mubr.bf16.mxu0 0
      %3721 = vmatmul.mubr.bf16.gmra.mxu0 %v3660
      %v3722 = vpop.f32.mrf.mxu0
      %v3723 = vadd.f32 %v3629, %v3722
      %v3724 = vpop.f32.mrf.mxu0
      %v3725 = vpop.f32.mrf.mxu0
      %v3726 = vadd.f32 %v3629, %v3725
      %v3727 = vpop.f32.mrf.mxu0
      %3728 = vmatprep.mubr.bf16.mxu0 0
      %3729 = vmatmul.mubr.bf16.gmra.mxu0 %v3663
      %v3730 = vpop.f32.mrf.mxu0
      %v3731 = vadd.f32 %v3629, %v3730
      %v3732 = vpop.f32.mrf.mxu0
      %v3733 = vpop.f32.mrf.mxu0
      %v3734 = vadd.f32 %v3629, %v3733
      %v3735 = vpop.f32.mrf.mxu0
      %3736 = vmatprep.mubr.bf16.mxu0 0
      %3737 = vmatmul.mubr.bf16.gmra.mxu0 %v3666
      %v3738 = vpop.f32.mrf.mxu0
      %v3739 = vadd.f32 %v3629, %v3738
      %v3740 = vpop.f32.mrf.mxu0
      %v3741 = vpop.f32.mrf.mxu0
      %v3742 = vadd.f32 %v3629, %v3741
      %v3743 = vpop.f32.mrf.mxu0
      %3744 = vmatprep.mubr.bf16.mxu0 0
      %3745 = vmatmul.mubr.bf16.gmra.mxu0 %v3669
      %v3746 = vpop.f32.mrf.mxu0
      %v3747 = vadd.f32 %v3629, %v3746
      %v3748 = vpop.f32.mrf.mxu0
      %v3749 = vpop.f32.mrf.mxu0
      %v3750 = vadd.f32 %v3629, %v3749
      %v3751 = vpop.f32.mrf.mxu0
      %3752 = vmatprep.mubr.bf16.mxu0 0
      %3753 = vmatmul.mubr.bf16.gmra.mxu0 %v3672
      %v3754 = vpop.f32.mrf.mxu0
      %v3755 = vadd.f32 %v3629, %v3754
      %v3756 = vpop.f32.mrf.mxu0
      %v3757 = vpop.f32.mrf.mxu0
      %v3758 = vadd.f32 %v3629, %v3757
      %v3759 = vpop.f32.mrf.mxu0
      %3760 = vmatprep.mubr.bf16.mxu0 0
      %3761 = vmatmul.mubr.bf16.gmra.mxu0 %v3675
      %v3762 = vpop.f32.mrf.mxu0
      %v3763 = vadd.f32 %v3629, %v3762
      %v3764 = vpop.f32.mrf.mxu0
      %v3765 = vpop.f32.mrf.mxu0
      %v3766 = vadd.f32 %v3629, %v3765
      %v3767 = vpop.f32.mrf.mxu0
      %3768 = vmatprep.mubr.bf16.mxu0 0
      %3769 = vmatmul.mubr.bf16.gmra.mxu0 %v3678
      %v3770 = vpop.f32.mrf.mxu0
      %v3771 = vadd.f32 %v3629, %v3770
      %v3772 = vpop.f32.mrf.mxu0
      %v3773 = vpop.f32.mrf.mxu0
      %v3774 = vadd.f32 %v3629, %v3773
      %v3775 = vpop.f32.mrf.mxu0
      %3776 = vdwg.mxu0
      %v3777 = vadd.f32 %v3424, %v3715
      %v3778 = vadd.f32 %v3425, %v3718
      %v3779 = vadd.f32 %v3426, %v3723
      %v3780 = vadd.f32 %v3427, %v3726
      %v3781 = vadd.f32 %v3428, %v3731
      %v3782 = vadd.f32 %v3429, %v3734
      %v3783 = vadd.f32 %v3430, %v3739
      %v3784 = vadd.f32 %v3431, %v3742
      %v3785 = vadd.f32 %v3432, %v3747
      %v3786 = vadd.f32 %v3433, %v3750
      %v3787 = vadd.f32 %v3434, %v3755
      %v3788 = vadd.f32 %v3435, %v3758
      %v3789 = vadd.f32 %v3436, %v3763
      %v3790 = vadd.f32 %v3437, %v3766
      %v3791 = vadd.f32 %v3438, %v3771
      %v3792 = vadd.f32 %v3439, %v3774
      %v3793 = vsel %vm575, %v3777, 0.0
      %3794 = vadd.xlane.f32.xlu0 %v3793
      %v3795 = vpop.xlane.xlu0 %3794
      %v3796 = vsel %vm575, %v3778, 0.0
      %3797 = vadd.xlane.f32.xlu0 %v3796
      %v3798 = vpop.xlane.xlu0 %3797
      %v3799 = vsel %vm575, %v3779, 0.0
      %3800 = vadd.xlane.f32.xlu0 %v3799
      %v3801 = vpop.xlane.xlu0 %3800
      %v3802 = vsel %vm575, %v3780, 0.0
      %3803 = vadd.xlane.f32.xlu0 %v3802
      %v3804 = vpop.xlane.xlu0 %3803
      %v3805 = vsel %vm575, %v3781, 0.0
      %3806 = vadd.xlane.f32.xlu0 %v3805
      %v3807 = vpop.xlane.xlu0 %3806
      %v3808 = vsel %vm575, %v3782, 0.0
      %3809 = vadd.xlane.f32.xlu0 %v3808
      %v3810 = vpop.xlane.xlu0 %3809
      %v3811 = vsel %vm575, %v3783, 0.0
      %3812 = vadd.xlane.f32.xlu0 %v3811
      %v3813 = vpop.xlane.xlu0 %3812
      %v3814 = vsel %vm575, %v3784, 0.0
      %3815 = vadd.xlane.f32.xlu0 %v3814
      %v3816 = vpop.xlane.xlu0 %3815
      %v3817 = vsel %vm575, %v3785, 0.0
      %3818 = vadd.xlane.f32.xlu0 %v3817
      %v3819 = vpop.xlane.xlu0 %3818
      %v3820 = vsel %vm575, %v3786, 0.0
      %3821 = vadd.xlane.f32.xlu0 %v3820
      %v3822 = vpop.xlane.xlu0 %3821
      %v3823 = vsel %vm575, %v3787, 0.0
      %3824 = vadd.xlane.f32.xlu0 %v3823
      %v3825 = vpop.xlane.xlu0 %3824
      %v3826 = vsel %vm575, %v3788, 0.0
      %3827 = vadd.xlane.f32.xlu0 %v3826
      %v3828 = vpop.xlane.xlu0 %3827
      %v3829 = vsel %vm575, %v3789, 0.0
      %3830 = vadd.xlane.f32.xlu0 %v3829
      %v3831 = vpop.xlane.xlu0 %3830
      %v3832 = vsel %vm575, %v3790, 0.0
      %3833 = vadd.xlane.f32.xlu0 %v3832
      %v3834 = vpop.xlane.xlu0 %3833
      %v3835 = vsel %vm575, %v3791, 0.0
      %3836 = vadd.xlane.f32.xlu0 %v3835
      %v3837 = vpop.xlane.xlu0 %3836
      %v3838 = vsel %vm575, %v3792, 0.0
      %3839 = vadd.xlane.f32.xlu0 %v3838
      %v3840 = vpop.xlane.xlu0 %3839
      %v3841 = vmul.f32 %v3795, %v3233
      %v3842 = vmul.f32 %v3798, %v3233
      %v3843 = vmul.f32 %v3801, %v3233
      %v3844 = vmul.f32 %v3804, %v3233
      %v3845 = vmul.f32 %v3807, %v3233
      %v3846 = vmul.f32 %v3810, %v3233
      %v3847 = vmul.f32 %v3813, %v3233
      %v3848 = vmul.f32 %v3816, %v3233
      %v3849 = vmul.f32 %v3819, %v3233
      %v3850 = vmul.f32 %v3822, %v3233
      %v3851 = vmul.f32 %v3825, %v3233
      %v3852 = vmul.f32 %v3828, %v3233
      %v3853 = vmul.f32 %v3831, %v3233
      %v3854 = vmul.f32 %v3834, %v3233
      %v3855 = vmul.f32 %v3837, %v3233
      %v3856 = vmul.f32 %v3840, %v3233
      %v3857 = vsub.f32 %v3777, %v3841
      %v3858 = vsub.f32 %v3778, %v3842
      %v3859 = vsub.f32 %v3779, %v3843
      %v3860 = vsub.f32 %v3780, %v3844
      %v3861 = vsub.f32 %v3781, %v3845
      %v3862 = vsub.f32 %v3782, %v3846
      %v3863 = vsub.f32 %v3783, %v3847
      %v3864 = vsub.f32 %v3784, %v3848
      %v3865 = vsub.f32 %v3785, %v3849
      %v3866 = vsub.f32 %v3786, %v3850
      %v3867 = vsub.f32 %v3787, %v3851
      %v3868 = vsub.f32 %v3788, %v3852
      %v3869 = vsub.f32 %v3789, %v3853
      %v3870 = vsub.f32 %v3790, %v3854
      %v3871 = vsub.f32 %v3791, %v3855
      %v3872 = vsub.f32 %v3792, %v3856
      %v3873 = vmul.f32 %v3857, %v3857
      %v3874 = vmul.f32 %v3858, %v3858
      %v3875 = vmul.f32 %v3859, %v3859
      %v3876 = vmul.f32 %v3860, %v3860
      %v3877 = vmul.f32 %v3861, %v3861
      %v3878 = vmul.f32 %v3862, %v3862
      %v3879 = vmul.f32 %v3863, %v3863
      %v3880 = vmul.f32 %v3864, %v3864
      %v3881 = vmul.f32 %v3865, %v3865
      %v3882 = vmul.f32 %v3866, %v3866
      %v3883 = vmul.f32 %v3867, %v3867
      %v3884 = vmul.f32 %v3868, %v3868
      %v3885 = vmul.f32 %v3869, %v3869
      %v3886 = vmul.f32 %v3870, %v3870
      %v3887 = vmul.f32 %v3871, %v3871
      %v3888 = vmul.f32 %v3872, %v3872
      %v3889 = vsel %vm575, %v3873, 0.0
      %3890 = vadd.xlane.f32.xlu0 %v3889
      %v3891 = vpop.xlane.xlu0 %3890
      %v3892 = vsel %vm575, %v3874, 0.0
      %3893 = vadd.xlane.f32.xlu0 %v3892
      %v3894 = vpop.xlane.xlu0 %3893
      %v3895 = vsel %vm575, %v3875, 0.0
      %3896 = vadd.xlane.f32.xlu0 %v3895
      %v3897 = vpop.xlane.xlu0 %3896
      %v3898 = vsel %vm575, %v3876, 0.0
      %3899 = vadd.xlane.f32.xlu0 %v3898
      %v3900 = vpop.xlane.xlu0 %3899
      %v3901 = vsel %vm575, %v3877, 0.0
      %3902 = vadd.xlane.f32.xlu0 %v3901
      %v3903 = vpop.xlane.xlu0 %3902
      %v3904 = vsel %vm575, %v3878, 0.0
      %3905 = vadd.xlane.f32.xlu0 %v3904
      %v3906 = vpop.xlane.xlu0 %3905
      %v3907 = vsel %vm575, %v3879, 0.0
      %3908 = vadd.xlane.f32.xlu0 %v3907
      %v3909 = vpop.xlane.xlu0 %3908
      %v3910 = vsel %vm575, %v3880, 0.0
      %3911 = vadd.xlane.f32.xlu0 %v3910
      %v3912 = vpop.xlane.xlu0 %3911
      %v3913 = vsel %vm575, %v3881, 0.0
      %3914 = vadd.xlane.f32.xlu0 %v3913
      %v3915 = vpop.xlane.xlu0 %3914
      %v3916 = vsel %vm575, %v3882, 0.0
      %3917 = vadd.xlane.f32.xlu0 %v3916
      %v3918 = vpop.xlane.xlu0 %3917
      %v3919 = vsel %vm575, %v3883, 0.0
      %3920 = vadd.xlane.f32.xlu0 %v3919
      %v3921 = vpop.xlane.xlu0 %3920
      %v3922 = vsel %vm575, %v3884, 0.0
      %3923 = vadd.xlane.f32.xlu0 %v3922
      %v3924 = vpop.xlane.xlu0 %3923
      %v3925 = vsel %vm575, %v3885, 0.0
      %3926 = vadd.xlane.f32.xlu0 %v3925
      %v3927 = vpop.xlane.xlu0 %3926
      %v3928 = vsel %vm575, %v3886, 0.0
      %3929 = vadd.xlane.f32.xlu0 %v3928
      %v3930 = vpop.xlane.xlu0 %3929
      %v3931 = vsel %vm575, %v3887, 0.0
      %3932 = vadd.xlane.f32.xlu0 %v3931
      %v3933 = vpop.xlane.xlu0 %3932
      %v3934 = vsel %vm575, %v3888, 0.0
      %3935 = vadd.xlane.f32.xlu0 %v3934
      %v3936 = vpop.xlane.xlu0 %3935
      %v3937 = vmul.f32 %v3891, %v3233
      %v3938 = vmul.f32 %v3894, %v3233
      %v3939 = vmul.f32 %v3897, %v3233
      %v3940 = vmul.f32 %v3900, %v3233
      %v3941 = vmul.f32 %v3903, %v3233
      %v3942 = vmul.f32 %v3906, %v3233
      %v3943 = vmul.f32 %v3909, %v3233
      %v3944 = vmul.f32 %v3912, %v3233
      %v3945 = vmul.f32 %v3915, %v3233
      %v3946 = vmul.f32 %v3918, %v3233
      %v3947 = vmul.f32 %v3921, %v3233
      %v3948 = vmul.f32 %v3924, %v3233
      %v3949 = vmul.f32 %v3927, %v3233
      %v3950 = vmul.f32 %v3930, %v3233
      %v3951 = vmul.f32 %v3933, %v3233
      %v3952 = vmul.f32 %v3936, %v3233
      %v3953 = vadd.f32 %v3937, 1e-05
      %v3954 = vadd.f32 %v3938, 1e-05
      %v3955 = vadd.f32 %v3939, 1e-05
      %v3956 = vadd.f32 %v3940, 1e-05
      %v3957 = vadd.f32 %v3941, 1e-05
      %v3958 = vadd.f32 %v3942, 1e-05
      %v3959 = vadd.f32 %v3943, 1e-05
      %v3960 = vadd.f32 %v3944, 1e-05
      %v3961 = vadd.f32 %v3945, 1e-05
      %v3962 = vadd.f32 %v3946, 1e-05
      %v3963 = vadd.f32 %v3947, 1e-05
      %v3964 = vadd.f32 %v3948, 1e-05
      %v3965 = vadd.f32 %v3949, 1e-05
      %v3966 = vadd.f32 %v3950, 1e-05
      %v3967 = vadd.f32 %v3951, 1e-05
      %v3968 = vadd.f32 %v3952, 1e-05
      %v3969 = vrsqrt.pop %v3953
      %v3970 = vrsqrt.pop %v3954
      %v3971 = vrsqrt.pop %v3955
      %v3972 = vrsqrt.pop %v3956
      %v3973 = vrsqrt.pop %v3957
      %v3974 = vrsqrt.pop %v3958
      %v3975 = vrsqrt.pop %v3959
      %v3976 = vrsqrt.pop %v3960
      %v3977 = vrsqrt.pop %v3961
      %v3978 = vrsqrt.pop %v3962
      %v3979 = vrsqrt.pop %v3963
      %v3980 = vrsqrt.pop %v3964
      %v3981 = vrsqrt.pop %v3965
      %v3982 = vrsqrt.pop %v3966
      %v3983 = vrsqrt.pop %v3967
      %v3984 = vrsqrt.pop %v3968
      %v3985 = vmul.f32 %v3857, %v3969
      %v3986 = vmul.f32 %v3858, %v3970
      %v3987 = vmul.f32 %v3859, %v3971
      %v3988 = vmul.f32 %v3860, %v3972
      %v3989 = vmul.f32 %v3861, %v3973
      %v3990 = vmul.f32 %v3862, %v3974
      %v3991 = vmul.f32 %v3863, %v3975
      %v3992 = vmul.f32 %v3864, %v3976
      %v3993 = vmul.f32 %v3865, %v3977
      %v3994 = vmul.f32 %v3866, %v3978
      %v3995 = vmul.f32 %v3867, %v3979
      %v3996 = vmul.f32 %v3868, %v3980
      %v3997 = vmul.f32 %v3869, %v3981
      %v3998 = vmul.f32 %v3870, %v3982
      %v3999 = vmul.f32 %v3871, %v3983
      %v4000 = vmul.f32 %v3872, %v3984
      %v4001 = vld [vmem:[%s12] sm:$0x1]
      %v4003 = vlaneseq
      %v4004 = vshrl.u32 %v4003, 7
      %v4005 = vsub.s32 0, %v4004
      %v4006 = vrot.slane %v4001, %v4005
      %v4008 = vmul.f32 %v3985, %v4006
      %v4009 = vmul.f32 %v3986, %v4006
      %v4010 = vmul.f32 %v3987, %v4006
      %v4011 = vmul.f32 %v3988, %v4006
      %v4012 = vmul.f32 %v3989, %v4006
      %v4013 = vmul.f32 %v3990, %v4006
      %v4014 = vmul.f32 %v3991, %v4006
      %v4015 = vmul.f32 %v3992, %v4006
      %v4016 = vmul.f32 %v3993, %v4006
      %v4017 = vmul.f32 %v3994, %v4006
      %v4018 = vmul.f32 %v3995, %v4006
      %v4019 = vmul.f32 %v3996, %v4006
      %v4020 = vmul.f32 %v3997, %v4006
      %v4021 = vmul.f32 %v3998, %v4006
      %v4022 = vmul.f32 %v3999, %v4006
      %v4023 = vmul.f32 %v4000, %v4006
      %v4024 = vld [vmem:[%s13] sm:$0x1]
      %v4026 = vlaneseq
      %v4027 = vshrl.u32 %v4026, 7
      %v4028 = vsub.s32 0, %v4027
      %v4029 = vrot.slane %v4024, %v4028
      %v4031 = vadd.f32 %v4008, %v4029
      %v4032 = vadd.f32 %v4009, %v4029
      %v4033 = vadd.f32 %v4010, %v4029
      %v4034 = vadd.f32 %v4011, %v4029
      %v4035 = vadd.f32 %v4012, %v4029
      %v4036 = vadd.f32 %v4013, %v4029
      %v4037 = vadd.f32 %v4014, %v4029
      %v4038 = vadd.f32 %v4015, %v4029
      %v4039 = vadd.f32 %v4016, %v4029
      %v4040 = vadd.f32 %v4017, %v4029
      %v4041 = vadd.f32 %v4018, %v4029
      %v4042 = vadd.f32 %v4019, %v4029
      %v4043 = vadd.f32 %v4020, %v4029
      %v4044 = vadd.f32 %v4021, %v4029
      %v4045 = vadd.f32 %v4022, %v4029
      %v4046 = vadd.f32 %v4023, %v4029
      %4047 = vst.msk [vmem:[%s489] sm:$0xff] %vm575, %v4031
      %4048 = vst.msk [vmem:[%s489 + $0x8] sm:$0xff] %vm575, %v4032
      %4049 = vst.msk [vmem:[%s489 + $0x10] sm:$0xff] %vm575, %v4033
      %4050 = vst.msk [vmem:[%s489 + $0x18] sm:$0xff] %vm575, %v4034
      %4051 = vst.msk [vmem:[%s489 + $0x20] sm:$0xff] %vm575, %v4035
      %4052 = vst.msk [vmem:[%s489 + $0x28] sm:$0xff] %vm575, %v4036
      %4053 = vst.msk [vmem:[%s489 + $0x30] sm:$0xff] %vm575, %v4037
      %4054 = vst.msk [vmem:[%s489 + $0x38] sm:$0xff] %vm575, %v4038
      %4055 = vst.msk [vmem:[%s489 + $0x40] sm:$0xff] %vm575, %v4039
      %4056 = vst.msk [vmem:[%s489 + $0x48] sm:$0xff] %vm575, %v4040
      %4057 = vst.msk [vmem:[%s489 + $0x50] sm:$0xff] %vm575, %v4041
      %4058 = vst.msk [vmem:[%s489 + $0x58] sm:$0xff] %vm575, %v4042
      %4059 = vst.msk [vmem:[%s489 + $0x60] sm:$0xff] %vm575, %v4043
      %4060 = vst.msk [vmem:[%s489 + $0x68] sm:$0xff] %vm575, %v4044
      %4061 = vst.msk [vmem:[%s489 + $0x70] sm:$0xff] %vm575, %v4045
      %4062 = vst.msk [vmem:[%s489 + $0x78] sm:$0xff] %vm575, %v4046
      %s4063 = smul.u32 16, %s25
      %p4064 = scmp.lt.s32.totalorder %s4063, 63
      %s4065 = scalar_select %p4064, %s4063, 63
      %s4066 = smul.addr %s4065, 8
      %s4067 = scalar_lea.vmem %s14, %s4066
      // Predicated region
      $region77: #{tpu_custom_call.1} parent=75 // pred_check
        %p4068 = pneg %p347
      $region78: #{tpu_custom_call.1} parent=75 // pred_check_branch
        %4070 = sbr.rel (%p4068) target = $region80
      $region79: #{tpu_custom_call.1} parent=75 // pred_region
        %s4071 = smul.u32 16, %s25
      $region80: #{tpu_custom_call.1} parent=75 // pred_fallthru
        _
    $region76: #{tpu_custom_call.1} parent=5 // pred_fallthru
      _
    %p4072 = scmp.le.s32.totalorder 2, %s20
    // Predicated region
    $region81: #{tpu_custom_call.1} parent=5 // pred_check
      %p4073 = pneg %p4072
    $region82: #{tpu_custom_call.1} parent=5 // pred_check_branch
      %4075 = sbr.rel (%p4073) target = $region84
    $region83: #{tpu_custom_call.1} parent=5 // pred_region
      %s4076 = ssub.s32 %s20, 2
      // Predicated region
      $region85: #{tpu_custom_call.1} parent=83 // pred_check
        %p4077 = pneg %p353
      $region86: #{tpu_custom_call.1} parent=83 // pred_check_branch
        %4079 = sbr.rel (%p4077) target = $region88
      $region87: #{tpu_custom_call.1} parent=83 // pred_region
        %s4080 = smul.u32 16, %s26
        %p4081 = scmp.lt.s32.totalorder %s4080, 63
        %s4082 = scalar_select %p4081, %s4080, 63
        %s4083 = smul.addr %s4082, 8
        %s4084 = scalar_lea.vmem %s14, %s4083
      $region88: #{tpu_custom_call.1} parent=83 // pred_fallthru
        _
    $region84: #{tpu_custom_call.1} parent=5 // pred_fallthru
      _
  $region6: #{tpu_custom_call.1} parent=0 // loop_footer
    %s24 = sadd.s32 1, %s20
  $region7: #{tpu_custom_call.1} parent=0 // loop_footer_branch
    %19 = sbr.rel target = $region3
  $region8: #{tpu_custom_call.1} parent=0 // loop_exit
    _

</llo_original>
